<compile_context>
chip_gen: v6e
topology: v6e:2x2x1
jax: 0.10.0
libtpu: 0.0.40
codegen_flags: <defaults>
</compile_context>

<pallas_src>
import functools

import numpy as np
import jax
import jax.numpy as jnp
from jax.experimental import pallas as pl
from jax.experimental.pallas import tpu as pltpu  # noqa: F401  (TPU backend assumed)

# ---- configuration: MLP(input_size=4, hidden_size=32, num_blocks=2) ---------
IN_CH = 4
HID = 32
NUM_BLOCKS = 2
SEQ = 25                 # output_size hard-coded in the torch module
EPS = 1e-5
BATCH = 2
IMG_H, IMG_W = 16, 49    # maxpool -> (8, 50); conv (8,2)/(8,2) -> 25 tokens

_SEQ_PAD = 32            # token dim padded to 32 inside the conv front-end
_PACK_W = 128            # lane width of the packed parameter slab


# ---------------- in-kernel math helpers -------------------------------------
def _erf(x):
    # Abramowitz & Stegun 7.1.26 (|err| < 1.5e-7 ~ f32 resolution).
    # TODO(synk): switch to jax.lax.erf once a Mosaic erf lowering is guaranteed.
    a1, a2, a3, a4, a5 = 0.254829592, -0.284496736, 1.421413741, -1.453152027, 1.061405429
    p = 0.3275911
    ax = jnp.abs(x)
    t = 1.0 / (1.0 + p * ax)
    poly = ((((a5 * t + a4) * t + a3) * t + a2) * t + a1) * t
    y = 1.0 - poly * jnp.exp(-ax * ax)
    return jnp.where(x < 0.0, -y, y)


def _gelu(x):
    # erf-based GELU (torch.nn.GELU() default)
    return 0.5 * x * (1.0 + _erf(x * np.float32(1.0 / np.sqrt(2.0))))


def _ln_lastdim(x, w, b):
    mu = jnp.mean(x, axis=-1, keepdims=True)
    xc = x - mu
    var = jnp.mean(xc * xc, axis=-1, keepdims=True)
    return xc * jax.lax.rsqrt(var + EPS) * w + b


# ---------------- the fused kernel --------------------------------------------
def _fused_kernel(batch, meta, xin_ref, slab_ref, out_ref):
    f32 = jnp.float32

    def par(name):                       # static slice of the parameter slab
        off, r, c = meta[name]
        return slab_ref[off:off + r, 0:c]

    W = IMG_W
    R = IN_CH * (IMG_H // 2)             # 32 = (cin, h) rows per batch sample

    # ---- MaxPool2d(kernel=2, stride=(2,1), padding=(0,1)) -------------------
    # xin rows are (b, cin, h); each row holds image rows [2h | 2h+1] side by side.
    xr = jnp.maximum(xin_ref[:, 0:W], xin_ref[:, W:2 * W])            # (B*R, 49)

    # column pooling + stride-2 patch gather via one-hot selection matmuls
    # (selection = pure gather, so it commutes with the elementwise max).
    g0 = jnp.dot(xr, par("sel0"), preferred_element_type=f32)         # col 2t
    gm = jnp.dot(xr, par("selm"), preferred_element_type=f32)         # col 2t-1 (clamped)
    gp = jnp.dot(xr, par("selp"), preferred_element_type=f32)         # col 2t+1 (clamped)
    ev = jnp.maximum(gm, g0)                                          # (B*R, 32) kw=0 taps
    od = jnp.maximum(g0, gp)                                          # (B*R, 32) kw=1 taps

    # ---- Conv2d(Cin->HID, kernel=(8,2), stride=(8,2), bias=False) -----------
    we = par("we")                                                    # (HID, R) kw=0
    wo = par("wo")                                                    # (HID, R) kw=1
    xs = []
    for b in range(batch):
        conv_t = (jnp.dot(we, ev[b * R:(b + 1) * R, :], preferred_element_type=f32)
                  + jnp.dot(wo, od[b * R:(b + 1) * R, :], preferred_element_type=f32))  # (HID, 32)
        xs.append(jnp.transpose(conv_t)[0:SEQ, :])                    # (SEQ, HID)
    x = jnp.concatenate(xs, axis=0)                                   # (B*SEQ, HID)

    # ---- MixerBlocks: whole batch at once (block-diagonal token-mix weights) -
    for blk in range(NUM_BLOCKS):
        lnw = par(f"ln_w{blk}")                                       # (1, HID)
        lnb = par(f"ln_b{blk}")

        # token mixing (MlpBlock_Patches along the S axis)
        y = _ln_lastdim(x, lnw, lnb)                                  # (B*S, HID)
        h = _gelu(jnp.dot(par(f"tw0{blk}"), y, preferred_element_type=f32)
                  + par(f"tb0{blk}"))                                 # (B*2S, HID)
        x = x + jnp.dot(par(f"tw1{blk}"), h, preferred_element_type=f32) + par(f"tb1{blk}")

        # channel mixing (MlpBlock_Channels), shared LN module reused
        y = _ln_lastdim(x, lnw, lnb)
        h = _gelu(jnp.dot(y, par(f"cw0{blk}"), preferred_element_type=f32)
                  + par(f"cb0{blk}"))                                 # (B*S, 2*HID)
        x = x + jnp.dot(h, par(f"cw1{blk}"), preferred_element_type=f32) + par(f"cb1{blk}")

    # ---- final nn.LayerNorm([SEQ, HID]) + mean over tokens, per sample ------
    flnw = par("fln_w")                                               # (SEQ, HID)
    flnb = par("fln_b")
    outs = []
    for b in range(batch):
        xb = x[b * SEQ:(b + 1) * SEQ, :]
        mu = jnp.mean(xb)
        xc = xb - mu
        var = jnp.mean(xc * xc)
        xn = xc * jax.lax.rsqrt(var + EPS) * flnw + flnb
        outs.append(jnp.mean(xn, axis=0, keepdims=True))              # (1, HID)
    out_ref[...] = jnp.concatenate(outs, axis=0)                      # (B, HID)


# ---------------- host-side parameter packing (one DMA) -----------------------
def _round8(n):
    return (n + 7) // 8 * 8


def _selection_matrices():
    s0 = np.zeros((IMG_W, _SEQ_PAD), np.float32)
    sm = np.zeros((IMG_W, _SEQ_PAD), np.float32)
    sp = np.zeros((IMG_W, _SEQ_PAD), np.float32)
    for t in range(SEQ):
        s0[2 * t, t] = 1.0                      # pooled column 2t
        sm[max(2 * t - 1, 0), t] = 1.0          # pooled column 2t-1 (pad -> duplicate)
        sp[min(2 * t + 1, IMG_W - 1), t] = 1.0  # pooled column 2t+1 (pad -> duplicate)
    return s0, sm, sp


def _block_diag(w, batch):
    r, c = w.shape
    out = jnp.zeros((batch * r, batch * c), w.dtype)
    for b in range(batch):
        out = out.at[b * r:(b + 1) * r, b * c:(b + 1) * c].set(w)
    return out


def _pack_params(params, batch):
    """Pack every weight + constant into one (rows, 128) f32 slab."""
    s0, sm, sp = _selection_matrices()
    R = IN_CH * (IMG_H // 2)
    conv_w = params["conv_w"]                                   # (HID, Cin, 8, 2)
    entries = [
        ("sel0", jnp.asarray(s0)),
        ("selm", jnp.asarray(sm)),
        ("selp", jnp.asarray(sp)),
        ("we", conv_w[:, :, :, 0].reshape(HID, R)),
        ("wo", conv_w[:, :, :, 1].reshape(HID, R)),
    ]
    for blk in range(NUM_BLOCKS):
        entries += [
            (f"ln_w{blk}", params["ln_w"][blk].reshape(1, HID)),
            (f"ln_b{blk}", params["ln_b"][blk].reshape(1, HID)),
            (f"tw0{blk}", _block_diag(params["tw0"][blk], batch)),                    # (B*2S, B*S)
            (f"tb0{blk}", jnp.tile(params["tb0"][blk].reshape(2 * SEQ, 1), (batch, 1))),
            (f"tw1{blk}", _block_diag(params["tw1"][blk], batch)),                    # (B*S, B*2S)
            (f"tb1{blk}", jnp.tile(params["tb1"][blk].reshape(SEQ, 1), (batch, 1))),
            (f"cw0{blk}", params["cw0"][blk]),                                        # (HID, 2HID)
            (f"cb0{blk}", params["cb0"][blk].reshape(1, 2 * HID)),
            (f"cw1{blk}", params["cw1"][blk]),                                        # (2HID, HID)
            (f"cb1{blk}", params["cb1"][blk].reshape(1, HID)),
        ]
    entries += [("fln_w", params["fln_w"]), ("fln_b", params["fln_b"])]

    meta = {}
    off = 0
    for name, arr in entries:
        r, c = arr.shape
        assert c <= _PACK_W, (name, arr.shape)
        meta[name] = (off, int(r), int(c))
        off += _round8(int(r))                   # keep every block sublane-aligned
    slab = jnp.zeros((_round8(off), _PACK_W), jnp.float32)
    for name, arr in entries:
        o, r, c = meta[name]
        slab = slab.at[o:o + r, 0:c].set(arr.astype(jnp.float32))
    return slab, meta


# ---------------- public forward ----------------------------------------------
def mlp_head_forward(x, params):
    B, Cin, H, W = x.shape
    assert Cin == IN_CH and H == IMG_H and W == IMG_W, (Cin, H, W)
    # free row-major view: row (b, cin, h) holds image rows 2h and 2h+1 side by side
    xin = x.reshape(B * Cin * (H // 2), 2 * W).astype(jnp.float32)
    slab, meta = _pack_params(params, B)
    out = pl.pallas_call(
        functools.partial(_fused_kernel, B, meta),
        out_shape=jax.ShapeDtypeStruct((B, HID), jnp.float32),
    )(xin, slab)                                 # no grid: one invocation, 2 input DMAs
    return out                                   # (B, HID)


# ---------------- deterministic parameters ------------------------------------
def init_params(key):
    ks = jax.random.split(key, 9)

    def nrm(k, shape, scale=0.05):
        return (scale * jax.random.normal(k, shape)).astype(jnp.float32)

    return dict(
        conv_w=nrm(ks[0], (HID, IN_CH, IMG_H // 2, 2)),      # torch (Cout, Cin, kh, kw)
        ln_w=jnp.ones((NUM_BLOCKS, HID), jnp.float32),       # shared MixerBlock LN
        ln_b=jnp.zeros((NUM_BLOCKS, HID), jnp.float32),
        tw0=nrm(ks[1], (NUM_BLOCKS, 2 * SEQ, SEQ)),          # MlpBlock_Patches Dense0.weight
        tb0=nrm(ks[2], (NUM_BLOCKS, 2 * SEQ)),
        tw1=nrm(ks[3], (NUM_BLOCKS, SEQ, 2 * SEQ)),          # MlpBlock_Patches Dense1.weight
        tb1=nrm(ks[4], (NUM_BLOCKS, SEQ)),
        cw0=nrm(ks[5], (NUM_BLOCKS, HID, 2 * HID)),          # MlpBlock_Channels (right-multiply layout)
        cb0=nrm(ks[6], (NUM_BLOCKS, 2 * HID)),
        cw1=nrm(ks[7], (NUM_BLOCKS, 2 * HID, HID)),
        cb1=nrm(ks[8], (NUM_BLOCKS, HID)),
        fln_w=jnp.ones((SEQ, HID), jnp.float32),             # nn.LayerNorm([25, HID])
        fln_b=jnp.zeros((SEQ, HID), jnp.float32),
    )


if __name__ == "__main__":
    key = jax.random.PRNGKey(0)
    kx, kp = jax.random.split(key)
    # NCHW input; H=16, W=49 so that maxpool -> conv yields exactly 25 tokens
    x = jax.random.normal(kx, (BATCH, IN_CH, IMG_H, IMG_W), dtype=jnp.float32)
    params = init_params(kp)

    out = jax.jit(mlp_head_forward)(x, params)
    out = jax.block_until_ready(out)
    assert out.shape == (BATCH, HID) and bool(jnp.all(jnp.isfinite(out)))
    print("KERNEL_OK")
</pallas_src>

<mosaic_0001>
module attributes {stable_mosaic.version = 11 : i64} {
  func.func @_fused_kernel(%arg0: memref<64x98xf32, #tpu.memory_space<vmem>>, %arg1: memref<1192x128xf32, #tpu.memory_space<vmem>>, %arg2: memref<2x32xf32, #tpu.memory_space<vmem>>) attributes {dimension_semantics = [], scalar_prefetch = 0 : i64, scratch_operands = 0 : i64, tpu.core_type = #tpu.core_type<tc>} {
    %c0 = arith.constant 0 : index
    %c0_0 = arith.constant 0 : index
    %0 = vector.load %arg0[%c0, %c0_0] : memref<64x98xf32, #tpu.memory_space<vmem>>, vector<64x49xf32>
    %c0_1 = arith.constant 0 : index
    %c49 = arith.constant 49 : index
    %1 = vector.load %arg0[%c0_1, %c49] : memref<64x98xf32, #tpu.memory_space<vmem>>, vector<64x49xf32>
    %2 = arith.maximumf %0, %1 : vector<64x49xf32>
    %c0_2 = arith.constant 0 : index
    %c0_3 = arith.constant 0 : index
    %3 = vector.load %arg1[%c0_2, %c0_3] : memref<1192x128xf32, #tpu.memory_space<vmem>>, vector<49x32xf32>
    %cst = arith.constant dense<0.000000e+00> : vector<64x32xf32>
    %4 = tpu.matmul %2, %3, %cst {dimension_numbers = #tpu.dot_dimension_numbers<[1], [0], [0], [1], [0, 0, 1, 1], [], []>} : vector<64x49xf32>, vector<49x32xf32>, vector<64x32xf32> -> vector<64x32xf32>
    %c56 = arith.constant 56 : index
    %c0_4 = arith.constant 0 : index
    %5 = vector.load %arg1[%c56, %c0_4] : memref<1192x128xf32, #tpu.memory_space<vmem>>, vector<49x32xf32>
    %cst_5 = arith.constant dense<0.000000e+00> : vector<64x32xf32>
    %6 = tpu.matmul %2, %5, %cst_5 {dimension_numbers = #tpu.dot_dimension_numbers<[1], [0], [0], [1], [0, 0, 1, 1], [], []>} : vector<64x49xf32>, vector<49x32xf32>, vector<64x32xf32> -> vector<64x32xf32>
    %c112 = arith.constant 112 : index
    %c0_6 = arith.constant 0 : index
    %7 = vector.load %arg1[%c112, %c0_6] : memref<1192x128xf32, #tpu.memory_space<vmem>>, vector<49x32xf32>
    %cst_7 = arith.constant dense<0.000000e+00> : vector<64x32xf32>
    %8 = tpu.matmul %2, %7, %cst_7 {dimension_numbers = #tpu.dot_dimension_numbers<[1], [0], [0], [1], [0, 0, 1, 1], [], []>} : vector<64x49xf32>, vector<49x32xf32>, vector<64x32xf32> -> vector<64x32xf32>
    %9 = arith.maximumf %6, %4 : vector<64x32xf32>
    %10 = arith.maximumf %4, %8 : vector<64x32xf32>
    %c168 = arith.constant 168 : index
    %c0_8 = arith.constant 0 : index
    %11 = vector.load %arg1[%c168, %c0_8] : memref<1192x128xf32, #tpu.memory_space<vmem>>, vector<32x32xf32>
    %c200 = arith.constant 200 : index
    %c0_9 = arith.constant 0 : index
    %12 = vector.load %arg1[%c200, %c0_9] : memref<1192x128xf32, #tpu.memory_space<vmem>>, vector<32x32xf32>
    %13 = vector.extract_strided_slice %9 {offsets = [0, 0], sizes = [32, 32], strides = [1, 1]} : vector<64x32xf32> to vector<32x32xf32>
    %cst_10 = arith.constant dense<0.000000e+00> : vector<32x32xf32>
    %14 = tpu.matmul %11, %13, %cst_10 {dimension_numbers = #tpu.dot_dimension_numbers<[1], [0], [0], [1], [0, 0, 1, 1], [], []>} : vector<32x32xf32>, vector<32x32xf32>, vector<32x32xf32> -> vector<32x32xf32>
    %15 = vector.extract_strided_slice %10 {offsets = [0, 0], sizes = [32, 32], strides = [1, 1]} : vector<64x32xf32> to vector<32x32xf32>
    %cst_11 = arith.constant dense<0.000000e+00> : vector<32x32xf32>
    %16 = tpu.matmul %12, %15, %cst_11 {dimension_numbers = #tpu.dot_dimension_numbers<[1], [0], [0], [1], [0, 0, 1, 1], [], []>} : vector<32x32xf32>, vector<32x32xf32>, vector<32x32xf32> -> vector<32x32xf32>
    %17 = arith.addf %14, %16 : vector<32x32xf32>
    %18 = tpu.transpose %17, [1, 0] : vector<32x32xf32> -> vector<32x32xf32>
    %19 = vector.extract_strided_slice %18 {offsets = [0, 0], sizes = [25, 32], strides = [1, 1]} : vector<32x32xf32> to vector<25x32xf32>
    %20 = vector.extract_strided_slice %9 {offsets = [32, 0], sizes = [32, 32], strides = [1, 1]} : vector<64x32xf32> to vector<32x32xf32>
    %cst_12 = arith.constant dense<0.000000e+00> : vector<32x32xf32>
    %21 = tpu.matmul %11, %20, %cst_12 {dimension_numbers = #tpu.dot_dimension_numbers<[1], [0], [0], [1], [0, 0, 1, 1], [], []>} : vector<32x32xf32>, vector<32x32xf32>, vector<32x32xf32> -> vector<32x32xf32>
    %22 = vector.extract_strided_slice %10 {offsets = [32, 0], sizes = [32, 32], strides = [1, 1]} : vector<64x32xf32> to vector<32x32xf32>
    %cst_13 = arith.constant dense<0.000000e+00> : vector<32x32xf32>
    %23 = tpu.matmul %12, %22, %cst_13 {dimension_numbers = #tpu.dot_dimension_numbers<[1], [0], [0], [1], [0, 0, 1, 1], [], []>} : vector<32x32xf32>, vector<32x32xf32>, vector<32x32xf32> -> vector<32x32xf32>
    %24 = arith.addf %21, %23 : vector<32x32xf32>
    %25 = tpu.transpose %24, [1, 0] : vector<32x32xf32> -> vector<32x32xf32>
    %26 = vector.extract_strided_slice %25 {offsets = [0, 0], sizes = [25, 32], strides = [1, 1]} : vector<32x32xf32> to vector<25x32xf32>
    %27 = tpu.concatenate %19, %26 in 0 : vector<25x32xf32>, vector<25x32xf32> -> vector<50x32xf32>
    %c232 = arith.constant 232 : index
    %c0_14 = arith.constant 0 : index
    %28 = vector.load %arg1[%c232, %c0_14] : memref<1192x128xf32, #tpu.memory_space<vmem>>, vector<1x32xf32>
    %c240 = arith.constant 240 : index
    %c0_15 = arith.constant 0 : index
    %29 = vector.load %arg1[%c240, %c0_15] : memref<1192x128xf32, #tpu.memory_space<vmem>>, vector<1x32xf32>
    %cst_16 = arith.constant dense<0.000000e+00> : vector<50xf32>
    %30 = vector.multi_reduction <add>, %27, %cst_16 [1] : vector<50x32xf32> to vector<50xf32>
    %31 = vector.shape_cast %30 : vector<50xf32> to vector<50x1xf32>
    %cst_17 = arith.constant 3.200000e+01 : f32
    %32 = vector.broadcast %cst_17 : f32 to vector<50x1xf32>
    %33 = arith.divf %31, %32 : vector<50x1xf32>
    %34 = vector.broadcast %33 : vector<50x1xf32> to vector<50x32xf32>
    %35 = arith.subf %27, %34 : vector<50x32xf32>
    %36 = arith.mulf %35, %35 : vector<50x32xf32>
    %cst_18 = arith.constant dense<0.000000e+00> : vector<50xf32>
    %37 = vector.multi_reduction <add>, %36, %cst_18 [1] : vector<50x32xf32> to vector<50xf32>
    %38 = vector.shape_cast %37 : vector<50xf32> to vector<50x1xf32>
    %cst_19 = arith.constant 3.200000e+01 : f32
    %39 = vector.broadcast %cst_19 : f32 to vector<50x1xf32>
    %40 = arith.divf %38, %39 : vector<50x1xf32>
    %cst_20 = arith.constant 9.99999974E-6 : f32
    %41 = vector.broadcast %cst_20 : f32 to vector<50x1xf32>
    %42 = arith.addf %40, %41 : vector<50x1xf32>
    %43 = math.rsqrt %42 : vector<50x1xf32>
    %44 = vector.broadcast %43 : vector<50x1xf32> to vector<50x32xf32>
    %45 = arith.mulf %35, %44 : vector<50x32xf32>
    %46 = vector.broadcast %28 : vector<1x32xf32> to vector<50x32xf32>
    %47 = arith.mulf %45, %46 : vector<50x32xf32>
    %48 = vector.broadcast %29 : vector<1x32xf32> to vector<50x32xf32>
    %49 = arith.addf %47, %48 : vector<50x32xf32>
    %c248 = arith.constant 248 : index
    %c0_21 = arith.constant 0 : index
    %50 = vector.load %arg1[%c248, %c0_21] : memref<1192x128xf32, #tpu.memory_space<vmem>>, vector<100x50xf32>
    %cst_22 = arith.constant dense<0.000000e+00> : vector<100x32xf32>
    %51 = tpu.matmul %50, %49, %cst_22 {dimension_numbers = #tpu.dot_dimension_numbers<[1], [0], [0], [1], [0, 0, 1, 1], [], []>} : vector<100x50xf32>, vector<50x32xf32>, vector<100x32xf32> -> vector<100x32xf32>
    %c352 = arith.constant 352 : index
    %c0_23 = arith.constant 0 : index
    %52 = vector.load %arg1[%c352, %c0_23] : memref<1192x128xf32, #tpu.memory_space<vmem>>, vector<100x1xf32>
    %53 = vector.broadcast %52 : vector<100x1xf32> to vector<100x32xf32>
    %54 = arith.addf %51, %53 : vector<100x32xf32>
    %cst_24 = arith.constant 5.000000e-01 : f32
    %55 = vector.broadcast %cst_24 : f32 to vector<100x32xf32>
    %56 = arith.mulf %55, %54 : vector<100x32xf32>
    %cst_25 = arith.constant 0.707106769 : f32
    %57 = vector.broadcast %cst_25 : f32 to vector<100x32xf32>
    %58 = arith.mulf %54, %57 : vector<100x32xf32>
    %59 = math.absf %58 : vector<100x32xf32>
    %cst_26 = arith.constant 0.327591091 : f32
    %60 = vector.broadcast %cst_26 : f32 to vector<100x32xf32>
    %61 = arith.mulf %60, %59 : vector<100x32xf32>
    %cst_27 = arith.constant 1.000000e+00 : f32
    %62 = vector.broadcast %cst_27 : f32 to vector<100x32xf32>
    %63 = arith.addf %62, %61 : vector<100x32xf32>
    %cst_28 = arith.constant 1.000000e+00 : f32
    %64 = vector.broadcast %cst_28 : f32 to vector<100x32xf32>
    %65 = arith.divf %64, %63 : vector<100x32xf32>
    %cst_29 = arith.constant 1.06140542 : f32
    %66 = vector.broadcast %cst_29 : f32 to vector<100x32xf32>
    %67 = arith.mulf %66, %65 : vector<100x32xf32>
    %cst_30 = arith.constant -1.45315206 : f32
    %68 = vector.broadcast %cst_30 : f32 to vector<100x32xf32>
    %69 = arith.addf %67, %68 : vector<100x32xf32>
    %70 = arith.mulf %69, %65 : vector<100x32xf32>
    %cst_31 = arith.constant 1.42141378 : f32
    %71 = vector.broadcast %cst_31 : f32 to vector<100x32xf32>
    %72 = arith.addf %70, %71 : vector<100x32xf32>
    %73 = arith.mulf %72, %65 : vector<100x32xf32>
    %cst_32 = arith.constant -0.284496725 : f32
    %74 = vector.broadcast %cst_32 : f32 to vector<100x32xf32>
    %75 = arith.addf %73, %74 : vector<100x32xf32>
    %76 = arith.mulf %75, %65 : vector<100x32xf32>
    %cst_33 = arith.constant 0.254829586 : f32
    %77 = vector.broadcast %cst_33 : f32 to vector<100x32xf32>
    %78 = arith.addf %76, %77 : vector<100x32xf32>
    %79 = arith.mulf %78, %65 : vector<100x32xf32>
    %cst_34 = arith.constant 0.000000e+00 : f32
    %80 = vector.broadcast %cst_34 : f32 to vector<100x32xf32>
    %81 = arith.subf %80, %59 : vector<100x32xf32>
    %82 = arith.mulf %81, %59 : vector<100x32xf32>
    %83 = math.exp %82 : vector<100x32xf32>
    %84 = arith.mulf %79, %83 : vector<100x32xf32>
    %cst_35 = arith.constant 1.000000e+00 : f32
    %85 = vector.broadcast %cst_35 : f32 to vector<100x32xf32>
    %86 = arith.subf %85, %84 : vector<100x32xf32>
    %cst_36 = arith.constant 0.000000e+00 : f32
    %87 = vector.broadcast %cst_36 : f32 to vector<100x32xf32>
    %88 = arith.cmpf olt, %58, %87 : vector<100x32xf32>
    %cst_37 = arith.constant 0.000000e+00 : f32
    %89 = vector.broadcast %cst_37 : f32 to vector<100x32xf32>
    %90 = arith.subf %89, %86 : vector<100x32xf32>
    %91 = arith.select %88, %90, %86 : vector<100x32xi1>, vector<100x32xf32>
    %cst_38 = arith.constant 1.000000e+00 : f32
    %92 = vector.broadcast %cst_38 : f32 to vector<100x32xf32>
    %93 = arith.addf %92, %91 : vector<100x32xf32>
    %94 = arith.mulf %56, %93 : vector<100x32xf32>
    %c456 = arith.constant 456 : index
    %c0_39 = arith.constant 0 : index
    %95 = vector.load %arg1[%c456, %c0_39] : memref<1192x128xf32, #tpu.memory_space<vmem>>, vector<50x100xf32>
    %cst_40 = arith.constant dense<0.000000e+00> : vector<50x32xf32>
    %96 = tpu.matmul %95, %94, %cst_40 {dimension_numbers = #tpu.dot_dimension_numbers<[1], [0], [0], [1], [0, 0, 1, 1], [], []>} : vector<50x100xf32>, vector<100x32xf32>, vector<50x32xf32> -> vector<50x32xf32>
    %97 = arith.addf %27, %96 : vector<50x32xf32>
    %c512 = arith.constant 512 : index
    %c0_41 = arith.constant 0 : index
    %98 = vector.load %arg1[%c512, %c0_41] : memref<1192x128xf32, #tpu.memory_space<vmem>>, vector<50x1xf32>
    %99 = vector.broadcast %98 : vector<50x1xf32> to vector<50x32xf32>
    %100 = arith.addf %97, %99 : vector<50x32xf32>
    %cst_42 = arith.constant dense<0.000000e+00> : vector<50xf32>
    %101 = vector.multi_reduction <add>, %100, %cst_42 [1] : vector<50x32xf32> to vector<50xf32>
    %102 = vector.shape_cast %101 : vector<50xf32> to vector<50x1xf32>
    %cst_43 = arith.constant 3.200000e+01 : f32
    %103 = vector.broadcast %cst_43 : f32 to vector<50x1xf32>
    %104 = arith.divf %102, %103 : vector<50x1xf32>
    %105 = vector.broadcast %104 : vector<50x1xf32> to vector<50x32xf32>
    %106 = arith.subf %100, %105 : vector<50x32xf32>
    %107 = arith.mulf %106, %106 : vector<50x32xf32>
    %cst_44 = arith.constant dense<0.000000e+00> : vector<50xf32>
    %108 = vector.multi_reduction <add>, %107, %cst_44 [1] : vector<50x32xf32> to vector<50xf32>
    %109 = vector.shape_cast %108 : vector<50xf32> to vector<50x1xf32>
    %cst_45 = arith.constant 3.200000e+01 : f32
    %110 = vector.broadcast %cst_45 : f32 to vector<50x1xf32>
    %111 = arith.divf %109, %110 : vector<50x1xf32>
    %cst_46 = arith.constant 9.99999974E-6 : f32
    %112 = vector.broadcast %cst_46 : f32 to vector<50x1xf32>
    %113 = arith.addf %111, %112 : vector<50x1xf32>
    %114 = math.rsqrt %113 : vector<50x1xf32>
    %115 = vector.broadcast %114 : vector<50x1xf32> to vector<50x32xf32>
    %116 = arith.mulf %106, %115 : vector<50x32xf32>
    %117 = vector.broadcast %28 : vector<1x32xf32> to vector<50x32xf32>
    %118 = arith.mulf %116, %117 : vector<50x32xf32>
    %119 = vector.broadcast %29 : vector<1x32xf32> to vector<50x32xf32>
    %120 = arith.addf %118, %119 : vector<50x32xf32>
    %c568 = arith.constant 568 : index
    %c0_47 = arith.constant 0 : index
    %121 = vector.load %arg1[%c568, %c0_47] : memref<1192x128xf32, #tpu.memory_space<vmem>>, vector<32x64xf32>
    %cst_48 = arith.constant dense<0.000000e+00> : vector<50x64xf32>
    %122 = tpu.matmul %120, %121, %cst_48 {dimension_numbers = #tpu.dot_dimension_numbers<[1], [0], [0], [1], [0, 0, 1, 1], [], []>} : vector<50x32xf32>, vector<32x64xf32>, vector<50x64xf32> -> vector<50x64xf32>
    %c600 = arith.constant 600 : index
    %c0_49 = arith.constant 0 : index
    %123 = vector.load %arg1[%c600, %c0_49] : memref<1192x128xf32, #tpu.memory_space<vmem>>, vector<1x64xf32>
    %124 = vector.broadcast %123 : vector<1x64xf32> to vector<50x64xf32>
    %125 = arith.addf %122, %124 : vector<50x64xf32>
    %cst_50 = arith.constant 5.000000e-01 : f32
    %126 = vector.broadcast %cst_50 : f32 to vector<50x64xf32>
    %127 = arith.mulf %126, %125 : vector<50x64xf32>
    %cst_51 = arith.constant 0.707106769 : f32
    %128 = vector.broadcast %cst_51 : f32 to vector<50x64xf32>
    %129 = arith.mulf %125, %128 : vector<50x64xf32>
    %130 = math.absf %129 : vector<50x64xf32>
    %cst_52 = arith.constant 0.327591091 : f32
    %131 = vector.broadcast %cst_52 : f32 to vector<50x64xf32>
    %132 = arith.mulf %131, %130 : vector<50x64xf32>
    %cst_53 = arith.constant 1.000000e+00 : f32
    %133 = vector.broadcast %cst_53 : f32 to vector<50x64xf32>
    %134 = arith.addf %133, %132 : vector<50x64xf32>
    %cst_54 = arith.constant 1.000000e+00 : f32
    %135 = vector.broadcast %cst_54 : f32 to vector<50x64xf32>
    %136 = arith.divf %135, %134 : vector<50x64xf32>
    %cst_55 = arith.constant 1.06140542 : f32
    %137 = vector.broadcast %cst_55 : f32 to vector<50x64xf32>
    %138 = arith.mulf %137, %136 : vector<50x64xf32>
    %cst_56 = arith.constant -1.45315206 : f32
    %139 = vector.broadcast %cst_56 : f32 to vector<50x64xf32>
    %140 = arith.addf %138, %139 : vector<50x64xf32>
    %141 = arith.mulf %140, %136 : vector<50x64xf32>
    %cst_57 = arith.constant 1.42141378 : f32
    %142 = vector.broadcast %cst_57 : f32 to vector<50x64xf32>
    %143 = arith.addf %141, %142 : vector<50x64xf32>
    %144 = arith.mulf %143, %136 : vector<50x64xf32>
    %cst_58 = arith.constant -0.284496725 : f32
    %145 = vector.broadcast %cst_58 : f32 to vector<50x64xf32>
    %146 = arith.addf %144, %145 : vector<50x64xf32>
    %147 = arith.mulf %146, %136 : vector<50x64xf32>
    %cst_59 = arith.constant 0.254829586 : f32
    %148 = vector.broadcast %cst_59 : f32 to vector<50x64xf32>
    %149 = arith.addf %147, %148 : vector<50x64xf32>
    %150 = arith.mulf %149, %136 : vector<50x64xf32>
    %cst_60 = arith.constant 0.000000e+00 : f32
    %151 = vector.broadcast %cst_60 : f32 to vector<50x64xf32>
    %152 = arith.subf %151, %130 : vector<50x64xf32>
    %153 = arith.mulf %152, %130 : vector<50x64xf32>
    %154 = math.exp %153 : vector<50x64xf32>
    %155 = arith.mulf %150, %154 : vector<50x64xf32>
    %cst_61 = arith.constant 1.000000e+00 : f32
    %156 = vector.broadcast %cst_61 : f32 to vector<50x64xf32>
    %157 = arith.subf %156, %155 : vector<50x64xf32>
    %cst_62 = arith.constant 0.000000e+00 : f32
    %158 = vector.broadcast %cst_62 : f32 to vector<50x64xf32>
    %159 = arith.cmpf olt, %129, %158 : vector<50x64xf32>
    %cst_63 = arith.constant 0.000000e+00 : f32
    %160 = vector.broadcast %cst_63 : f32 to vector<50x64xf32>
    %161 = arith.subf %160, %157 : vector<50x64xf32>
    %162 = arith.select %159, %161, %157 : vector<50x64xi1>, vector<50x64xf32>
    %cst_64 = arith.constant 1.000000e+00 : f32
    %163 = vector.broadcast %cst_64 : f32 to vector<50x64xf32>
    %164 = arith.addf %163, %162 : vector<50x64xf32>
    %165 = arith.mulf %127, %164 : vector<50x64xf32>
    %c608 = arith.constant 608 : index
    %c0_65 = arith.constant 0 : index
    %166 = vector.load %arg1[%c608, %c0_65] : memref<1192x128xf32, #tpu.memory_space<vmem>>, vector<64x32xf32>
    %cst_66 = arith.constant dense<0.000000e+00> : vector<50x32xf32>
    %167 = tpu.matmul %165, %166, %cst_66 {dimension_numbers = #tpu.dot_dimension_numbers<[1], [0], [0], [1], [0, 0, 1, 1], [], []>} : vector<50x64xf32>, vector<64x32xf32>, vector<50x32xf32> -> vector<50x32xf32>
    %168 = arith.addf %100, %167 : vector<50x32xf32>
    %c672 = arith.constant 672 : index
    %c0_67 = arith.constant 0 : index
    %169 = vector.load %arg1[%c672, %c0_67] : memref<1192x128xf32, #tpu.memory_space<vmem>>, vector<1x32xf32>
    %170 = vector.broadcast %169 : vector<1x32xf32> to vector<50x32xf32>
    %171 = arith.addf %168, %170 : vector<50x32xf32>
    %c680 = arith.constant 680 : index
    %c0_68 = arith.constant 0 : index
    %172 = vector.load %arg1[%c680, %c0_68] : memref<1192x128xf32, #tpu.memory_space<vmem>>, vector<1x32xf32>
    %c688 = arith.constant 688 : index
    %c0_69 = arith.constant 0 : index
    %173 = vector.load %arg1[%c688, %c0_69] : memref<1192x128xf32, #tpu.memory_space<vmem>>, vector<1x32xf32>
    %cst_70 = arith.constant dense<0.000000e+00> : vector<50xf32>
    %174 = vector.multi_reduction <add>, %171, %cst_70 [1] : vector<50x32xf32> to vector<50xf32>
    %175 = vector.shape_cast %174 : vector<50xf32> to vector<50x1xf32>
    %cst_71 = arith.constant 3.200000e+01 : f32
    %176 = vector.broadcast %cst_71 : f32 to vector<50x1xf32>
    %177 = arith.divf %175, %176 : vector<50x1xf32>
    %178 = vector.broadcast %177 : vector<50x1xf32> to vector<50x32xf32>
    %179 = arith.subf %171, %178 : vector<50x32xf32>
    %180 = arith.mulf %179, %179 : vector<50x32xf32>
    %cst_72 = arith.constant dense<0.000000e+00> : vector<50xf32>
    %181 = vector.multi_reduction <add>, %180, %cst_72 [1] : vector<50x32xf32> to vector<50xf32>
    %182 = vector.shape_cast %181 : vector<50xf32> to vector<50x1xf32>
    %cst_73 = arith.constant 3.200000e+01 : f32
    %183 = vector.broadcast %cst_73 : f32 to vector<50x1xf32>
    %184 = arith.divf %182, %183 : vector<50x1xf32>
    %cst_74 = arith.constant 9.99999974E-6 : f32
    %185 = vector.broadcast %cst_74 : f32 to vector<50x1xf32>
    %186 = arith.addf %184, %185 : vector<50x1xf32>
    %187 = math.rsqrt %186 : vector<50x1xf32>
    %188 = vector.broadcast %187 : vector<50x1xf32> to vector<50x32xf32>
    %189 = arith.mulf %179, %188 : vector<50x32xf32>
    %190 = vector.broadcast %172 : vector<1x32xf32> to vector<50x32xf32>
    %191 = arith.mulf %189, %190 : vector<50x32xf32>
    %192 = vector.broadcast %173 : vector<1x32xf32> to vector<50x32xf32>
    %193 = arith.addf %191, %192 : vector<50x32xf32>
    %c696 = arith.constant 696 : index
    %c0_75 = arith.constant 0 : index
    %194 = vector.load %arg1[%c696, %c0_75] : memref<1192x128xf32, #tpu.memory_space<vmem>>, vector<100x50xf32>
    %cst_76 = arith.constant dense<0.000000e+00> : vector<100x32xf32>
    %195 = tpu.matmul %194, %193, %cst_76 {dimension_numbers = #tpu.dot_dimension_numbers<[1], [0], [0], [1], [0, 0, 1, 1], [], []>} : vector<100x50xf32>, vector<50x32xf32>, vector<100x32xf32> -> vector<100x32xf32>
    %c800 = arith.constant 800 : index
    %c0_77 = arith.constant 0 : index
    %196 = vector.load %arg1[%c800, %c0_77] : memref<1192x128xf32, #tpu.memory_space<vmem>>, vector<100x1xf32>
    %197 = vector.broadcast %196 : vector<100x1xf32> to vector<100x32xf32>
    %198 = arith.addf %195, %197 : vector<100x32xf32>
    %cst_78 = arith.constant 5.000000e-01 : f32
    %199 = vector.broadcast %cst_78 : f32 to vector<100x32xf32>
    %200 = arith.mulf %199, %198 : vector<100x32xf32>
    %cst_79 = arith.constant 0.707106769 : f32
    %201 = vector.broadcast %cst_79 : f32 to vector<100x32xf32>
    %202 = arith.mulf %198, %201 : vector<100x32xf32>
    %203 = math.absf %202 : vector<100x32xf32>
    %cst_80 = arith.constant 0.327591091 : f32
    %204 = vector.broadcast %cst_80 : f32 to vector<100x32xf32>
    %205 = arith.mulf %204, %203 : vector<100x32xf32>
    %cst_81 = arith.constant 1.000000e+00 : f32
    %206 = vector.broadcast %cst_81 : f32 to vector<100x32xf32>
    %207 = arith.addf %206, %205 : vector<100x32xf32>
    %cst_82 = arith.constant 1.000000e+00 : f32
    %208 = vector.broadcast %cst_82 : f32 to vector<100x32xf32>
    %209 = arith.divf %208, %207 : vector<100x32xf32>
    %cst_83 = arith.constant 1.06140542 : f32
    %210 = vector.broadcast %cst_83 : f32 to vector<100x32xf32>
    %211 = arith.mulf %210, %209 : vector<100x32xf32>
    %cst_84 = arith.constant -1.45315206 : f32
    %212 = vector.broadcast %cst_84 : f32 to vector<100x32xf32>
    %213 = arith.addf %211, %212 : vector<100x32xf32>
    %214 = arith.mulf %213, %209 : vector<100x32xf32>
    %cst_85 = arith.constant 1.42141378 : f32
    %215 = vector.broadcast %cst_85 : f32 to vector<100x32xf32>
    %216 = arith.addf %214, %215 : vector<100x32xf32>
    %217 = arith.mulf %216, %209 : vector<100x32xf32>
    %cst_86 = arith.constant -0.284496725 : f32
    %218 = vector.broadcast %cst_86 : f32 to vector<100x32xf32>
    %219 = arith.addf %217, %218 : vector<100x32xf32>
    %220 = arith.mulf %219, %209 : vector<100x32xf32>
    %cst_87 = arith.constant 0.254829586 : f32
    %221 = vector.broadcast %cst_87 : f32 to vector<100x32xf32>
    %222 = arith.addf %220, %221 : vector<100x32xf32>
    %223 = arith.mulf %222, %209 : vector<100x32xf32>
    %cst_88 = arith.constant 0.000000e+00 : f32
    %224 = vector.broadcast %cst_88 : f32 to vector<100x32xf32>
    %225 = arith.subf %224, %203 : vector<100x32xf32>
    %226 = arith.mulf %225, %203 : vector<100x32xf32>
    %227 = math.exp %226 : vector<100x32xf32>
    %228 = arith.mulf %223, %227 : vector<100x32xf32>
    %cst_89 = arith.constant 1.000000e+00 : f32
    %229 = vector.broadcast %cst_89 : f32 to vector<100x32xf32>
    %230 = arith.subf %229, %228 : vector<100x32xf32>
    %cst_90 = arith.constant 0.000000e+00 : f32
    %231 = vector.broadcast %cst_90 : f32 to vector<100x32xf32>
    %232 = arith.cmpf olt, %202, %231 : vector<100x32xf32>
    %cst_91 = arith.constant 0.000000e+00 : f32
    %233 = vector.broadcast %cst_91 : f32 to vector<100x32xf32>
    %234 = arith.subf %233, %230 : vector<100x32xf32>
    %235 = arith.select %232, %234, %230 : vector<100x32xi1>, vector<100x32xf32>
    %cst_92 = arith.constant 1.000000e+00 : f32
    %236 = vector.broadcast %cst_92 : f32 to vector<100x32xf32>
    %237 = arith.addf %236, %235 : vector<100x32xf32>
    %238 = arith.mulf %200, %237 : vector<100x32xf32>
    %c904 = arith.constant 904 : index
    %c0_93 = arith.constant 0 : index
    %239 = vector.load %arg1[%c904, %c0_93] : memref<1192x128xf32, #tpu.memory_space<vmem>>, vector<50x100xf32>
    %cst_94 = arith.constant dense<0.000000e+00> : vector<50x32xf32>
    %240 = tpu.matmul %239, %238, %cst_94 {dimension_numbers = #tpu.dot_dimension_numbers<[1], [0], [0], [1], [0, 0, 1, 1], [], []>} : vector<50x100xf32>, vector<100x32xf32>, vector<50x32xf32> -> vector<50x32xf32>
    %241 = arith.addf %171, %240 : vector<50x32xf32>
    %c960 = arith.constant 960 : index
    %c0_95 = arith.constant 0 : index
    %242 = vector.load %arg1[%c960, %c0_95] : memref<1192x128xf32, #tpu.memory_space<vmem>>, vector<50x1xf32>
    %243 = vector.broadcast %242 : vector<50x1xf32> to vector<50x32xf32>
    %244 = arith.addf %241, %243 : vector<50x32xf32>
    %cst_96 = arith.constant dense<0.000000e+00> : vector<50xf32>
    %245 = vector.multi_reduction <add>, %244, %cst_96 [1] : vector<50x32xf32> to vector<50xf32>
    %246 = vector.shape_cast %245 : vector<50xf32> to vector<50x1xf32>
    %cst_97 = arith.constant 3.200000e+01 : f32
    %247 = vector.broadcast %cst_97 : f32 to vector<50x1xf32>
    %248 = arith.divf %246, %247 : vector<50x1xf32>
    %249 = vector.broadcast %248 : vector<50x1xf32> to vector<50x32xf32>
    %250 = arith.subf %244, %249 : vector<50x32xf32>
    %251 = arith.mulf %250, %250 : vector<50x32xf32>
    %cst_98 = arith.constant dense<0.000000e+00> : vector<50xf32>
    %252 = vector.multi_reduction <add>, %251, %cst_98 [1] : vector<50x32xf32> to vector<50xf32>
    %253 = vector.shape_cast %252 : vector<50xf32> to vector<50x1xf32>
    %cst_99 = arith.constant 3.200000e+01 : f32
    %254 = vector.broadcast %cst_99 : f32 to vector<50x1xf32>
    %255 = arith.divf %253, %254 : vector<50x1xf32>
    %cst_100 = arith.constant 9.99999974E-6 : f32
    %256 = vector.broadcast %cst_100 : f32 to vector<50x1xf32>
    %257 = arith.addf %255, %256 : vector<50x1xf32>
    %258 = math.rsqrt %257 : vector<50x1xf32>
    %259 = vector.broadcast %258 : vector<50x1xf32> to vector<50x32xf32>
    %260 = arith.mulf %250, %259 : vector<50x32xf32>
    %261 = vector.broadcast %172 : vector<1x32xf32> to vector<50x32xf32>
    %262 = arith.mulf %260, %261 : vector<50x32xf32>
    %263 = vector.broadcast %173 : vector<1x32xf32> to vector<50x32xf32>
    %264 = arith.addf %262, %263 : vector<50x32xf32>
    %c1016 = arith.constant 1016 : index
    %c0_101 = arith.constant 0 : index
    %265 = vector.load %arg1[%c1016, %c0_101] : memref<1192x128xf32, #tpu.memory_space<vmem>>, vector<32x64xf32>
    %cst_102 = arith.constant dense<0.000000e+00> : vector<50x64xf32>
    %266 = tpu.matmul %264, %265, %cst_102 {dimension_numbers = #tpu.dot_dimension_numbers<[1], [0], [0], [1], [0, 0, 1, 1], [], []>} : vector<50x32xf32>, vector<32x64xf32>, vector<50x64xf32> -> vector<50x64xf32>
    %c1048 = arith.constant 1048 : index
    %c0_103 = arith.constant 0 : index
    %267 = vector.load %arg1[%c1048, %c0_103] : memref<1192x128xf32, #tpu.memory_space<vmem>>, vector<1x64xf32>
    %268 = vector.broadcast %267 : vector<1x64xf32> to vector<50x64xf32>
    %269 = arith.addf %266, %268 : vector<50x64xf32>
    %cst_104 = arith.constant 5.000000e-01 : f32
    %270 = vector.broadcast %cst_104 : f32 to vector<50x64xf32>
    %271 = arith.mulf %270, %269 : vector<50x64xf32>
    %cst_105 = arith.constant 0.707106769 : f32
    %272 = vector.broadcast %cst_105 : f32 to vector<50x64xf32>
    %273 = arith.mulf %269, %272 : vector<50x64xf32>
    %274 = math.absf %273 : vector<50x64xf32>
    %cst_106 = arith.constant 0.327591091 : f32
    %275 = vector.broadcast %cst_106 : f32 to vector<50x64xf32>
    %276 = arith.mulf %275, %274 : vector<50x64xf32>
    %cst_107 = arith.constant 1.000000e+00 : f32
    %277 = vector.broadcast %cst_107 : f32 to vector<50x64xf32>
    %278 = arith.addf %277, %276 : vector<50x64xf32>
    %cst_108 = arith.constant 1.000000e+00 : f32
    %279 = vector.broadcast %cst_108 : f32 to vector<50x64xf32>
    %280 = arith.divf %279, %278 : vector<50x64xf32>
    %cst_109 = arith.constant 1.06140542 : f32
    %281 = vector.broadcast %cst_109 : f32 to vector<50x64xf32>
    %282 = arith.mulf %281, %280 : vector<50x64xf32>
    %cst_110 = arith.constant -1.45315206 : f32
    %283 = vector.broadcast %cst_110 : f32 to vector<50x64xf32>
    %284 = arith.addf %282, %283 : vector<50x64xf32>
    %285 = arith.mulf %284, %280 : vector<50x64xf32>
    %cst_111 = arith.constant 1.42141378 : f32
    %286 = vector.broadcast %cst_111 : f32 to vector<50x64xf32>
    %287 = arith.addf %285, %286 : vector<50x64xf32>
    %288 = arith.mulf %287, %280 : vector<50x64xf32>
    %cst_112 = arith.constant -0.284496725 : f32
    %289 = vector.broadcast %cst_112 : f32 to vector<50x64xf32>
    %290 = arith.addf %288, %289 : vector<50x64xf32>
    %291 = arith.mulf %290, %280 : vector<50x64xf32>
    %cst_113 = arith.constant 0.254829586 : f32
    %292 = vector.broadcast %cst_113 : f32 to vector<50x64xf32>
    %293 = arith.addf %291, %292 : vector<50x64xf32>
    %294 = arith.mulf %293, %280 : vector<50x64xf32>
    %cst_114 = arith.constant 0.000000e+00 : f32
    %295 = vector.broadcast %cst_114 : f32 to vector<50x64xf32>
    %296 = arith.subf %295, %274 : vector<50x64xf32>
    %297 = arith.mulf %296, %274 : vector<50x64xf32>
    %298 = math.exp %297 : vector<50x64xf32>
    %299 = arith.mulf %294, %298 : vector<50x64xf32>
    %cst_115 = arith.constant 1.000000e+00 : f32
    %300 = vector.broadcast %cst_115 : f32 to vector<50x64xf32>
    %301 = arith.subf %300, %299 : vector<50x64xf32>
    %cst_116 = arith.constant 0.000000e+00 : f32
    %302 = vector.broadcast %cst_116 : f32 to vector<50x64xf32>
    %303 = arith.cmpf olt, %273, %302 : vector<50x64xf32>
    %cst_117 = arith.constant 0.000000e+00 : f32
    %304 = vector.broadcast %cst_117 : f32 to vector<50x64xf32>
    %305 = arith.subf %304, %301 : vector<50x64xf32>
    %306 = arith.select %303, %305, %301 : vector<50x64xi1>, vector<50x64xf32>
    %cst_118 = arith.constant 1.000000e+00 : f32
    %307 = vector.broadcast %cst_118 : f32 to vector<50x64xf32>
    %308 = arith.addf %307, %306 : vector<50x64xf32>
    %309 = arith.mulf %271, %308 : vector<50x64xf32>
    %c1056 = arith.constant 1056 : index
    %c0_119 = arith.constant 0 : index
    %310 = vector.load %arg1[%c1056, %c0_119] : memref<1192x128xf32, #tpu.memory_space<vmem>>, vector<64x32xf32>
    %cst_120 = arith.constant dense<0.000000e+00> : vector<50x32xf32>
    %311 = tpu.matmul %309, %310, %cst_120 {dimension_numbers = #tpu.dot_dimension_numbers<[1], [0], [0], [1], [0, 0, 1, 1], [], []>} : vector<50x64xf32>, vector<64x32xf32>, vector<50x32xf32> -> vector<50x32xf32>
    %312 = arith.addf %244, %311 : vector<50x32xf32>
    %c1120 = arith.constant 1120 : index
    %c0_121 = arith.constant 0 : index
    %313 = vector.load %arg1[%c1120, %c0_121] : memref<1192x128xf32, #tpu.memory_space<vmem>>, vector<1x32xf32>
    %314 = vector.broadcast %313 : vector<1x32xf32> to vector<50x32xf32>
    %315 = arith.addf %312, %314 : vector<50x32xf32>
    %c1128 = arith.constant 1128 : index
    %c0_122 = arith.constant 0 : index
    %316 = vector.load %arg1[%c1128, %c0_122] : memref<1192x128xf32, #tpu.memory_space<vmem>>, vector<25x32xf32>
    %c1160 = arith.constant 1160 : index
    %c0_123 = arith.constant 0 : index
    %317 = vector.load %arg1[%c1160, %c0_123] : memref<1192x128xf32, #tpu.memory_space<vmem>>, vector<25x32xf32>
    %318 = vector.extract_strided_slice %315 {offsets = [0, 0], sizes = [25, 32], strides = [1, 1]} : vector<50x32xf32> to vector<25x32xf32>
    %319 = vector.shape_cast %318 : vector<25x32xf32> to vector<1x25x32xf32>
    %cst_124 = arith.constant dense<0.000000e+00> : vector<1xf32>
    %320 = vector.multi_reduction <add>, %319, %cst_124 [1, 2] : vector<1x25x32xf32> to vector<1xf32>
    %321 = vector.shape_cast %320 : vector<1xf32> to vector<1x1x1xf32>
    %322 = vector.extract %321[0, 0, 0] : f32 from vector<1x1x1xf32>
    %cst_125 = arith.constant 8.000000e+02 : f32
    %323 = arith.divf %322, %cst_125 : f32
    %324 = vector.broadcast %323 : f32 to vector<25x32xf32>
    %325 = arith.subf %318, %324 : vector<25x32xf32>
    %326 = arith.mulf %325, %325 : vector<25x32xf32>
    %327 = vector.shape_cast %326 : vector<25x32xf32> to vector<1x25x32xf32>
    %cst_126 = arith.constant dense<0.000000e+00> : vector<1xf32>
    %328 = vector.multi_reduction <add>, %327, %cst_126 [1, 2] : vector<1x25x32xf32> to vector<1xf32>
    %329 = vector.shape_cast %328 : vector<1xf32> to vector<1x1x1xf32>
    %330 = vector.extract %329[0, 0, 0] : f32 from vector<1x1x1xf32>
    %cst_127 = arith.constant 8.000000e+02 : f32
    %331 = arith.divf %330, %cst_127 : f32
    %cst_128 = arith.constant 9.99999974E-6 : f32
    %332 = arith.addf %331, %cst_128 : f32
    %333 = math.rsqrt %332 : f32
    %334 = vector.broadcast %333 : f32 to vector<25x32xf32>
    %335 = arith.mulf %325, %334 : vector<25x32xf32>
    %336 = arith.mulf %335, %316 : vector<25x32xf32>
    %337 = arith.addf %336, %317 : vector<25x32xf32>
    %cst_129 = arith.constant dense<0.000000e+00> : vector<32xf32>
    %338 = vector.multi_reduction <add>, %337, %cst_129 [0] : vector<25x32xf32> to vector<32xf32>
    %339 = vector.shape_cast %338 : vector<32xf32> to vector<1x32xf32>
    %cst_130 = arith.constant 2.500000e+01 : f32
    %340 = vector.broadcast %cst_130 : f32 to vector<1x32xf32>
    %341 = arith.divf %339, %340 : vector<1x32xf32>
    %342 = vector.extract_strided_slice %315 {offsets = [25, 0], sizes = [25, 32], strides = [1, 1]} : vector<50x32xf32> to vector<25x32xf32>
    %343 = vector.shape_cast %342 : vector<25x32xf32> to vector<1x25x32xf32>
    %cst_131 = arith.constant dense<0.000000e+00> : vector<1xf32>
    %344 = vector.multi_reduction <add>, %343, %cst_131 [1, 2] : vector<1x25x32xf32> to vector<1xf32>
    %345 = vector.shape_cast %344 : vector<1xf32> to vector<1x1x1xf32>
    %346 = vector.extract %345[0, 0, 0] : f32 from vector<1x1x1xf32>
    %cst_132 = arith.constant 8.000000e+02 : f32
    %347 = arith.divf %346, %cst_132 : f32
    %348 = vector.broadcast %347 : f32 to vector<25x32xf32>
    %349 = arith.subf %342, %348 : vector<25x32xf32>
    %350 = arith.mulf %349, %349 : vector<25x32xf32>
    %351 = vector.shape_cast %350 : vector<25x32xf32> to vector<1x25x32xf32>
    %cst_133 = arith.constant dense<0.000000e+00> : vector<1xf32>
    %352 = vector.multi_reduction <add>, %351, %cst_133 [1, 2] : vector<1x25x32xf32> to vector<1xf32>
    %353 = vector.shape_cast %352 : vector<1xf32> to vector<1x1x1xf32>
    %354 = vector.extract %353[0, 0, 0] : f32 from vector<1x1x1xf32>
    %cst_134 = arith.constant 8.000000e+02 : f32
    %355 = arith.divf %354, %cst_134 : f32
    %cst_135 = arith.constant 9.99999974E-6 : f32
    %356 = arith.addf %355, %cst_135 : f32
    %357 = math.rsqrt %356 : f32
    %358 = vector.broadcast %357 : f32 to vector<25x32xf32>
    %359 = arith.mulf %349, %358 : vector<25x32xf32>
    %360 = arith.mulf %359, %316 : vector<25x32xf32>
    %361 = arith.addf %360, %317 : vector<25x32xf32>
    %cst_136 = arith.constant dense<0.000000e+00> : vector<32xf32>
    %362 = vector.multi_reduction <add>, %361, %cst_136 [0] : vector<25x32xf32> to vector<32xf32>
    %363 = vector.shape_cast %362 : vector<32xf32> to vector<1x32xf32>
    %cst_137 = arith.constant 2.500000e+01 : f32
    %364 = vector.broadcast %cst_137 : f32 to vector<1x32xf32>
    %365 = arith.divf %363, %364 : vector<1x32xf32>
    %366 = tpu.concatenate %341, %365 in 0 : vector<1x32xf32>, vector<1x32xf32> -> vector<2x32xf32>
    %c0_138 = arith.constant 0 : index
    %c0_139 = arith.constant 0 : index
    %367 = vector.load %arg2[%c0_138, %c0_139] : memref<2x32xf32, #tpu.memory_space<vmem>>, vector<2x32xf32>
    tpu.vector_store %arg2[%c0_138, %c0_139], %366 {strides = array<i32>} : memref<2x32xf32, #tpu.memory_space<vmem>>, vector<2x32xf32>,
    return
  }
}

</mosaic_0001>

<llo_original>
// kernel: mlp_head_forward.1
$region0: #{mlp_head_forward.1}
  #allocation0 [shape = 'u32[]', space=smem, size = 0x4, offset = 0x4, fixed_abs, tag = 'smem constant byte address 0x4 - core index']
  #allocation1 [shape = 'u32[144,128]{1,0:T(1,128)}', space=vmem, size = 0x12000, scoped, tag = 'internal scratch']
  %s0 = inlined_call_operand.vmem [shape: f32[64,98], index: 0, kind: input, shape index: {}]
  %s1 = inlined_call_operand.vmem [shape: f32[1192,128], index: 1, kind: input, shape index: {}]
  %s2 = inlined_call_operand.hbm [shape: f32[2,32], index: 2, kind: output, shape index: {}]
  %s3 = sld [smem:[#allocation0]]
  $region18: #{mlp_head_forward.1} parent=0
    _
  %s5 = ssub.s32 1, %s3
  %s6 = scalar_select 0, %s5, %s3
  $region1: #{mlp_head_forward.1} parent=0
    #allocation2 [shape = 'u8[1024]{0}', space=vmem, size = 0x400, scoped, tag = 'output window, operand 0, single buffered']
    #allocation3 [shape = 's32[1]{0}', space=sflag, size = 0x4, scoped, tag = 'scoped memory for mlp_head_forward.1']
    %7 = vsyncpa [#allocation3], 0
    // Predicated region
    $region2: #{mlp_head_forward.1} parent=1 // pred_check
      _
    $region3: #{mlp_head_forward.1} parent=1 // pred_check_branch
      %9 = sbr.rel (0) target = $region5
    $region4: #{mlp_head_forward.1} parent=1 // pred_region
      _
    $region5: #{mlp_head_forward.1} parent=1 // pred_fallthru
      _
    // Predicated region
    $region6: #{mlp_head_forward.1} parent=1 // pred_check
      _
    $region7: #{mlp_head_forward.1} parent=1 // pred_check_branch
      %11 = sbr.rel (0) target = $region9
    $region8: #{mlp_head_forward.1} parent=1 // pred_region
      _
    $region9: #{mlp_head_forward.1} parent=1 // pred_fallthru
      _
    %v12 = vld [vmem:[%s0] sm:$0xff]
    %v13 = vld [vmem:[%s0 + $0x8] sm:$0xff]
    %v14 = vld [vmem:[%s0 + $0x10] sm:$0xff]
    %v15 = vld [vmem:[%s0 + $0x18] sm:$0xff]
    %v16 = vld [vmem:[%s0 + $0x20] sm:$0xff]
    %v17 = vld [vmem:[%s0 + $0x28] sm:$0xff]
    %v18 = vld [vmem:[%s0 + $0x30] sm:$0xff]
    %v19 = vld [vmem:[%s0 + $0x38] sm:$0xff]
    %28 = vrot.lane.b32.xlu0 %v12, 79
    %v29 = vpop.permute.xlu0 %28
    %30 = vrot.lane.b32.xlu0 %v13, 79
    %v31 = vpop.permute.xlu0 %30
    %32 = vrot.lane.b32.xlu0 %v14, 79
    %v33 = vpop.permute.xlu0 %32
    %34 = vrot.lane.b32.xlu0 %v15, 79
    %v35 = vpop.permute.xlu0 %34
    %36 = vrot.lane.b32.xlu0 %v16, 79
    %v37 = vpop.permute.xlu0 %36
    %38 = vrot.lane.b32.xlu0 %v17, 79
    %v39 = vpop.permute.xlu0 %38
    %40 = vrot.lane.b32.xlu0 %v18, 79
    %v41 = vpop.permute.xlu0 %40
    %42 = vrot.lane.b32.xlu0 %v19, 79
    %v43 = vpop.permute.xlu0 %42
    %v52 = vmax.f32 %v12, %v29
    %v53 = vmax.f32 %v13, %v31
    %v54 = vmax.f32 %v14, %v33
    %v55 = vmax.f32 %v15, %v35
    %v56 = vmax.f32 %v16, %v37
    %v57 = vmax.f32 %v17, %v39
    %v58 = vmax.f32 %v18, %v41
    %v59 = vmax.f32 %v19, %v43
    %v60 = vld [vmem:[%s1] sm:$0xff]
    %v61 = vld [vmem:[%s1 + $0x8] sm:$0xff]
    %v62 = vld [vmem:[%s1 + $0x10] sm:$0xff]
    %v63 = vld [vmem:[%s1 + $0x18] sm:$0xff]
    %v64 = vld [vmem:[%s1 + $0x20] sm:$0xff]
    %v65 = vld [vmem:[%s1 + $0x28] sm:$0xff]
    %v66 = vld [vmem:[%s1 + $0x30] sm:$0x1]
    %vm67 = vcmask 400384
    %v69 = vsel %vm67, %v52, 0
    %v72 = vsel %vm67, %v53, 0
    %v75 = vsel %vm67, %v54, 0
    %v78 = vsel %vm67, %v55, 0
    %v81 = vsel %vm67, %v56, 0
    %v84 = vsel %vm67, %v57, 0
    %v87 = vsel %vm67, %v58, 0
    %v90 = vsel %vm67, %v59, 0
    %vm92 = vcmask 1040384
    %v94 = vsel %vm92, %v66, 0
    %96 = vmatprep.subr.mxu0 0.0
    %97 = vmatpush1.msra.mxu0 0.0
    %98 = vmatprep.subr.mxu0 0.0
    %99 = vmatpush1.msra.mxu0 0.0
    %100 = vmatprep.subr.mxu0 0.0
    %101 = vmatpush1.msra.mxu0 0.0
    %102 = vmatprep.subr.mxu0 0.0
    %103 = vmatpush1.msra.mxu0 0.0
    %104 = vmatprep.subr.mxu0 0.0
    %105 = vmatpush1.msra.mxu0 0.0
    %106 = vmatprep.subr.mxu0 0.0
    %107 = vmatpush1.msra.mxu0 0.0
    %108 = vmatprep.subr.mxu0 0.0
    %109 = vmatpush1.msra.mxu0 0.0
    %110 = vmatprep.subr.mxu0 0.0
    %111 = vmatpush1.msra.mxu0 0.0
    %112 = vmatprep.subr.mxu0 0.0
    %113 = vmatpush1.msra.mxu0 0.0
    %114 = vmatprep.subr.mxu0 0.0
    %115 = vmatpush1.msra.mxu0 %v94
    %116 = vmatprep.subr.mxu0 0.0
    %117 = vmatpush1.msra.mxu0 %v65
    %118 = vmatprep.subr.mxu0 0.0
    %119 = vmatpush1.msra.mxu0 %v64
    %120 = vmatprep.subr.mxu0 0.0
    %121 = vmatpush1.msra.mxu0 %v63
    %122 = vmatprep.subr.mxu0 0.0
    %123 = vmatpush1.msra.mxu0 %v62
    %124 = vmatprep.subr.mxu0 0.0
    %125 = vmatpush1.msra.mxu0 %v61
    %126 = vmatprep.subr.mxu0 0.0
    %127 = vmatpush1.msra.mxu0 %v60
    %128 = vmatprep.subr.mxu0 0.0
    %129 = vmatpush2.msra.mxu0 0.0
    %130 = vmatprep.subr.mxu0 0.0
    %131 = vmatpush2.msra.mxu0 0.0
    %132 = vmatprep.subr.mxu0 0.0
    %133 = vmatpush2.msra.mxu0 0.0
    %134 = vmatprep.subr.mxu0 0.0
    %135 = vmatpush2.msra.mxu0 0.0
    %136 = vmatprep.subr.mxu0 0.0
    %137 = vmatpush2.msra.mxu0 0.0
    %138 = vmatprep.subr.mxu0 0.0
    %139 = vmatpush2.msra.mxu0 0.0
    %140 = vmatprep.subr.mxu0 0.0
    %141 = vmatpush2.msra.mxu0 0.0
    %142 = vmatprep.subr.mxu0 0.0
    %143 = vmatpush2.msra.mxu0 0.0
    %144 = vmatprep.subr.mxu0 0.0
    %145 = vmatpush2.msra.mxu0 0.0
    %146 = vmatprep.subr.mxu0 0.0
    %147 = vmatpush2.msra.mxu0 0.0
    %148 = vmatprep.subr.mxu0 0.0
    %149 = vmatpush2.msra.mxu0 0.0
    %150 = vmatprep.subr.mxu0 0.0
    %151 = vmatpush2.msra.mxu0 0.0
    %152 = vmatprep.subr.mxu0 0.0
    %153 = vmatpush2.msra.mxu0 0.0
    %154 = vmatprep.subr.mxu0 0.0
    %155 = vmatpush2.msra.mxu0 0.0
    %156 = vmatprep.subr.mxu0 0.0
    %157 = vmatpush2.msra.mxu0 0.0
    %158 = vmatprep.subr.mxu0 0.0
    %159 = vmatpush2.msra.mxu0 0.0
    %160 = vmatprep.mubr.f32.mxu0 0.0
    %161 = vmatmul.mubr.f32.gmra.mxu0 %v69
    %v162 = vpop.f32.mrf.mxu0
    %v163 = vadd.f32 0.0, %v162
    %v164 = vpop.f32.mrf.mxu0
    %165 = vmatprep.mubr.f32.mxu0 0.0
    %166 = vmatmul.mubr.f32.gmra.mxu0 %v72
    %v167 = vpop.f32.mrf.mxu0
    %v168 = vadd.f32 0.0, %v167
    %v169 = vpop.f32.mrf.mxu0
    %170 = vmatprep.mubr.f32.mxu0 0.0
    %171 = vmatmul.mubr.f32.gmra.mxu0 %v75
    %v172 = vpop.f32.mrf.mxu0
    %v173 = vadd.f32 0.0, %v172
    %v174 = vpop.f32.mrf.mxu0
    %175 = vmatprep.mubr.f32.mxu0 0.0
    %176 = vmatmul.mubr.f32.gmra.mxu0 %v78
    %v177 = vpop.f32.mrf.mxu0
    %v178 = vadd.f32 0.0, %v177
    %v179 = vpop.f32.mrf.mxu0
    %180 = vmatprep.mubr.f32.mxu0 0.0
    %181 = vmatmul.mubr.f32.gmra.mxu0 %v81
    %v182 = vpop.f32.mrf.mxu0
    %v183 = vadd.f32 0.0, %v182
    %v184 = vpop.f32.mrf.mxu0
    %185 = vmatprep.mubr.f32.mxu0 0.0
    %186 = vmatmul.mubr.f32.gmra.mxu0 %v84
    %v187 = vpop.f32.mrf.mxu0
    %v188 = vadd.f32 0.0, %v187
    %v189 = vpop.f32.mrf.mxu0
    %190 = vmatprep.mubr.f32.mxu0 0.0
    %191 = vmatmul.mubr.f32.gmra.mxu0 %v87
    %v192 = vpop.f32.mrf.mxu0
    %v193 = vadd.f32 0.0, %v192
    %v194 = vpop.f32.mrf.mxu0
    %195 = vmatprep.mubr.f32.mxu0 0.0
    %196 = vmatmul.mubr.f32.gmra.mxu0 %v90
    %v197 = vpop.f32.mrf.mxu0
    %v198 = vadd.f32 0.0, %v197
    %v199 = vpop.f32.mrf.mxu0
    %200 = vdwg.mxu0
    %v201 = vld [vmem:[%s1 + $0x38] sm:$0xff]
    %v202 = vld [vmem:[%s1 + $0x40] sm:$0xff]
    %v203 = vld [vmem:[%s1 + $0x48] sm:$0xff]
    %v204 = vld [vmem:[%s1 + $0x50] sm:$0xff]
    %v205 = vld [vmem:[%s1 + $0x58] sm:$0xff]
    %v206 = vld [vmem:[%s1 + $0x60] sm:$0xff]
    %v207 = vld [vmem:[%s1 + $0x68] sm:$0x1]
    %v209 = vsel %vm92, %v207, 0
    %211 = vmatprep.subr.mxu0 0.0
    %212 = vmatpush1.msra.mxu0 0.0
    %213 = vmatprep.subr.mxu0 0.0
    %214 = vmatpush1.msra.mxu0 0.0
    %215 = vmatprep.subr.mxu0 0.0
    %216 = vmatpush1.msra.mxu0 0.0
    %217 = vmatprep.subr.mxu0 0.0
    %218 = vmatpush1.msra.mxu0 0.0
    %219 = vmatprep.subr.mxu0 0.0
    %220 = vmatpush1.msra.mxu0 0.0
    %221 = vmatprep.subr.mxu0 0.0
    %222 = vmatpush1.msra.mxu0 0.0
    %223 = vmatprep.subr.mxu0 0.0
    %224 = vmatpush1.msra.mxu0 0.0
    %225 = vmatprep.subr.mxu0 0.0
    %226 = vmatpush1.msra.mxu0 0.0
    %227 = vmatprep.subr.mxu0 0.0
    %228 = vmatpush1.msra.mxu0 0.0
    %229 = vmatprep.subr.mxu0 0.0
    %230 = vmatpush1.msra.mxu0 %v209
    %231 = vmatprep.subr.mxu0 0.0
    %232 = vmatpush1.msra.mxu0 %v206
    %233 = vmatprep.subr.mxu0 0.0
    %234 = vmatpush1.msra.mxu0 %v205
    %235 = vmatprep.subr.mxu0 0.0
    %236 = vmatpush1.msra.mxu0 %v204
    %237 = vmatprep.subr.mxu0 0.0
    %238 = vmatpush1.msra.mxu0 %v203
    %239 = vmatprep.subr.mxu0 0.0
    %240 = vmatpush1.msra.mxu0 %v202
    %241 = vmatprep.subr.mxu0 0.0
    %242 = vmatpush1.msra.mxu0 %v201
    %243 = vmatprep.subr.mxu0 0.0
    %244 = vmatpush2.msra.mxu0 0.0
    %245 = vmatprep.subr.mxu0 0.0
    %246 = vmatpush2.msra.mxu0 0.0
    %247 = vmatprep.subr.mxu0 0.0
    %248 = vmatpush2.msra.mxu0 0.0
    %249 = vmatprep.subr.mxu0 0.0
    %250 = vmatpush2.msra.mxu0 0.0
    %251 = vmatprep.subr.mxu0 0.0
    %252 = vmatpush2.msra.mxu0 0.0
    %253 = vmatprep.subr.mxu0 0.0
    %254 = vmatpush2.msra.mxu0 0.0
    %255 = vmatprep.subr.mxu0 0.0
    %256 = vmatpush2.msra.mxu0 0.0
    %257 = vmatprep.subr.mxu0 0.0
    %258 = vmatpush2.msra.mxu0 0.0
    %259 = vmatprep.subr.mxu0 0.0
    %260 = vmatpush2.msra.mxu0 0.0
    %261 = vmatprep.subr.mxu0 0.0
    %262 = vmatpush2.msra.mxu0 0.0
    %263 = vmatprep.subr.mxu0 0.0
    %264 = vmatpush2.msra.mxu0 0.0
    %265 = vmatprep.subr.mxu0 0.0
    %266 = vmatpush2.msra.mxu0 0.0
    %267 = vmatprep.subr.mxu0 0.0
    %268 = vmatpush2.msra.mxu0 0.0
    %269 = vmatprep.subr.mxu0 0.0
    %270 = vmatpush2.msra.mxu0 0.0
    %271 = vmatprep.subr.mxu0 0.0
    %272 = vmatpush2.msra.mxu0 0.0
    %273 = vmatprep.subr.mxu0 0.0
    %274 = vmatpush2.msra.mxu0 0.0
    %275 = vmatprep.mubr.f32.mxu0 0.0
    %276 = vmatmul.mubr.f32.gmra.mxu0 %v69
    %v277 = vpop.f32.mrf.mxu0
    %v278 = vadd.f32 0.0, %v277
    %v279 = vpop.f32.mrf.mxu0
    %280 = vmatprep.mubr.f32.mxu0 0.0
    %281 = vmatmul.mubr.f32.gmra.mxu0 %v72
    %v282 = vpop.f32.mrf.mxu0
    %v283 = vadd.f32 0.0, %v282
    %v284 = vpop.f32.mrf.mxu0
    %285 = vmatprep.mubr.f32.mxu0 0.0
    %286 = vmatmul.mubr.f32.gmra.mxu0 %v75
    %v287 = vpop.f32.mrf.mxu0
    %v288 = vadd.f32 0.0, %v287
    %v289 = vpop.f32.mrf.mxu0
    %290 = vmatprep.mubr.f32.mxu0 0.0
    %291 = vmatmul.mubr.f32.gmra.mxu0 %v78
    %v292 = vpop.f32.mrf.mxu0
    %v293 = vadd.f32 0.0, %v292
    %v294 = vpop.f32.mrf.mxu0
    %295 = vmatprep.mubr.f32.mxu0 0.0
    %296 = vmatmul.mubr.f32.gmra.mxu0 %v81
    %v297 = vpop.f32.mrf.mxu0
    %v298 = vadd.f32 0.0, %v297
    %v299 = vpop.f32.mrf.mxu0
    %300 = vmatprep.mubr.f32.mxu0 0.0
    %301 = vmatmul.mubr.f32.gmra.mxu0 %v84
    %v302 = vpop.f32.mrf.mxu0
    %v303 = vadd.f32 0.0, %v302
    %v304 = vpop.f32.mrf.mxu0
    %305 = vmatprep.mubr.f32.mxu0 0.0
    %306 = vmatmul.mubr.f32.gmra.mxu0 %v87
    %v307 = vpop.f32.mrf.mxu0
    %v308 = vadd.f32 0.0, %v307
    %v309 = vpop.f32.mrf.mxu0
    %310 = vmatprep.mubr.f32.mxu0 0.0
    %311 = vmatmul.mubr.f32.gmra.mxu0 %v90
    %v312 = vpop.f32.mrf.mxu0
    %v313 = vadd.f32 0.0, %v312
    %v314 = vpop.f32.mrf.mxu0
    %315 = vdwg.mxu0
    %v316 = vld [vmem:[%s1 + $0x70] sm:$0xff]
    %v317 = vld [vmem:[%s1 + $0x78] sm:$0xff]
    %v318 = vld [vmem:[%s1 + $0x80] sm:$0xff]
    %v319 = vld [vmem:[%s1 + $0x88] sm:$0xff]
    %v320 = vld [vmem:[%s1 + $0x90] sm:$0xff]
    %v321 = vld [vmem:[%s1 + $0x98] sm:$0xff]
    %v322 = vld [vmem:[%s1 + $0xa0] sm:$0x1]
    %v324 = vsel %vm92, %v322, 0
    %326 = vmatprep.subr.mxu0 0.0
    %327 = vmatpush1.msra.mxu0 0.0
    %328 = vmatprep.subr.mxu0 0.0
    %329 = vmatpush1.msra.mxu0 0.0
    %330 = vmatprep.subr.mxu0 0.0
    %331 = vmatpush1.msra.mxu0 0.0
    %332 = vmatprep.subr.mxu0 0.0
    %333 = vmatpush1.msra.mxu0 0.0
    %334 = vmatprep.subr.mxu0 0.0
    %335 = vmatpush1.msra.mxu0 0.0
    %336 = vmatprep.subr.mxu0 0.0
    %337 = vmatpush1.msra.mxu0 0.0
    %338 = vmatprep.subr.mxu0 0.0
    %339 = vmatpush1.msra.mxu0 0.0
    %340 = vmatprep.subr.mxu0 0.0
    %341 = vmatpush1.msra.mxu0 0.0
    %342 = vmatprep.subr.mxu0 0.0
    %343 = vmatpush1.msra.mxu0 0.0
    %344 = vmatprep.subr.mxu0 0.0
    %345 = vmatpush1.msra.mxu0 %v324
    %346 = vmatprep.subr.mxu0 0.0
    %347 = vmatpush1.msra.mxu0 %v321
    %348 = vmatprep.subr.mxu0 0.0
    %349 = vmatpush1.msra.mxu0 %v320
    %350 = vmatprep.subr.mxu0 0.0
    %351 = vmatpush1.msra.mxu0 %v319
    %352 = vmatprep.subr.mxu0 0.0
    %353 = vmatpush1.msra.mxu0 %v318
    %354 = vmatprep.subr.mxu0 0.0
    %355 = vmatpush1.msra.mxu0 %v317
    %356 = vmatprep.subr.mxu0 0.0
    %357 = vmatpush1.msra.mxu0 %v316
    %358 = vmatprep.subr.mxu0 0.0
    %359 = vmatpush2.msra.mxu0 0.0
    %360 = vmatprep.subr.mxu0 0.0
    %361 = vmatpush2.msra.mxu0 0.0
    %362 = vmatprep.subr.mxu0 0.0
    %363 = vmatpush2.msra.mxu0 0.0
    %364 = vmatprep.subr.mxu0 0.0
    %365 = vmatpush2.msra.mxu0 0.0
    %366 = vmatprep.subr.mxu0 0.0
    %367 = vmatpush2.msra.mxu0 0.0
    %368 = vmatprep.subr.mxu0 0.0
    %369 = vmatpush2.msra.mxu0 0.0
    %370 = vmatprep.subr.mxu0 0.0
    %371 = vmatpush2.msra.mxu0 0.0
    %372 = vmatprep.subr.mxu0 0.0
    %373 = vmatpush2.msra.mxu0 0.0
    %374 = vmatprep.subr.mxu0 0.0
    %375 = vmatpush2.msra.mxu0 0.0
    %376 = vmatprep.subr.mxu0 0.0
    %377 = vmatpush2.msra.mxu0 0.0
    %378 = vmatprep.subr.mxu0 0.0
    %379 = vmatpush2.msra.mxu0 0.0
    %380 = vmatprep.subr.mxu0 0.0
    %381 = vmatpush2.msra.mxu0 0.0
    %382 = vmatprep.subr.mxu0 0.0
    %383 = vmatpush2.msra.mxu0 0.0
    %384 = vmatprep.subr.mxu0 0.0
    %385 = vmatpush2.msra.mxu0 0.0
    %386 = vmatprep.subr.mxu0 0.0
    %387 = vmatpush2.msra.mxu0 0.0
    %388 = vmatprep.subr.mxu0 0.0
    %389 = vmatpush2.msra.mxu0 0.0
    %390 = vmatprep.mubr.f32.mxu0 0.0
    %391 = vmatmul.mubr.f32.gmra.mxu0 %v69
    %v392 = vpop.f32.mrf.mxu0
    %v393 = vadd.f32 0.0, %v392
    %v394 = vpop.f32.mrf.mxu0
    %395 = vmatprep.mubr.f32.mxu0 0.0
    %396 = vmatmul.mubr.f32.gmra.mxu0 %v72
    %v397 = vpop.f32.mrf.mxu0
    %v398 = vadd.f32 0.0, %v397
    %v399 = vpop.f32.mrf.mxu0
    %400 = vmatprep.mubr.f32.mxu0 0.0
    %401 = vmatmul.mubr.f32.gmra.mxu0 %v75
    %v402 = vpop.f32.mrf.mxu0
    %v403 = vadd.f32 0.0, %v402
    %v404 = vpop.f32.mrf.mxu0
    %405 = vmatprep.mubr.f32.mxu0 0.0
    %406 = vmatmul.mubr.f32.gmra.mxu0 %v78
    %v407 = vpop.f32.mrf.mxu0
    %v408 = vadd.f32 0.0, %v407
    %v409 = vpop.f32.mrf.mxu0
    %410 = vmatprep.mubr.f32.mxu0 0.0
    %411 = vmatmul.mubr.f32.gmra.mxu0 %v81
    %v412 = vpop.f32.mrf.mxu0
    %v413 = vadd.f32 0.0, %v412
    %v414 = vpop.f32.mrf.mxu0
    %415 = vmatprep.mubr.f32.mxu0 0.0
    %416 = vmatmul.mubr.f32.gmra.mxu0 %v84
    %v417 = vpop.f32.mrf.mxu0
    %v418 = vadd.f32 0.0, %v417
    %v419 = vpop.f32.mrf.mxu0
    %420 = vmatprep.mubr.f32.mxu0 0.0
    %421 = vmatmul.mubr.f32.gmra.mxu0 %v87
    %v422 = vpop.f32.mrf.mxu0
    %v423 = vadd.f32 0.0, %v422
    %v424 = vpop.f32.mrf.mxu0
    %425 = vmatprep.mubr.f32.mxu0 0.0
    %426 = vmatmul.mubr.f32.gmra.mxu0 %v90
    %v427 = vpop.f32.mrf.mxu0
    %v428 = vadd.f32 0.0, %v427
    %v429 = vpop.f32.mrf.mxu0
    %430 = vdwg.mxu0
    %v431 = vmax.f32 %v278, %v163
    %v432 = vmax.f32 %v283, %v168
    %v433 = vmax.f32 %v288, %v173
    %v434 = vmax.f32 %v293, %v178
    %v435 = vmax.f32 %v298, %v183
    %v436 = vmax.f32 %v303, %v188
    %v437 = vmax.f32 %v308, %v193
    %v438 = vmax.f32 %v313, %v198
    %v439 = vmax.f32 %v163, %v393
    %v440 = vmax.f32 %v168, %v398
    %v441 = vmax.f32 %v173, %v403
    %v442 = vmax.f32 %v178, %v408
    %v443 = vmax.f32 %v183, %v413
    %v444 = vmax.f32 %v188, %v418
    %v445 = vmax.f32 %v193, %v423
    %v446 = vmax.f32 %v198, %v428
    %v447 = vld [vmem:[%s1 + $0xa8] sm:$0xff]
    %v448 = vld [vmem:[%s1 + $0xb0] sm:$0xff]
    %v449 = vld [vmem:[%s1 + $0xb8] sm:$0xff]
    %v450 = vld [vmem:[%s1 + $0xc0] sm:$0xff]
    %v451 = vld [vmem:[%s1 + $0xc8] sm:$0xff]
    %v452 = vld [vmem:[%s1 + $0xd0] sm:$0xff]
    %v453 = vld [vmem:[%s1 + $0xd8] sm:$0xff]
    %v454 = vld [vmem:[%s1 + $0xe0] sm:$0xff]
    %vm455 = vcmask 261120
    %v457 = vsel %vm455, %v451, 0
    %v460 = vsel %vm455, %v452, 0
    %v463 = vsel %vm455, %v453, 0
    %v466 = vsel %vm455, %v454, 0
    %468 = vmatprep.subr.mxu0 0.0
    %469 = vmatpush1.msra.mxu0 0.0
    %470 = vmatprep.subr.mxu0 0.0
    %471 = vmatpush1.msra.mxu0 0.0
    %472 = vmatprep.subr.mxu0 0.0
    %473 = vmatpush1.msra.mxu0 0.0
    %474 = vmatprep.subr.mxu0 0.0
    %475 = vmatpush1.msra.mxu0 0.0
    %476 = vmatprep.subr.mxu0 0.0
    %477 = vmatpush1.msra.mxu0 0.0
    %478 = vmatprep.subr.mxu0 0.0
    %479 = vmatpush1.msra.mxu0 0.0
    %480 = vmatprep.subr.mxu0 0.0
    %481 = vmatpush1.msra.mxu0 0.0
    %482 = vmatprep.subr.mxu0 0.0
    %483 = vmatpush1.msra.mxu0 0.0
    %484 = vmatprep.subr.mxu0 0.0
    %485 = vmatpush1.msra.mxu0 0.0
    %486 = vmatprep.subr.mxu0 0.0
    %487 = vmatpush1.msra.mxu0 0.0
    %488 = vmatprep.subr.mxu0 0.0
    %489 = vmatpush1.msra.mxu0 0.0
    %490 = vmatprep.subr.mxu0 0.0
    %491 = vmatpush1.msra.mxu0 0.0
    %492 = vmatprep.subr.mxu0 0.0
    %493 = vmatpush1.msra.mxu0 %v442
    %494 = vmatprep.subr.mxu0 0.0
    %495 = vmatpush1.msra.mxu0 %v441
    %496 = vmatprep.subr.mxu0 0.0
    %497 = vmatpush1.msra.mxu0 %v440
    %498 = vmatprep.subr.mxu0 0.0
    %499 = vmatpush1.msra.mxu0 %v439
    %500 = vmatprep.subr.mxu0 0.0
    %501 = vmatpush2.msra.mxu0 0.0
    %502 = vmatprep.subr.mxu0 0.0
    %503 = vmatpush2.msra.mxu0 0.0
    %504 = vmatprep.subr.mxu0 0.0
    %505 = vmatpush2.msra.mxu0 0.0
    %506 = vmatprep.subr.mxu0 0.0
    %507 = vmatpush2.msra.mxu0 0.0
    %508 = vmatprep.subr.mxu0 0.0
    %509 = vmatpush2.msra.mxu0 0.0
    %510 = vmatprep.subr.mxu0 0.0
    %511 = vmatpush2.msra.mxu0 0.0
    %512 = vmatprep.subr.mxu0 0.0
    %513 = vmatpush2.msra.mxu0 0.0
    %514 = vmatprep.subr.mxu0 0.0
    %515 = vmatpush2.msra.mxu0 0.0
    %516 = vmatprep.subr.mxu0 0.0
    %517 = vmatpush2.msra.mxu0 0.0
    %518 = vmatprep.subr.mxu0 0.0
    %519 = vmatpush2.msra.mxu0 0.0
    %520 = vmatprep.subr.mxu0 0.0
    %521 = vmatpush2.msra.mxu0 0.0
    %522 = vmatprep.subr.mxu0 0.0
    %523 = vmatpush2.msra.mxu0 0.0
    %524 = vmatprep.subr.mxu0 0.0
    %525 = vmatpush2.msra.mxu0 0.0
    %526 = vmatprep.subr.mxu0 0.0
    %527 = vmatpush2.msra.mxu0 0.0
    %528 = vmatprep.subr.mxu0 0.0
    %529 = vmatpush2.msra.mxu0 0.0
    %530 = vmatprep.subr.mxu0 0.0
    %531 = vmatpush2.msra.mxu0 0.0
    %532 = vmatprep.mubr.f32.mxu0 0.0
    %533 = vmatmul.mubr.f32.gmra.mxu0 %v457
    %v534 = vpop.f32.mrf.mxu0
    %v535 = vadd.f32 0.0, %v534
    %v536 = vpop.f32.mrf.mxu0
    %537 = vmatprep.mubr.f32.mxu0 0.0
    %538 = vmatmul.mubr.f32.gmra.mxu0 %v460
    %v539 = vpop.f32.mrf.mxu0
    %v540 = vadd.f32 0.0, %v539
    %v541 = vpop.f32.mrf.mxu0
    %542 = vmatprep.mubr.f32.mxu0 0.0
    %543 = vmatmul.mubr.f32.gmra.mxu0 %v463
    %v544 = vpop.f32.mrf.mxu0
    %v545 = vadd.f32 0.0, %v544
    %v546 = vpop.f32.mrf.mxu0
    %547 = vmatprep.mubr.f32.mxu0 0.0
    %548 = vmatmul.mubr.f32.gmra.mxu0 %v466
    %v549 = vpop.f32.mrf.mxu0
    %v550 = vadd.f32 0.0, %v549
    %v551 = vpop.f32.mrf.mxu0
    %552 = vdwg.mxu0
    %v554 = vsel %vm455, %v447, 0
    %v557 = vsel %vm455, %v448, 0
    %v560 = vsel %vm455, %v449, 0
    %v563 = vsel %vm455, %v450, 0
    %565 = vmatprep.subr.mxu0 0.0
    %566 = vmatpush1.msra.mxu0 0.0
    %567 = vmatprep.subr.mxu0 0.0
    %568 = vmatpush1.msra.mxu0 0.0
    %569 = vmatprep.subr.mxu0 0.0
    %570 = vmatpush1.msra.mxu0 0.0
    %571 = vmatprep.subr.mxu0 0.0
    %572 = vmatpush1.msra.mxu0 0.0
    %573 = vmatprep.subr.mxu0 0.0
    %574 = vmatpush1.msra.mxu0 0.0
    %575 = vmatprep.subr.mxu0 0.0
    %576 = vmatpush1.msra.mxu0 0.0
    %577 = vmatprep.subr.mxu0 0.0
    %578 = vmatpush1.msra.mxu0 0.0
    %579 = vmatprep.subr.mxu0 0.0
    %580 = vmatpush1.msra.mxu0 0.0
    %581 = vmatprep.subr.mxu0 0.0
    %582 = vmatpush1.msra.mxu0 0.0
    %583 = vmatprep.subr.mxu0 0.0
    %584 = vmatpush1.msra.mxu0 0.0
    %585 = vmatprep.subr.mxu0 0.0
    %586 = vmatpush1.msra.mxu0 0.0
    %587 = vmatprep.subr.mxu0 0.0
    %588 = vmatpush1.msra.mxu0 0.0
    %589 = vmatprep.subr.mxu0 0.0
    %590 = vmatpush1.msra.mxu0 %v434
    %591 = vmatprep.subr.mxu0 0.0
    %592 = vmatpush1.msra.mxu0 %v433
    %593 = vmatprep.subr.mxu0 0.0
    %594 = vmatpush1.msra.mxu0 %v432
    %595 = vmatprep.subr.mxu0 0.0
    %596 = vmatpush1.msra.mxu0 %v431
    %597 = vmatprep.subr.mxu0 0.0
    %598 = vmatpush2.msra.mxu0 0.0
    %599 = vmatprep.subr.mxu0 0.0
    %600 = vmatpush2.msra.mxu0 0.0
    %601 = vmatprep.subr.mxu0 0.0
    %602 = vmatpush2.msra.mxu0 0.0
    %603 = vmatprep.subr.mxu0 0.0
    %604 = vmatpush2.msra.mxu0 0.0
    %605 = vmatprep.subr.mxu0 0.0
    %606 = vmatpush2.msra.mxu0 0.0
    %607 = vmatprep.subr.mxu0 0.0
    %608 = vmatpush2.msra.mxu0 0.0
    %609 = vmatprep.subr.mxu0 0.0
    %610 = vmatpush2.msra.mxu0 0.0
    %611 = vmatprep.subr.mxu0 0.0
    %612 = vmatpush2.msra.mxu0 0.0
    %613 = vmatprep.subr.mxu0 0.0
    %614 = vmatpush2.msra.mxu0 0.0
    %615 = vmatprep.subr.mxu0 0.0
    %616 = vmatpush2.msra.mxu0 0.0
    %617 = vmatprep.subr.mxu0 0.0
    %618 = vmatpush2.msra.mxu0 0.0
    %619 = vmatprep.subr.mxu0 0.0
    %620 = vmatpush2.msra.mxu0 0.0
    %621 = vmatprep.subr.mxu0 0.0
    %622 = vmatpush2.msra.mxu0 0.0
    %623 = vmatprep.subr.mxu0 0.0
    %624 = vmatpush2.msra.mxu0 0.0
    %625 = vmatprep.subr.mxu0 0.0
    %626 = vmatpush2.msra.mxu0 0.0
    %627 = vmatprep.subr.mxu0 0.0
    %628 = vmatpush2.msra.mxu0 0.0
    %629 = vmatprep.mubr.f32.mxu0 0.0
    %630 = vmatmul.mubr.f32.gmra.mxu0 %v554
    %v631 = vpop.f32.mrf.mxu0
    %v632 = vadd.f32 %v535, %v631
    %v633 = vpop.f32.mrf.mxu0
    %634 = vmatprep.mubr.f32.mxu0 0.0
    %635 = vmatmul.mubr.f32.gmra.mxu0 %v557
    %v636 = vpop.f32.mrf.mxu0
    %v637 = vadd.f32 %v540, %v636
    %v638 = vpop.f32.mrf.mxu0
    %639 = vmatprep.mubr.f32.mxu0 0.0
    %640 = vmatmul.mubr.f32.gmra.mxu0 %v560
    %v641 = vpop.f32.mrf.mxu0
    %v642 = vadd.f32 %v545, %v641
    %v643 = vpop.f32.mrf.mxu0
    %644 = vmatprep.mubr.f32.mxu0 0.0
    %645 = vmatmul.mubr.f32.gmra.mxu0 %v563
    %v646 = vpop.f32.mrf.mxu0
    %v647 = vadd.f32 %v550, %v646
    %v648 = vpop.f32.mrf.mxu0
    %649 = vdwg.mxu0
    %650 = vxpose.xlu0.b32.start [1/16] %v632, 128
    %651 = vxpose.xlu0.b32.cont [2/16] %v637, 128
    %652 = vxpose.xlu0.b32.cont [3/16] %v642, 128
    %653 = vxpose.xlu0.b32.cont [4/16] %v647, 128
    %654 = vxpose.xlu0.b32.cont [5/16] 0.0, 128
    %655 = vxpose.xlu0.b32.cont [6/16] 0.0, 128
    %656 = vxpose.xlu0.b32.cont [7/16] 0.0, 128
    %657 = vxpose.xlu0.b32.cont [8/16] 0.0, 128
    %658 = vxpose.xlu0.b32.cont [9/16] 0.0, 128
    %659 = vxpose.xlu0.b32.cont [10/16] 0.0, 128
    %660 = vxpose.xlu0.b32.cont [11/16] 0.0, 128
    %661 = vxpose.xlu0.b32.cont [12/16] 0.0, 128
    %662 = vxpose.xlu0.b32.cont [13/16] 0.0, 128
    %663 = vxpose.xlu0.b32.cont [14/16] 0.0, 128
    %664 = vxpose.xlu0.b32.cont [15/16] 0.0, 128
    %665 = vxpose.xlu0.b32.end [16/16] 0.0, 128
    %v666 = vpop.trf.xlu0
    %v667 = vpop.trf.xlu0
    %v668 = vpop.trf.xlu0
    %v669 = vpop.trf.xlu0
    %v670 = vpop.trf.xlu0
    %v671 = vpop.trf.xlu0
    %v672 = vpop.trf.xlu0
    %v673 = vpop.trf.xlu0
    %v674 = vpop.trf.xlu0
    %v675 = vpop.trf.xlu0
    %v676 = vpop.trf.xlu0
    %v677 = vpop.trf.xlu0
    %v678 = vpop.trf.xlu0
    %v679 = vpop.trf.xlu0
    %v680 = vpop.trf.xlu0
    %v681 = vpop.trf.xlu0
    %682 = vmatprep.subr.mxu0 0.0
    %683 = vmatpush1.msra.mxu0 0.0
    %684 = vmatprep.subr.mxu0 0.0
    %685 = vmatpush1.msra.mxu0 0.0
    %686 = vmatprep.subr.mxu0 0.0
    %687 = vmatpush1.msra.mxu0 0.0
    %688 = vmatprep.subr.mxu0 0.0
    %689 = vmatpush1.msra.mxu0 0.0
    %690 = vmatprep.subr.mxu0 0.0
    %691 = vmatpush1.msra.mxu0 0.0
    %692 = vmatprep.subr.mxu0 0.0
    %693 = vmatpush1.msra.mxu0 0.0
    %694 = vmatprep.subr.mxu0 0.0
    %695 = vmatpush1.msra.mxu0 0.0
    %696 = vmatprep.subr.mxu0 0.0
    %697 = vmatpush1.msra.mxu0 0.0
    %698 = vmatprep.subr.mxu0 0.0
    %699 = vmatpush1.msra.mxu0 0.0
    %700 = vmatprep.subr.mxu0 0.0
    %701 = vmatpush1.msra.mxu0 0.0
    %702 = vmatprep.subr.mxu0 0.0
    %703 = vmatpush1.msra.mxu0 0.0
    %704 = vmatprep.subr.mxu0 0.0
    %705 = vmatpush1.msra.mxu0 0.0
    %706 = vmatprep.subr.mxu0 0.0
    %707 = vmatpush1.msra.mxu0 %v446
    %708 = vmatprep.subr.mxu0 0.0
    %709 = vmatpush1.msra.mxu0 %v445
    %710 = vmatprep.subr.mxu0 0.0
    %711 = vmatpush1.msra.mxu0 %v444
    %712 = vmatprep.subr.mxu0 0.0
    %713 = vmatpush1.msra.mxu0 %v443
    %714 = vmatprep.subr.mxu0 0.0
    %715 = vmatpush2.msra.mxu0 0.0
    %716 = vmatprep.subr.mxu0 0.0
    %717 = vmatpush2.msra.mxu0 0.0
    %718 = vmatprep.subr.mxu0 0.0
    %719 = vmatpush2.msra.mxu0 0.0
    %720 = vmatprep.subr.mxu0 0.0
    %721 = vmatpush2.msra.mxu0 0.0
    %722 = vmatprep.subr.mxu0 0.0
    %723 = vmatpush2.msra.mxu0 0.0
    %724 = vmatprep.subr.mxu0 0.0
    %725 = vmatpush2.msra.mxu0 0.0
    %726 = vmatprep.subr.mxu0 0.0
    %727 = vmatpush2.msra.mxu0 0.0
    %728 = vmatprep.subr.mxu0 0.0
    %729 = vmatpush2.msra.mxu0 0.0
    %730 = vmatprep.subr.mxu0 0.0
    %731 = vmatpush2.msra.mxu0 0.0
    %732 = vmatprep.subr.mxu0 0.0
    %733 = vmatpush2.msra.mxu0 0.0
    %734 = vmatprep.subr.mxu0 0.0
    %735 = vmatpush2.msra.mxu0 0.0
    %736 = vmatprep.subr.mxu0 0.0
    %737 = vmatpush2.msra.mxu0 0.0
    %738 = vmatprep.subr.mxu0 0.0
    %739 = vmatpush2.msra.mxu0 0.0
    %740 = vmatprep.subr.mxu0 0.0
    %741 = vmatpush2.msra.mxu0 0.0
    %742 = vmatprep.subr.mxu0 0.0
    %743 = vmatpush2.msra.mxu0 0.0
    %744 = vmatprep.subr.mxu0 0.0
    %745 = vmatpush2.msra.mxu0 0.0
    %746 = vmatprep.mubr.f32.mxu0 0.0
    %747 = vmatmul.mubr.f32.gmra.mxu0 %v457
    %v748 = vpop.f32.mrf.mxu0
    %v749 = vadd.f32 0.0, %v748
    %v750 = vpop.f32.mrf.mxu0
    %751 = vmatprep.mubr.f32.mxu0 0.0
    %752 = vmatmul.mubr.f32.gmra.mxu0 %v460
    %v753 = vpop.f32.mrf.mxu0
    %v754 = vadd.f32 0.0, %v753
    %v755 = vpop.f32.mrf.mxu0
    %756 = vmatprep.mubr.f32.mxu0 0.0
    %757 = vmatmul.mubr.f32.gmra.mxu0 %v463
    %v758 = vpop.f32.mrf.mxu0
    %v759 = vadd.f32 0.0, %v758
    %v760 = vpop.f32.mrf.mxu0
    %761 = vmatprep.mubr.f32.mxu0 0.0
    %762 = vmatmul.mubr.f32.gmra.mxu0 %v466
    %v763 = vpop.f32.mrf.mxu0
    %v764 = vadd.f32 0.0, %v763
    %v765 = vpop.f32.mrf.mxu0
    %766 = vdwg.mxu0
    %767 = vmatprep.subr.mxu0 0.0
    %768 = vmatpush1.msra.mxu0 0.0
    %769 = vmatprep.subr.mxu0 0.0
    %770 = vmatpush1.msra.mxu0 0.0
    %771 = vmatprep.subr.mxu0 0.0
    %772 = vmatpush1.msra.mxu0 0.0
    %773 = vmatprep.subr.mxu0 0.0
    %774 = vmatpush1.msra.mxu0 0.0
    %775 = vmatprep.subr.mxu0 0.0
    %776 = vmatpush1.msra.mxu0 0.0
    %777 = vmatprep.subr.mxu0 0.0
    %778 = vmatpush1.msra.mxu0 0.0
    %779 = vmatprep.subr.mxu0 0.0
    %780 = vmatpush1.msra.mxu0 0.0
    %781 = vmatprep.subr.mxu0 0.0
    %782 = vmatpush1.msra.mxu0 0.0
    %783 = vmatprep.subr.mxu0 0.0
    %784 = vmatpush1.msra.mxu0 0.0
    %785 = vmatprep.subr.mxu0 0.0
    %786 = vmatpush1.msra.mxu0 0.0
    %787 = vmatprep.subr.mxu0 0.0
    %788 = vmatpush1.msra.mxu0 0.0
    %789 = vmatprep.subr.mxu0 0.0
    %790 = vmatpush1.msra.mxu0 0.0
    %791 = vmatprep.subr.mxu0 0.0
    %792 = vmatpush1.msra.mxu0 %v438
    %793 = vmatprep.subr.mxu0 0.0
    %794 = vmatpush1.msra.mxu0 %v437
    %795 = vmatprep.subr.mxu0 0.0
    %796 = vmatpush1.msra.mxu0 %v436
    %797 = vmatprep.subr.mxu0 0.0
    %798 = vmatpush1.msra.mxu0 %v435
    %799 = vmatprep.subr.mxu0 0.0
    %800 = vmatpush2.msra.mxu0 0.0
    %801 = vmatprep.subr.mxu0 0.0
    %802 = vmatpush2.msra.mxu0 0.0
    %803 = vmatprep.subr.mxu0 0.0
    %804 = vmatpush2.msra.mxu0 0.0
    %805 = vmatprep.subr.mxu0 0.0
    %806 = vmatpush2.msra.mxu0 0.0
    %807 = vmatprep.subr.mxu0 0.0
    %808 = vmatpush2.msra.mxu0 0.0
    %809 = vmatprep.subr.mxu0 0.0
    %810 = vmatpush2.msra.mxu0 0.0
    %811 = vmatprep.subr.mxu0 0.0
    %812 = vmatpush2.msra.mxu0 0.0
    %813 = vmatprep.subr.mxu0 0.0
    %814 = vmatpush2.msra.mxu0 0.0
    %815 = vmatprep.subr.mxu0 0.0
    %816 = vmatpush2.msra.mxu0 0.0
    %817 = vmatprep.subr.mxu0 0.0
    %818 = vmatpush2.msra.mxu0 0.0
    %819 = vmatprep.subr.mxu0 0.0
    %820 = vmatpush2.msra.mxu0 0.0
    %821 = vmatprep.subr.mxu0 0.0
    %822 = vmatpush2.msra.mxu0 0.0
    %823 = vmatprep.subr.mxu0 0.0
    %824 = vmatpush2.msra.mxu0 0.0
    %825 = vmatprep.subr.mxu0 0.0
    %826 = vmatpush2.msra.mxu0 0.0
    %827 = vmatprep.subr.mxu0 0.0
    %828 = vmatpush2.msra.mxu0 0.0
    %829 = vmatprep.subr.mxu0 0.0
    %830 = vmatpush2.msra.mxu0 0.0
    %831 = vmatprep.mubr.f32.mxu0 0.0
    %832 = vmatmul.mubr.f32.gmra.mxu0 %v554
    %v833 = vpop.f32.mrf.mxu0
    %v834 = vadd.f32 %v749, %v833
    %v835 = vpop.f32.mrf.mxu0
    %836 = vmatprep.mubr.f32.mxu0 0.0
    %837 = vmatmul.mubr.f32.gmra.mxu0 %v557
    %v838 = vpop.f32.mrf.mxu0
    %v839 = vadd.f32 %v754, %v838
    %v840 = vpop.f32.mrf.mxu0
    %841 = vmatprep.mubr.f32.mxu0 0.0
    %842 = vmatmul.mubr.f32.gmra.mxu0 %v560
    %v843 = vpop.f32.mrf.mxu0
    %v844 = vadd.f32 %v759, %v843
    %v845 = vpop.f32.mrf.mxu0
    %846 = vmatprep.mubr.f32.mxu0 0.0
    %847 = vmatmul.mubr.f32.gmra.mxu0 %v563
    %v848 = vpop.f32.mrf.mxu0
    %v849 = vadd.f32 %v764, %v848
    %v850 = vpop.f32.mrf.mxu0
    %851 = vdwg.mxu0
    %852 = vxpose.xlu0.b32.start [1/16] %v834, 128
    %853 = vxpose.xlu0.b32.cont [2/16] %v839, 128
    %854 = vxpose.xlu0.b32.cont [3/16] %v844, 128
    %855 = vxpose.xlu0.b32.cont [4/16] %v849, 128
    %856 = vxpose.xlu0.b32.cont [5/16] 0.0, 128
    %857 = vxpose.xlu0.b32.cont [6/16] 0.0, 128
    %858 = vxpose.xlu0.b32.cont [7/16] 0.0, 128
    %859 = vxpose.xlu0.b32.cont [8/16] 0.0, 128
    %860 = vxpose.xlu0.b32.cont [9/16] 0.0, 128
    %861 = vxpose.xlu0.b32.cont [10/16] 0.0, 128
    %862 = vxpose.xlu0.b32.cont [11/16] 0.0, 128
    %863 = vxpose.xlu0.b32.cont [12/16] 0.0, 128
    %864 = vxpose.xlu0.b32.cont [13/16] 0.0, 128
    %865 = vxpose.xlu0.b32.cont [14/16] 0.0, 128
    %866 = vxpose.xlu0.b32.cont [15/16] 0.0, 128
    %867 = vxpose.xlu0.b32.end [16/16] 0.0, 128
    %v868 = vpop.trf.xlu0
    %v869 = vpop.trf.xlu0
    %v870 = vpop.trf.xlu0
    %v871 = vpop.trf.xlu0
    %v872 = vpop.trf.xlu0
    %v873 = vpop.trf.xlu0
    %v874 = vpop.trf.xlu0
    %v875 = vpop.trf.xlu0
    %v876 = vpop.trf.xlu0
    %v877 = vpop.trf.xlu0
    %v878 = vpop.trf.xlu0
    %v879 = vpop.trf.xlu0
    %v880 = vpop.trf.xlu0
    %v881 = vpop.trf.xlu0
    %v882 = vpop.trf.xlu0
    %v883 = vpop.trf.xlu0
    %v888 = vrot.slane %v868, 7
    %v889 = vrot.slane %v869, 7
    %v890 = vsel %vm92, %v888, %v889
    %v891 = vrot.slane %v870, 7
    %v892 = vsel %vm92, %v889, %v891
    %v893 = vrot.slane %v871, 7
    %v894 = vsel %vm92, %v891, %v893
    %v899 = vsel %vm92, %v669, %v888
    %v900 = vld [vmem:[%s1 + $0xe8] sm:$0x1]
    %v901 = vld [vmem:[%s1 + $0xf0] sm:$0x1]
    %v902 = vsel %vm455, %v666, 0.0
    %903 = vadd.xlane.f32.xlu0 %v902
    %v904 = vpop.xlane.xlu0 %903
    %v905 = vsel %vm455, %v667, 0.0
    %906 = vadd.xlane.f32.xlu0 %v905
    %v907 = vpop.xlane.xlu0 %906
    %v908 = vsel %vm455, %v668, 0.0
    %909 = vadd.xlane.f32.xlu0 %v908
    %v910 = vpop.xlane.xlu0 %909
    %v911 = vsel %vm455, %v899, 0.0
    %912 = vadd.xlane.f32.xlu0 %v911
    %v913 = vpop.xlane.xlu0 %912
    %v914 = vsel %vm455, %v890, 0.0
    %915 = vadd.xlane.f32.xlu0 %v914
    %v916 = vpop.xlane.xlu0 %915
    %v917 = vsel %vm455, %v892, 0.0
    %918 = vadd.xlane.f32.xlu0 %v917
    %v919 = vpop.xlane.xlu0 %918
    %vm920 = vcmask 254976
    %v921 = vsel %vm920, %v894, 0.0
    %922 = vadd.xlane.f32.xlu0 %v921
    %v923 = vpop.xlane.xlu0 %922
    %v924 = vrcp.pop 32.0
    %v925 = vmul.f32 %v904, %v924
    %v926 = vmul.f32 %v907, %v924
    %v927 = vmul.f32 %v910, %v924
    %v928 = vmul.f32 %v913, %v924
    %v929 = vmul.f32 %v916, %v924
    %v930 = vmul.f32 %v919, %v924
    %v931 = vmul.f32 %v923, %v924
    %v932 = vsub.f32 %v666, %v925
    %v933 = vsub.f32 %v667, %v926
    %v934 = vsub.f32 %v668, %v927
    %v935 = vsub.f32 %v899, %v928
    %v936 = vsub.f32 %v890, %v929
    %v937 = vsub.f32 %v892, %v930
    %v938 = vsub.f32 %v894, %v931
    %v939 = vmul.f32 %v932, %v932
    %v940 = vmul.f32 %v933, %v933
    %v941 = vmul.f32 %v934, %v934
    %v942 = vmul.f32 %v935, %v935
    %v943 = vmul.f32 %v936, %v936
    %v944 = vmul.f32 %v937, %v937
    %v945 = vmul.f32 %v938, %v938
    %v946 = vsel %vm455, %v939, 0.0
    %947 = vadd.xlane.f32.xlu0 %v946
    %v948 = vpop.xlane.xlu0 %947
    %v949 = vsel %vm455, %v940, 0.0
    %950 = vadd.xlane.f32.xlu0 %v949
    %v951 = vpop.xlane.xlu0 %950
    %v952 = vsel %vm455, %v941, 0.0
    %953 = vadd.xlane.f32.xlu0 %v952
    %v954 = vpop.xlane.xlu0 %953
    %v955 = vsel %vm455, %v942, 0.0
    %956 = vadd.xlane.f32.xlu0 %v955
    %v957 = vpop.xlane.xlu0 %956
    %v958 = vsel %vm455, %v943, 0.0
    %959 = vadd.xlane.f32.xlu0 %v958
    %v960 = vpop.xlane.xlu0 %959
    %v961 = vsel %vm455, %v944, 0.0
    %962 = vadd.xlane.f32.xlu0 %v961
    %v963 = vpop.xlane.xlu0 %962
    %v964 = vsel %vm920, %v945, 0.0
    %965 = vadd.xlane.f32.xlu0 %v964
    %v966 = vpop.xlane.xlu0 %965
    %v967 = vmul.f32 %v948, %v924
    %v968 = vmul.f32 %v951, %v924
    %v969 = vmul.f32 %v954, %v924
    %v970 = vmul.f32 %v957, %v924
    %v971 = vmul.f32 %v960, %v924
    %v972 = vmul.f32 %v963, %v924
    %v973 = vmul.f32 %v966, %v924
    %v974 = vadd.f32 %v967, 1e-05
    %v975 = vadd.f32 %v968, 1e-05
    %v976 = vadd.f32 %v969, 1e-05
    %v977 = vadd.f32 %v970, 1e-05
    %v978 = vadd.f32 %v971, 1e-05
    %v979 = vadd.f32 %v972, 1e-05
    %v980 = vadd.f32 %v973, 1e-05
    %v981 = vrsqrt.pop %v974
    %v982 = vrsqrt.pop %v975
    %v983 = vrsqrt.pop %v976
    %v984 = vrsqrt.pop %v977
    %v985 = vrsqrt.pop %v978
    %v986 = vrsqrt.pop %v979
    %v987 = vrsqrt.pop %v980
    %v988 = vmul.f32 %v932, %v981
    %v989 = vmul.f32 %v933, %v982
    %v990 = vmul.f32 %v934, %v983
    %v991 = vmul.f32 %v935, %v984
    %v992 = vmul.f32 %v936, %v985
    %v993 = vmul.f32 %v937, %v986
    %v994 = vmul.f32 %v938, %v987
    %v995 = vlaneseq
    %v996 = vshrl.u32 %v995, 7
    %v997 = vsub.s32 0, %v996
    %v998 = vrot.slane %v900, %v997
    %v999 = vmul.f32 %v988, %v998
    %v1000 = vmul.f32 %v989, %v998
    %v1001 = vmul.f32 %v990, %v998
    %v1002 = vmul.f32 %v991, %v998
    %v1003 = vmul.f32 %v992, %v998
    %v1004 = vmul.f32 %v993, %v998
    %v1005 = vmul.f32 %v994, %v998
    %v1006 = vlaneseq
    %v1007 = vshrl.u32 %v1006, 7
    %v1008 = vsub.s32 0, %v1007
    %v1009 = vrot.slane %v901, %v1008
    %v1010 = vadd.f32 %v999, %v1009
    %v1011 = vadd.f32 %v1000, %v1009
    %v1012 = vadd.f32 %v1001, %v1009
    %v1013 = vadd.f32 %v1002, %v1009
    %v1014 = vadd.f32 %v1003, %v1009
    %v1015 = vadd.f32 %v1004, %v1009
    %v1016 = vadd.f32 %v1005, %v1009
    %v1017 = vld [vmem:[%s1 + $0xf8] sm:$0xff]
    %v1018 = vld [vmem:[%s1 + $0x100] sm:$0xff]
    %v1019 = vld [vmem:[%s1 + $0x108] sm:$0xff]
    %v1020 = vld [vmem:[%s1 + $0x110] sm:$0xff]
    %v1021 = vld [vmem:[%s1 + $0x118] sm:$0xff]
    %v1022 = vld [vmem:[%s1 + $0x120] sm:$0xff]
    %v1023 = vld [vmem:[%s1 + $0x128] sm:$0xff]
    %v1024 = vld [vmem:[%s1 + $0x130] sm:$0xff]
    %v1025 = vld [vmem:[%s1 + $0x138] sm:$0xff]
    %v1026 = vld [vmem:[%s1 + $0x140] sm:$0xff]
    %v1027 = vld [vmem:[%s1 + $0x148] sm:$0xff]
    %v1028 = vld [vmem:[%s1 + $0x150] sm:$0xff]
    %v1029 = vld [vmem:[%s1 + $0x158] sm:$0xf]
    %v1030 = vld [vmem:[%s1 + $0x160] sm:$0xff]
    %v1031 = vld [vmem:[%s1 + $0x168] sm:$0xff]
    %v1032 = vld [vmem:[%s1 + $0x170] sm:$0xff]
    %v1033 = vld [vmem:[%s1 + $0x178] sm:$0xff]
    %v1034 = vld [vmem:[%s1 + $0x180] sm:$0xff]
    %v1035 = vld [vmem:[%s1 + $0x188] sm:$0xff]
    %v1036 = vld [vmem:[%s1 + $0x190] sm:$0xff]
    %v1037 = vld [vmem:[%s1 + $0x198] sm:$0xff]
    %v1038 = vld [vmem:[%s1 + $0x1a0] sm:$0xff]
    %v1039 = vld [vmem:[%s1 + $0x1a8] sm:$0xff]
    %v1040 = vld [vmem:[%s1 + $0x1b0] sm:$0xff]
    %v1041 = vld [vmem:[%s1 + $0x1b8] sm:$0xff]
    %v1042 = vld [vmem:[%s1 + $0x1c0] sm:$0xf]
    %1044 = vset.pattern.permute.xlu0 0
    %1045 = vperm.xlu0 %1044, %v1030
    %v1046 = vpop.permute.xlu0 %1045
    %1049 = vset.pattern.permute.xlu0 0
    %1050 = vperm.xlu0 %1049, %v1031
    %v1051 = vpop.permute.xlu0 %1050
    %1054 = vset.pattern.permute.xlu0 0
    %1055 = vperm.xlu0 %1054, %v1032
    %v1056 = vpop.permute.xlu0 %1055
    %1059 = vset.pattern.permute.xlu0 0
    %1060 = vperm.xlu0 %1059, %v1033
    %v1061 = vpop.permute.xlu0 %1060
    %1064 = vset.pattern.permute.xlu0 0
    %1065 = vperm.xlu0 %1064, %v1034
    %v1066 = vpop.permute.xlu0 %1065
    %1069 = vset.pattern.permute.xlu0 0
    %1070 = vperm.xlu0 %1069, %v1035
    %v1071 = vpop.permute.xlu0 %1070
    %1074 = vset.pattern.permute.xlu0 0
    %1075 = vperm.xlu0 %1074, %v1036
    %v1076 = vpop.permute.xlu0 %1075
    %1079 = vset.pattern.permute.xlu0 0
    %1080 = vperm.xlu0 %1079, %v1037
    %v1081 = vpop.permute.xlu0 %1080
    %1084 = vset.pattern.permute.xlu0 0
    %1085 = vperm.xlu0 %1084, %v1038
    %v1086 = vpop.permute.xlu0 %1085
    %1089 = vset.pattern.permute.xlu0 0
    %1090 = vperm.xlu0 %1089, %v1039
    %v1091 = vpop.permute.xlu0 %1090
    %1094 = vset.pattern.permute.xlu0 0
    %1095 = vperm.xlu0 %1094, %v1040
    %v1096 = vpop.permute.xlu0 %1095
    %1099 = vset.pattern.permute.xlu0 0
    %1100 = vperm.xlu0 %1099, %v1041
    %v1101 = vpop.permute.xlu0 %1100
    %1104 = vset.pattern.permute.xlu0 0
    %1105 = vperm.xlu0 %1104, %v1042
    %v1106 = vpop.permute.xlu0 %1105
    %vm1108 = vcmask 408576
    %v1110 = vsel %vm1108, %v1017, 0
    %v1113 = vsel %vm1108, %v1018, 0
    %v1116 = vsel %vm1108, %v1019, 0
    %v1119 = vsel %vm1108, %v1020, 0
    %v1122 = vsel %vm1108, %v1021, 0
    %v1125 = vsel %vm1108, %v1022, 0
    %v1128 = vsel %vm1108, %v1023, 0
    %v1131 = vsel %vm1108, %v1024, 0
    %v1134 = vsel %vm1108, %v1025, 0
    %v1137 = vsel %vm1108, %v1026, 0
    %v1140 = vsel %vm1108, %v1027, 0
    %v1143 = vsel %vm1108, %v1028, 0
    %v1146 = vsel %vm1108, %v1029, 0
    %vm1148 = vcmask 1041408
    %v1150 = vsel %vm1148, %v1016, 0
    %1152 = vmatprep.subr.mxu0 0.0
    %1153 = vmatpush1.msra.mxu0 0.0
    %1154 = vmatprep.subr.mxu0 0.0
    %1155 = vmatpush1.msra.mxu0 0.0
    %1156 = vmatprep.subr.mxu0 0.0
    %1157 = vmatpush1.msra.mxu0 0.0
    %1158 = vmatprep.subr.mxu0 0.0
    %1159 = vmatpush1.msra.mxu0 0.0
    %1160 = vmatprep.subr.mxu0 0.0
    %1161 = vmatpush1.msra.mxu0 0.0
    %1162 = vmatprep.subr.mxu0 0.0
    %1163 = vmatpush1.msra.mxu0 0.0
    %1164 = vmatprep.subr.mxu0 0.0
    %1165 = vmatpush1.msra.mxu0 0.0
    %1166 = vmatprep.subr.mxu0 0.0
    %1167 = vmatpush1.msra.mxu0 0.0
    %1168 = vmatprep.subr.mxu0 0.0
    %1169 = vmatpush1.msra.mxu0 0.0
    %1170 = vmatprep.subr.mxu0 0.0
    %1171 = vmatpush1.msra.mxu0 %v1150
    %1172 = vmatprep.subr.mxu0 0.0
    %1173 = vmatpush1.msra.mxu0 %v1015
    %1174 = vmatprep.subr.mxu0 0.0
    %1175 = vmatpush1.msra.mxu0 %v1014
    %1176 = vmatprep.subr.mxu0 0.0
    %1177 = vmatpush1.msra.mxu0 %v1013
    %1178 = vmatprep.subr.mxu0 0.0
    %1179 = vmatpush1.msra.mxu0 %v1012
    %1180 = vmatprep.subr.mxu0 0.0
    %1181 = vmatpush1.msra.mxu0 %v1011
    %1182 = vmatprep.subr.mxu0 0.0
    %1183 = vmatpush1.msra.mxu0 %v1010
    %1184 = vmatprep.subr.mxu0 0.0
    %1185 = vmatpush2.msra.mxu0 0.0
    %1186 = vmatprep.subr.mxu0 0.0
    %1187 = vmatpush2.msra.mxu0 0.0
    %1188 = vmatprep.subr.mxu0 0.0
    %1189 = vmatpush2.msra.mxu0 0.0
    %1190 = vmatprep.subr.mxu0 0.0
    %1191 = vmatpush2.msra.mxu0 0.0
    %1192 = vmatprep.subr.mxu0 0.0
    %1193 = vmatpush2.msra.mxu0 0.0
    %1194 = vmatprep.subr.mxu0 0.0
    %1195 = vmatpush2.msra.mxu0 0.0
    %1196 = vmatprep.subr.mxu0 0.0
    %1197 = vmatpush2.msra.mxu0 0.0
    %1198 = vmatprep.subr.mxu0 0.0
    %1199 = vmatpush2.msra.mxu0 0.0
    %1200 = vmatprep.subr.mxu0 0.0
    %1201 = vmatpush2.msra.mxu0 0.0
    %1202 = vmatprep.subr.mxu0 0.0
    %1203 = vmatpush2.msra.mxu0 0.0
    %1204 = vmatprep.subr.mxu0 0.0
    %1205 = vmatpush2.msra.mxu0 0.0
    %1206 = vmatprep.subr.mxu0 0.0
    %1207 = vmatpush2.msra.mxu0 0.0
    %1208 = vmatprep.subr.mxu0 0.0
    %1209 = vmatpush2.msra.mxu0 0.0
    %1210 = vmatprep.subr.mxu0 0.0
    %1211 = vmatpush2.msra.mxu0 0.0
    %1212 = vmatprep.subr.mxu0 0.0
    %1213 = vmatpush2.msra.mxu0 0.0
    %1214 = vmatprep.subr.mxu0 0.0
    %1215 = vmatpush2.msra.mxu0 0.0
    %1216 = vmatprep.mubr.f32.mxu0 0.0
    %1217 = vmatmul.mubr.f32.gmra.mxu0 %v1110
    %v1218 = vpop.f32.mrf.mxu0
    %v1219 = vadd.f32 %v1046, %v1218
    %v1220 = vpop.f32.mrf.mxu0
    %1221 = vmatprep.mubr.f32.mxu0 0.0
    %1222 = vmatmul.mubr.f32.gmra.mxu0 %v1113
    %v1223 = vpop.f32.mrf.mxu0
    %v1224 = vadd.f32 %v1051, %v1223
    %v1225 = vpop.f32.mrf.mxu0
    %1226 = vmatprep.mubr.f32.mxu0 0.0
    %1227 = vmatmul.mubr.f32.gmra.mxu0 %v1116
    %v1228 = vpop.f32.mrf.mxu0
    %v1229 = vadd.f32 %v1056, %v1228
    %v1230 = vpop.f32.mrf.mxu0
    %1231 = vmatprep.mubr.f32.mxu0 0.0
    %1232 = vmatmul.mubr.f32.gmra.mxu0 %v1119
    %v1233 = vpop.f32.mrf.mxu0
    %v1234 = vadd.f32 %v1061, %v1233
    %v1235 = vpop.f32.mrf.mxu0
    %1236 = vmatprep.mubr.f32.mxu0 0.0
    %1237 = vmatmul.mubr.f32.gmra.mxu0 %v1122
    %v1238 = vpop.f32.mrf.mxu0
    %v1239 = vadd.f32 %v1066, %v1238
    %v1240 = vpop.f32.mrf.mxu0
    %1241 = vmatprep.mubr.f32.mxu0 0.0
    %1242 = vmatmul.mubr.f32.gmra.mxu0 %v1125
    %v1243 = vpop.f32.mrf.mxu0
    %v1244 = vadd.f32 %v1071, %v1243
    %v1245 = vpop.f32.mrf.mxu0
    %1246 = vmatprep.mubr.f32.mxu0 0.0
    %1247 = vmatmul.mubr.f32.gmra.mxu0 %v1128
    %v1248 = vpop.f32.mrf.mxu0
    %v1249 = vadd.f32 %v1076, %v1248
    %v1250 = vpop.f32.mrf.mxu0
    %1251 = vmatprep.mubr.f32.mxu0 0.0
    %1252 = vmatmul.mubr.f32.gmra.mxu0 %v1131
    %v1253 = vpop.f32.mrf.mxu0
    %v1254 = vadd.f32 %v1081, %v1253
    %v1255 = vpop.f32.mrf.mxu0
    %1256 = vmatprep.mubr.f32.mxu0 0.0
    %1257 = vmatmul.mubr.f32.gmra.mxu0 %v1134
    %v1258 = vpop.f32.mrf.mxu0
    %v1259 = vadd.f32 %v1086, %v1258
    %v1260 = vpop.f32.mrf.mxu0
    %1261 = vmatprep.mubr.f32.mxu0 0.0
    %1262 = vmatmul.mubr.f32.gmra.mxu0 %v1137
    %v1263 = vpop.f32.mrf.mxu0
    %v1264 = vadd.f32 %v1091, %v1263
    %v1265 = vpop.f32.mrf.mxu0
    %1266 = vmatprep.mubr.f32.mxu0 0.0
    %1267 = vmatmul.mubr.f32.gmra.mxu0 %v1140
    %v1268 = vpop.f32.mrf.mxu0
    %v1269 = vadd.f32 %v1096, %v1268
    %v1270 = vpop.f32.mrf.mxu0
    %1271 = vmatprep.mubr.f32.mxu0 0.0
    %1272 = vmatmul.mubr.f32.gmra.mxu0 %v1143
    %v1273 = vpop.f32.mrf.mxu0
    %v1274 = vadd.f32 %v1101, %v1273
    %v1275 = vpop.f32.mrf.mxu0
    %1276 = vmatprep.mubr.f32.mxu0 0.0
    %1277 = vmatmul.mubr.f32.gmra.mxu0 %v1146
    %v1278 = vpop.f32.mrf.mxu0
    %v1279 = vadd.f32 %v1106, %v1278
    %v1280 = vpop.f32.mrf.mxu0
    %1281 = vdwg.mxu0
    %v1282 = vmul.f32 %v1219, 0.5
    %v1283 = vmul.f32 %v1224, 0.5
    %v1284 = vmul.f32 %v1229, 0.5
    %v1285 = vmul.f32 %v1234, 0.5
    %v1286 = vmul.f32 %v1239, 0.5
    %v1287 = vmul.f32 %v1244, 0.5
    %v1288 = vmul.f32 %v1249, 0.5
    %v1289 = vmul.f32 %v1254, 0.5
    %v1290 = vmul.f32 %v1259, 0.5
    %v1291 = vmul.f32 %v1264, 0.5
    %v1292 = vmul.f32 %v1269, 0.5
    %v1293 = vmul.f32 %v1274, 0.5
    %v1294 = vmul.f32 %v1279, 0.5
    %v1295 = vmul.f32 %v1219, 0.70710677
    %v1296 = vmul.f32 %v1224, 0.70710677
    %v1297 = vmul.f32 %v1229, 0.70710677
    %v1298 = vmul.f32 %v1234, 0.70710677
    %v1299 = vmul.f32 %v1239, 0.70710677
    %v1300 = vmul.f32 %v1244, 0.70710677
    %v1301 = vmul.f32 %v1249, 0.70710677
    %v1302 = vmul.f32 %v1254, 0.70710677
    %v1303 = vmul.f32 %v1259, 0.70710677
    %v1304 = vmul.f32 %v1264, 0.70710677
    %v1305 = vmul.f32 %v1269, 0.70710677
    %v1306 = vmul.f32 %v1274, 0.70710677
    %v1307 = vmul.f32 %v1279, 0.70710677
    %v1308 = vand.u32 2147483647, %v1295
    %v1309 = vand.u32 2147483647, %v1296
    %v1310 = vand.u32 2147483647, %v1297
    %v1311 = vand.u32 2147483647, %v1298
    %v1312 = vand.u32 2147483647, %v1299
    %v1313 = vand.u32 2147483647, %v1300
    %v1314 = vand.u32 2147483647, %v1301
    %v1315 = vand.u32 2147483647, %v1302
    %v1316 = vand.u32 2147483647, %v1303
    %v1317 = vand.u32 2147483647, %v1304
    %v1318 = vand.u32 2147483647, %v1305
    %v1319 = vand.u32 2147483647, %v1306
    %v1320 = vand.u32 2147483647, %v1307
    %v1321 = vmul.f32 %v1308, 0.3275911
    %v1322 = vmul.f32 %v1309, 0.3275911
    %v1323 = vmul.f32 %v1310, 0.3275911
    %v1324 = vmul.f32 %v1311, 0.3275911
    %v1325 = vmul.f32 %v1312, 0.3275911
    %v1326 = vmul.f32 %v1313, 0.3275911
    %v1327 = vmul.f32 %v1314, 0.3275911
    %v1328 = vmul.f32 %v1315, 0.3275911
    %v1329 = vmul.f32 %v1316, 0.3275911
    %v1330 = vmul.f32 %v1317, 0.3275911
    %v1331 = vmul.f32 %v1318, 0.3275911
    %v1332 = vmul.f32 %v1319, 0.3275911
    %v1333 = vmul.f32 %v1320, 0.3275911
    %v1334 = vadd.f32 %v1321, 1.0
    %v1335 = vadd.f32 %v1322, 1.0
    %v1336 = vadd.f32 %v1323, 1.0
    %v1337 = vadd.f32 %v1324, 1.0
    %v1338 = vadd.f32 %v1325, 1.0
    %v1339 = vadd.f32 %v1326, 1.0
    %v1340 = vadd.f32 %v1327, 1.0
    %v1341 = vadd.f32 %v1328, 1.0
    %v1342 = vadd.f32 %v1329, 1.0
    %v1343 = vadd.f32 %v1330, 1.0
    %v1344 = vadd.f32 %v1331, 1.0
    %v1345 = vadd.f32 %v1332, 1.0
    %v1346 = vadd.f32 %v1333, 1.0
    %v1347 = vrcp.pop %v1334
    %v1348 = vmul.f32 1.0, %v1347
    %v1349 = vrcp.pop %v1335
    %v1350 = vmul.f32 1.0, %v1349
    %v1351 = vrcp.pop %v1336
    %v1352 = vmul.f32 1.0, %v1351
    %v1353 = vrcp.pop %v1337
    %v1354 = vmul.f32 1.0, %v1353
    %v1355 = vrcp.pop %v1338
    %v1356 = vmul.f32 1.0, %v1355
    %v1357 = vrcp.pop %v1339
    %v1358 = vmul.f32 1.0, %v1357
    %v1359 = vrcp.pop %v1340
    %v1360 = vmul.f32 1.0, %v1359
    %v1361 = vrcp.pop %v1341
    %v1362 = vmul.f32 1.0, %v1361
    %v1363 = vrcp.pop %v1342
    %v1364 = vmul.f32 1.0, %v1363
    %v1365 = vrcp.pop %v1343
    %v1366 = vmul.f32 1.0, %v1365
    %v1367 = vrcp.pop %v1344
    %v1368 = vmul.f32 1.0, %v1367
    %v1369 = vrcp.pop %v1345
    %v1370 = vmul.f32 1.0, %v1369
    %v1371 = vrcp.pop %v1346
    %v1372 = vmul.f32 1.0, %v1371
    %v1373 = vmul.f32 %v1348, 1.0614054
    %v1374 = vmul.f32 %v1350, 1.0614054
    %v1375 = vmul.f32 %v1352, 1.0614054
    %v1376 = vmul.f32 %v1354, 1.0614054
    %v1377 = vmul.f32 %v1356, 1.0614054
    %v1378 = vmul.f32 %v1358, 1.0614054
    %v1379 = vmul.f32 %v1360, 1.0614054
    %v1380 = vmul.f32 %v1362, 1.0614054
    %v1381 = vmul.f32 %v1364, 1.0614054
    %v1382 = vmul.f32 %v1366, 1.0614054
    %v1383 = vmul.f32 %v1368, 1.0614054
    %v1384 = vmul.f32 %v1370, 1.0614054
    %v1385 = vmul.f32 %v1372, 1.0614054
    %v1386 = vadd.f32 %v1373, -1.4531521
    %v1387 = vadd.f32 %v1374, -1.4531521
    %v1388 = vadd.f32 %v1375, -1.4531521
    %v1389 = vadd.f32 %v1376, -1.4531521
    %v1390 = vadd.f32 %v1377, -1.4531521
    %v1391 = vadd.f32 %v1378, -1.4531521
    %v1392 = vadd.f32 %v1379, -1.4531521
    %v1393 = vadd.f32 %v1380, -1.4531521
    %v1394 = vadd.f32 %v1381, -1.4531521
    %v1395 = vadd.f32 %v1382, -1.4531521
    %v1396 = vadd.f32 %v1383, -1.4531521
    %v1397 = vadd.f32 %v1384, -1.4531521
    %v1398 = vadd.f32 %v1385, -1.4531521
    %v1399 = vmul.f32 %v1386, %v1348
    %v1400 = vmul.f32 %v1387, %v1350
    %v1401 = vmul.f32 %v1388, %v1352
    %v1402 = vmul.f32 %v1389, %v1354
    %v1403 = vmul.f32 %v1390, %v1356
    %v1404 = vmul.f32 %v1391, %v1358
    %v1405 = vmul.f32 %v1392, %v1360
    %v1406 = vmul.f32 %v1393, %v1362
    %v1407 = vmul.f32 %v1394, %v1364
    %v1408 = vmul.f32 %v1395, %v1366
    %v1409 = vmul.f32 %v1396, %v1368
    %v1410 = vmul.f32 %v1397, %v1370
    %v1411 = vmul.f32 %v1398, %v1372
    %v1412 = vadd.f32 %v1399, 1.4214138
    %v1413 = vadd.f32 %v1400, 1.4214138
    %v1414 = vadd.f32 %v1401, 1.4214138
    %v1415 = vadd.f32 %v1402, 1.4214138
    %v1416 = vadd.f32 %v1403, 1.4214138
    %v1417 = vadd.f32 %v1404, 1.4214138
    %v1418 = vadd.f32 %v1405, 1.4214138
    %v1419 = vadd.f32 %v1406, 1.4214138
    %v1420 = vadd.f32 %v1407, 1.4214138
    %v1421 = vadd.f32 %v1408, 1.4214138
    %v1422 = vadd.f32 %v1409, 1.4214138
    %v1423 = vadd.f32 %v1410, 1.4214138
    %v1424 = vadd.f32 %v1411, 1.4214138
    %v1425 = vmul.f32 %v1412, %v1348
    %v1426 = vmul.f32 %v1413, %v1350
    %v1427 = vmul.f32 %v1414, %v1352
    %v1428 = vmul.f32 %v1415, %v1354
    %v1429 = vmul.f32 %v1416, %v1356
    %v1430 = vmul.f32 %v1417, %v1358
    %v1431 = vmul.f32 %v1418, %v1360
    %v1432 = vmul.f32 %v1419, %v1362
    %v1433 = vmul.f32 %v1420, %v1364
    %v1434 = vmul.f32 %v1421, %v1366
    %v1435 = vmul.f32 %v1422, %v1368
    %v1436 = vmul.f32 %v1423, %v1370
    %v1437 = vmul.f32 %v1424, %v1372
    %v1438 = vadd.f32 %v1425, -0.28449672
    %v1439 = vadd.f32 %v1426, -0.28449672
    %v1440 = vadd.f32 %v1427, -0.28449672
    %v1441 = vadd.f32 %v1428, -0.28449672
    %v1442 = vadd.f32 %v1429, -0.28449672
    %v1443 = vadd.f32 %v1430, -0.28449672
    %v1444 = vadd.f32 %v1431, -0.28449672
    %v1445 = vadd.f32 %v1432, -0.28449672
    %v1446 = vadd.f32 %v1433, -0.28449672
    %v1447 = vadd.f32 %v1434, -0.28449672
    %v1448 = vadd.f32 %v1435, -0.28449672
    %v1449 = vadd.f32 %v1436, -0.28449672
    %v1450 = vadd.f32 %v1437, -0.28449672
    %v1451 = vmul.f32 %v1438, %v1348
    %v1452 = vmul.f32 %v1439, %v1350
    %v1453 = vmul.f32 %v1440, %v1352
    %v1454 = vmul.f32 %v1441, %v1354
    %v1455 = vmul.f32 %v1442, %v1356
    %v1456 = vmul.f32 %v1443, %v1358
    %v1457 = vmul.f32 %v1444, %v1360
    %v1458 = vmul.f32 %v1445, %v1362
    %v1459 = vmul.f32 %v1446, %v1364
    %v1460 = vmul.f32 %v1447, %v1366
    %v1461 = vmul.f32 %v1448, %v1368
    %v1462 = vmul.f32 %v1449, %v1370
    %v1463 = vmul.f32 %v1450, %v1372
    %v1464 = vadd.f32 %v1451, 0.2548296
    %v1465 = vadd.f32 %v1452, 0.2548296
    %v1466 = vadd.f32 %v1453, 0.2548296
    %v1467 = vadd.f32 %v1454, 0.2548296
    %v1468 = vadd.f32 %v1455, 0.2548296
    %v1469 = vadd.f32 %v1456, 0.2548296
    %v1470 = vadd.f32 %v1457, 0.2548296
    %v1471 = vadd.f32 %v1458, 0.2548296
    %v1472 = vadd.f32 %v1459, 0.2548296
    %v1473 = vadd.f32 %v1460, 0.2548296
    %v1474 = vadd.f32 %v1461, 0.2548296
    %v1475 = vadd.f32 %v1462, 0.2548296
    %v1476 = vadd.f32 %v1463, 0.2548296
    %v1477 = vmul.f32 %v1464, %v1348
    %v1478 = vmul.f32 %v1465, %v1350
    %v1479 = vmul.f32 %v1466, %v1352
    %v1480 = vmul.f32 %v1467, %v1354
    %v1481 = vmul.f32 %v1468, %v1356
    %v1482 = vmul.f32 %v1469, %v1358
    %v1483 = vmul.f32 %v1470, %v1360
    %v1484 = vmul.f32 %v1471, %v1362
    %v1485 = vmul.f32 %v1472, %v1364
    %v1486 = vmul.f32 %v1473, %v1366
    %v1487 = vmul.f32 %v1474, %v1368
    %v1488 = vmul.f32 %v1475, %v1370
    %v1489 = vmul.f32 %v1476, %v1372
    %v1490 = vsub.f32 0.0, %v1308
    %v1491 = vsub.f32 0.0, %v1309
    %v1492 = vsub.f32 0.0, %v1310
    %v1493 = vsub.f32 0.0, %v1311
    %v1494 = vsub.f32 0.0, %v1312
    %v1495 = vsub.f32 0.0, %v1313
    %v1496 = vsub.f32 0.0, %v1314
    %v1497 = vsub.f32 0.0, %v1315
    %v1498 = vsub.f32 0.0, %v1316
    %v1499 = vsub.f32 0.0, %v1317
    %v1500 = vsub.f32 0.0, %v1318
    %v1501 = vsub.f32 0.0, %v1319
    %v1502 = vsub.f32 0.0, %v1320
    %v1503 = vmul.f32 %v1490, %v1308
    %v1504 = vmul.f32 %v1491, %v1309
    %v1505 = vmul.f32 %v1492, %v1310
    %v1506 = vmul.f32 %v1493, %v1311
    %v1507 = vmul.f32 %v1494, %v1312
    %v1508 = vmul.f32 %v1495, %v1313
    %v1509 = vmul.f32 %v1496, %v1314
    %v1510 = vmul.f32 %v1497, %v1315
    %v1511 = vmul.f32 %v1498, %v1316
    %v1512 = vmul.f32 %v1499, %v1317
    %v1513 = vmul.f32 %v1500, %v1318
    %v1514 = vmul.f32 %v1501, %v1319
    %v1515 = vmul.f32 %v1502, %v1320
    %v1516 = vmul.f32 %v1503, 1.442695
    %v1517 = vpow.pop %v1516
    %v1518 = vmul.f32 %v1504, 1.442695
    %v1519 = vpow.pop %v1518
    %v1520 = vmul.f32 %v1505, 1.442695
    %v1521 = vpow.pop %v1520
    %v1522 = vmul.f32 %v1506, 1.442695
    %v1523 = vpow.pop %v1522
    %v1524 = vmul.f32 %v1507, 1.442695
    %v1525 = vpow.pop %v1524
    %v1526 = vmul.f32 %v1508, 1.442695
    %v1527 = vpow.pop %v1526
    %v1528 = vmul.f32 %v1509, 1.442695
    %v1529 = vpow.pop %v1528
    %v1530 = vmul.f32 %v1510, 1.442695
    %v1531 = vpow.pop %v1530
    %v1532 = vmul.f32 %v1511, 1.442695
    %v1533 = vpow.pop %v1532
    %v1534 = vmul.f32 %v1512, 1.442695
    %v1535 = vpow.pop %v1534
    %v1536 = vmul.f32 %v1513, 1.442695
    %v1537 = vpow.pop %v1536
    %v1538 = vmul.f32 %v1514, 1.442695
    %v1539 = vpow.pop %v1538
    %v1540 = vmul.f32 %v1515, 1.442695
    %v1541 = vpow.pop %v1540
    %v1542 = vmul.f32 %v1477, %v1517
    %v1543 = vmul.f32 %v1478, %v1519
    %v1544 = vmul.f32 %v1479, %v1521
    %v1545 = vmul.f32 %v1480, %v1523
    %v1546 = vmul.f32 %v1481, %v1525
    %v1547 = vmul.f32 %v1482, %v1527
    %v1548 = vmul.f32 %v1483, %v1529
    %v1549 = vmul.f32 %v1484, %v1531
    %v1550 = vmul.f32 %v1485, %v1533
    %v1551 = vmul.f32 %v1486, %v1535
    %v1552 = vmul.f32 %v1487, %v1537
    %v1553 = vmul.f32 %v1488, %v1539
    %v1554 = vmul.f32 %v1489, %v1541
    %v1555 = vsub.f32 1.0, %v1542
    %v1556 = vsub.f32 1.0, %v1543
    %v1557 = vsub.f32 1.0, %v1544
    %v1558 = vsub.f32 1.0, %v1545
    %v1559 = vsub.f32 1.0, %v1546
    %v1560 = vsub.f32 1.0, %v1547
    %v1561 = vsub.f32 1.0, %v1548
    %v1562 = vsub.f32 1.0, %v1549
    %v1563 = vsub.f32 1.0, %v1550
    %v1564 = vsub.f32 1.0, %v1551
    %v1565 = vsub.f32 1.0, %v1552
    %v1566 = vsub.f32 1.0, %v1553
    %v1567 = vsub.f32 1.0, %v1554
    %vm1568 = vcmp.lt.f32.partialorder %v1295, 0.0
    %vm1569 = vcmp.lt.f32.partialorder %v1296, 0.0
    %vm1570 = vcmp.lt.f32.partialorder %v1297, 0.0
    %vm1571 = vcmp.lt.f32.partialorder %v1298, 0.0
    %vm1572 = vcmp.lt.f32.partialorder %v1299, 0.0
    %vm1573 = vcmp.lt.f32.partialorder %v1300, 0.0
    %vm1574 = vcmp.lt.f32.partialorder %v1301, 0.0
    %vm1575 = vcmp.lt.f32.partialorder %v1302, 0.0
    %vm1576 = vcmp.lt.f32.partialorder %v1303, 0.0
    %vm1577 = vcmp.lt.f32.partialorder %v1304, 0.0
    %vm1578 = vcmp.lt.f32.partialorder %v1305, 0.0
    %vm1579 = vcmp.lt.f32.partialorder %v1306, 0.0
    %vm1580 = vcmp.lt.f32.partialorder %v1307, 0.0
    %v1581 = vsub.f32 0.0, %v1555
    %v1582 = vsub.f32 0.0, %v1556
    %v1583 = vsub.f32 0.0, %v1557
    %v1584 = vsub.f32 0.0, %v1558
    %v1585 = vsub.f32 0.0, %v1559
    %v1586 = vsub.f32 0.0, %v1560
    %v1587 = vsub.f32 0.0, %v1561
    %v1588 = vsub.f32 0.0, %v1562
    %v1589 = vsub.f32 0.0, %v1563
    %v1590 = vsub.f32 0.0, %v1564
    %v1591 = vsub.f32 0.0, %v1565
    %v1592 = vsub.f32 0.0, %v1566
    %v1593 = vsub.f32 0.0, %v1567
    %v1594 = vsel %vm1568, %v1581, %v1555
    %v1595 = vsel %vm1569, %v1582, %v1556
    %v1596 = vsel %vm1570, %v1583, %v1557
    %v1597 = vsel %vm1571, %v1584, %v1558
    %v1598 = vsel %vm1572, %v1585, %v1559
    %v1599 = vsel %vm1573, %v1586, %v1560
    %v1600 = vsel %vm1574, %v1587, %v1561
    %v1601 = vsel %vm1575, %v1588, %v1562
    %v1602 = vsel %vm1576, %v1589, %v1563
    %v1603 = vsel %vm1577, %v1590, %v1564
    %v1604 = vsel %vm1578, %v1591, %v1565
    %v1605 = vsel %vm1579, %v1592, %v1566
    %v1606 = vsel %vm1580, %v1593, %v1567
    %v1607 = vadd.f32 %v1594, 1.0
    %v1608 = vadd.f32 %v1595, 1.0
    %v1609 = vadd.f32 %v1596, 1.0
    %v1610 = vadd.f32 %v1597, 1.0
    %v1611 = vadd.f32 %v1598, 1.0
    %v1612 = vadd.f32 %v1599, 1.0
    %v1613 = vadd.f32 %v1600, 1.0
    %v1614 = vadd.f32 %v1601, 1.0
    %v1615 = vadd.f32 %v1602, 1.0
    %v1616 = vadd.f32 %v1603, 1.0
    %v1617 = vadd.f32 %v1604, 1.0
    %v1618 = vadd.f32 %v1605, 1.0
    %v1619 = vadd.f32 %v1606, 1.0
    %v1620 = vmul.f32 %v1282, %v1607
    %v1621 = vmul.f32 %v1283, %v1608
    %v1622 = vmul.f32 %v1284, %v1609
    %v1623 = vmul.f32 %v1285, %v1610
    %v1624 = vmul.f32 %v1286, %v1611
    %v1625 = vmul.f32 %v1287, %v1612
    %v1626 = vmul.f32 %v1288, %v1613
    %v1627 = vmul.f32 %v1289, %v1614
    %v1628 = vmul.f32 %v1290, %v1615
    %v1629 = vmul.f32 %v1291, %v1616
    %v1630 = vmul.f32 %v1292, %v1617
    %v1631 = vmul.f32 %v1293, %v1618
    %v1632 = vmul.f32 %v1294, %v1619
    %v1633 = vld [vmem:[%s1 + $0x1c8] sm:$0xff]
    %v1634 = vld [vmem:[%s1 + $0x1d0] sm:$0xff]
    %v1635 = vld [vmem:[%s1 + $0x1d8] sm:$0xff]
    %v1636 = vld [vmem:[%s1 + $0x1e0] sm:$0xff]
    %v1637 = vld [vmem:[%s1 + $0x1e8] sm:$0xff]
    %v1638 = vld [vmem:[%s1 + $0x1f0] sm:$0xff]
    %v1639 = vld [vmem:[%s1 + $0x1f8] sm:$0x3]
    %vm1640 = vcmask 818176
    %v1642 = vsel %vm1640, %v1633, 0
    %v1645 = vsel %vm1640, %v1634, 0
    %v1648 = vsel %vm1640, %v1635, 0
    %v1651 = vsel %vm1640, %v1636, 0
    %v1654 = vsel %vm1640, %v1637, 0
    %v1657 = vsel %vm1640, %v1638, 0
    %v1660 = vsel %vm1640, %v1639, 0
    %vm1662 = vcmask 1043456
    %v1664 = vsel %vm1662, %v1632, 0
    %1666 = vmatprep.subr.mxu0 0.0
    %1667 = vmatpush1.msra.mxu0 0.0
    %1668 = vmatprep.subr.mxu0 0.0
    %1669 = vmatpush1.msra.mxu0 0.0
    %1670 = vmatprep.subr.mxu0 0.0
    %1671 = vmatpush1.msra.mxu0 0.0
    %1672 = vmatprep.subr.mxu0 0.0
    %1673 = vmatpush1.msra.mxu0 %v1664
    %1674 = vmatprep.subr.mxu0 0.0
    %1675 = vmatpush1.msra.mxu0 %v1631
    %1676 = vmatprep.subr.mxu0 0.0
    %1677 = vmatpush1.msra.mxu0 %v1630
    %1678 = vmatprep.subr.mxu0 0.0
    %1679 = vmatpush1.msra.mxu0 %v1629
    %1680 = vmatprep.subr.mxu0 0.0
    %1681 = vmatpush1.msra.mxu0 %v1628
    %1682 = vmatprep.subr.mxu0 0.0
    %1683 = vmatpush1.msra.mxu0 %v1627
    %1684 = vmatprep.subr.mxu0 0.0
    %1685 = vmatpush1.msra.mxu0 %v1626
    %1686 = vmatprep.subr.mxu0 0.0
    %1687 = vmatpush1.msra.mxu0 %v1625
    %1688 = vmatprep.subr.mxu0 0.0
    %1689 = vmatpush1.msra.mxu0 %v1624
    %1690 = vmatprep.subr.mxu0 0.0
    %1691 = vmatpush1.msra.mxu0 %v1623
    %1692 = vmatprep.subr.mxu0 0.0
    %1693 = vmatpush1.msra.mxu0 %v1622
    %1694 = vmatprep.subr.mxu0 0.0
    %1695 = vmatpush1.msra.mxu0 %v1621
    %1696 = vmatprep.subr.mxu0 0.0
    %1697 = vmatpush1.msra.mxu0 %v1620
    %1698 = vmatprep.subr.mxu0 0.0
    %1699 = vmatpush2.msra.mxu0 0.0
    %1700 = vmatprep.subr.mxu0 0.0
    %1701 = vmatpush2.msra.mxu0 0.0
    %1702 = vmatprep.subr.mxu0 0.0
    %1703 = vmatpush2.msra.mxu0 0.0
    %1704 = vmatprep.subr.mxu0 0.0
    %1705 = vmatpush2.msra.mxu0 0.0
    %1706 = vmatprep.subr.mxu0 0.0
    %1707 = vmatpush2.msra.mxu0 0.0
    %1708 = vmatprep.subr.mxu0 0.0
    %1709 = vmatpush2.msra.mxu0 0.0
    %1710 = vmatprep.subr.mxu0 0.0
    %1711 = vmatpush2.msra.mxu0 0.0
    %1712 = vmatprep.subr.mxu0 0.0
    %1713 = vmatpush2.msra.mxu0 0.0
    %1714 = vmatprep.subr.mxu0 0.0
    %1715 = vmatpush2.msra.mxu0 0.0
    %1716 = vmatprep.subr.mxu0 0.0
    %1717 = vmatpush2.msra.mxu0 0.0
    %1718 = vmatprep.subr.mxu0 0.0
    %1719 = vmatpush2.msra.mxu0 0.0
    %1720 = vmatprep.subr.mxu0 0.0
    %1721 = vmatpush2.msra.mxu0 0.0
    %1722 = vmatprep.subr.mxu0 0.0
    %1723 = vmatpush2.msra.mxu0 0.0
    %1724 = vmatprep.subr.mxu0 0.0
    %1725 = vmatpush2.msra.mxu0 0.0
    %1726 = vmatprep.subr.mxu0 0.0
    %1727 = vmatpush2.msra.mxu0 0.0
    %1728 = vmatprep.subr.mxu0 0.0
    %1729 = vmatpush2.msra.mxu0 0.0
    %1730 = vmatprep.mubr.f32.mxu0 0.0
    %1731 = vmatmul.mubr.f32.gmra.mxu0 %v1642
    %v1732 = vpop.f32.mrf.mxu0
    %v1733 = vadd.f32 0.0, %v1732
    %v1734 = vpop.f32.mrf.mxu0
    %1735 = vmatprep.mubr.f32.mxu0 0.0
    %1736 = vmatmul.mubr.f32.gmra.mxu0 %v1645
    %v1737 = vpop.f32.mrf.mxu0
    %v1738 = vadd.f32 0.0, %v1737
    %v1739 = vpop.f32.mrf.mxu0
    %1740 = vmatprep.mubr.f32.mxu0 0.0
    %1741 = vmatmul.mubr.f32.gmra.mxu0 %v1648
    %v1742 = vpop.f32.mrf.mxu0
    %v1743 = vadd.f32 0.0, %v1742
    %v1744 = vpop.f32.mrf.mxu0
    %1745 = vmatprep.mubr.f32.mxu0 0.0
    %1746 = vmatmul.mubr.f32.gmra.mxu0 %v1651
    %v1747 = vpop.f32.mrf.mxu0
    %v1748 = vadd.f32 0.0, %v1747
    %v1749 = vpop.f32.mrf.mxu0
    %1750 = vmatprep.mubr.f32.mxu0 0.0
    %1751 = vmatmul.mubr.f32.gmra.mxu0 %v1654
    %v1752 = vpop.f32.mrf.mxu0
    %v1753 = vadd.f32 0.0, %v1752
    %v1754 = vpop.f32.mrf.mxu0
    %1755 = vmatprep.mubr.f32.mxu0 0.0
    %1756 = vmatmul.mubr.f32.gmra.mxu0 %v1657
    %v1757 = vpop.f32.mrf.mxu0
    %v1758 = vadd.f32 0.0, %v1757
    %v1759 = vpop.f32.mrf.mxu0
    %1760 = vmatprep.mubr.f32.mxu0 0.0
    %1761 = vmatmul.mubr.f32.gmra.mxu0 %v1660
    %v1762 = vpop.f32.mrf.mxu0
    %v1763 = vadd.f32 0.0, %v1762
    %v1764 = vpop.f32.mrf.mxu0
    %1765 = vdwg.mxu0
    %v1766 = vadd.f32 %v666, %v1733
    %v1767 = vadd.f32 %v667, %v1738
    %v1768 = vadd.f32 %v668, %v1743
    %v1769 = vadd.f32 %v899, %v1748
    %v1770 = vadd.f32 %v890, %v1753
    %v1771 = vadd.f32 %v892, %v1758
    %v1772 = vadd.f32 %v894, %v1763
    %v1773 = vld [vmem:[%s1 + $0x200] sm:$0xff]
    %v1774 = vld [vmem:[%s1 + $0x208] sm:$0xff]
    %v1775 = vld [vmem:[%s1 + $0x210] sm:$0xff]
    %v1776 = vld [vmem:[%s1 + $0x218] sm:$0xff]
    %v1777 = vld [vmem:[%s1 + $0x220] sm:$0xff]
    %v1778 = vld [vmem:[%s1 + $0x228] sm:$0xff]
    %v1779 = vld [vmem:[%s1 + $0x230] sm:$0x3]
    %1781 = vset.pattern.permute.xlu0 0
    %1782 = vperm.xlu0 %1781, %v1773
    %v1783 = vpop.permute.xlu0 %1782
    %1786 = vset.pattern.permute.xlu0 0
    %1787 = vperm.xlu0 %1786, %v1774
    %v1788 = vpop.permute.xlu0 %1787
    %1791 = vset.pattern.permute.xlu0 0
    %1792 = vperm.xlu0 %1791, %v1775
    %v1793 = vpop.permute.xlu0 %1792
    %1796 = vset.pattern.permute.xlu0 0
    %1797 = vperm.xlu0 %1796, %v1776
    %v1798 = vpop.permute.xlu0 %1797
    %1801 = vset.pattern.permute.xlu0 0
    %1802 = vperm.xlu0 %1801, %v1777
    %v1803 = vpop.permute.xlu0 %1802
    %1806 = vset.pattern.permute.xlu0 0
    %1807 = vperm.xlu0 %1806, %v1778
    %v1808 = vpop.permute.xlu0 %1807
    %1811 = vset.pattern.permute.xlu0 0
    %1812 = vperm.xlu0 %1811, %v1779
    %v1813 = vpop.permute.xlu0 %1812
    %v1815 = vadd.f32 %v1766, %v1783
    %v1816 = vadd.f32 %v1767, %v1788
    %v1817 = vadd.f32 %v1768, %v1793
    %v1818 = vadd.f32 %v1769, %v1798
    %v1819 = vadd.f32 %v1770, %v1803
    %v1820 = vadd.f32 %v1771, %v1808
    %v1821 = vadd.f32 %v1772, %v1813
    %v1822 = vsel %vm455, %v1815, 0.0
    %1823 = vadd.xlane.f32.xlu0 %v1822
    %v1824 = vpop.xlane.xlu0 %1823
    %v1825 = vsel %vm455, %v1816, 0.0
    %1826 = vadd.xlane.f32.xlu0 %v1825
    %v1827 = vpop.xlane.xlu0 %1826
    %v1828 = vsel %vm455, %v1817, 0.0
    %1829 = vadd.xlane.f32.xlu0 %v1828
    %v1830 = vpop.xlane.xlu0 %1829
    %v1831 = vsel %vm455, %v1818, 0.0
    %1832 = vadd.xlane.f32.xlu0 %v1831
    %v1833 = vpop.xlane.xlu0 %1832
    %v1834 = vsel %vm455, %v1819, 0.0
    %1835 = vadd.xlane.f32.xlu0 %v1834
    %v1836 = vpop.xlane.xlu0 %1835
    %v1837 = vsel %vm455, %v1820, 0.0
    %1838 = vadd.xlane.f32.xlu0 %v1837
    %v1839 = vpop.xlane.xlu0 %1838
    %v1840 = vsel %vm920, %v1821, 0.0
    %1841 = vadd.xlane.f32.xlu0 %v1840
    %v1842 = vpop.xlane.xlu0 %1841
    %v1843 = vmul.f32 %v1824, %v924
    %v1844 = vmul.f32 %v1827, %v924
    %v1845 = vmul.f32 %v1830, %v924
    %v1846 = vmul.f32 %v1833, %v924
    %v1847 = vmul.f32 %v1836, %v924
    %v1848 = vmul.f32 %v1839, %v924
    %v1849 = vmul.f32 %v1842, %v924
    %v1850 = vsub.f32 %v1815, %v1843
    %v1851 = vsub.f32 %v1816, %v1844
    %v1852 = vsub.f32 %v1817, %v1845
    %v1853 = vsub.f32 %v1818, %v1846
    %v1854 = vsub.f32 %v1819, %v1847
    %v1855 = vsub.f32 %v1820, %v1848
    %v1856 = vsub.f32 %v1821, %v1849
    %v1857 = vmul.f32 %v1850, %v1850
    %v1858 = vmul.f32 %v1851, %v1851
    %v1859 = vmul.f32 %v1852, %v1852
    %v1860 = vmul.f32 %v1853, %v1853
    %v1861 = vmul.f32 %v1854, %v1854
    %v1862 = vmul.f32 %v1855, %v1855
    %v1863 = vmul.f32 %v1856, %v1856
    %v1864 = vsel %vm455, %v1857, 0.0
    %1865 = vadd.xlane.f32.xlu0 %v1864
    %v1866 = vpop.xlane.xlu0 %1865
    %v1867 = vsel %vm455, %v1858, 0.0
    %1868 = vadd.xlane.f32.xlu0 %v1867
    %v1869 = vpop.xlane.xlu0 %1868
    %v1870 = vsel %vm455, %v1859, 0.0
    %1871 = vadd.xlane.f32.xlu0 %v1870
    %v1872 = vpop.xlane.xlu0 %1871
    %v1873 = vsel %vm455, %v1860, 0.0
    %1874 = vadd.xlane.f32.xlu0 %v1873
    %v1875 = vpop.xlane.xlu0 %1874
    %v1876 = vsel %vm455, %v1861, 0.0
    %1877 = vadd.xlane.f32.xlu0 %v1876
    %v1878 = vpop.xlane.xlu0 %1877
    %v1879 = vsel %vm455, %v1862, 0.0
    %1880 = vadd.xlane.f32.xlu0 %v1879
    %v1881 = vpop.xlane.xlu0 %1880
    %v1882 = vsel %vm920, %v1863, 0.0
    %1883 = vadd.xlane.f32.xlu0 %v1882
    %v1884 = vpop.xlane.xlu0 %1883
    %v1885 = vmul.f32 %v1866, %v924
    %v1886 = vmul.f32 %v1869, %v924
    %v1887 = vmul.f32 %v1872, %v924
    %v1888 = vmul.f32 %v1875, %v924
    %v1889 = vmul.f32 %v1878, %v924
    %v1890 = vmul.f32 %v1881, %v924
    %v1891 = vmul.f32 %v1884, %v924
    %v1892 = vadd.f32 %v1885, 1e-05
    %v1893 = vadd.f32 %v1886, 1e-05
    %v1894 = vadd.f32 %v1887, 1e-05
    %v1895 = vadd.f32 %v1888, 1e-05
    %v1896 = vadd.f32 %v1889, 1e-05
    %v1897 = vadd.f32 %v1890, 1e-05
    %v1898 = vadd.f32 %v1891, 1e-05
    %v1899 = vrsqrt.pop %v1892
    %v1900 = vrsqrt.pop %v1893
    %v1901 = vrsqrt.pop %v1894
    %v1902 = vrsqrt.pop %v1895
    %v1903 = vrsqrt.pop %v1896
    %v1904 = vrsqrt.pop %v1897
    %v1905 = vrsqrt.pop %v1898
    %v1906 = vmul.f32 %v1850, %v1899
    %v1907 = vmul.f32 %v1851, %v1900
    %v1908 = vmul.f32 %v1852, %v1901
    %v1909 = vmul.f32 %v1853, %v1902
    %v1910 = vmul.f32 %v1854, %v1903
    %v1911 = vmul.f32 %v1855, %v1904
    %v1912 = vmul.f32 %v1856, %v1905
    %v1913 = vmul.f32 %v1906, %v998
    %v1914 = vmul.f32 %v1907, %v998
    %v1915 = vmul.f32 %v1908, %v998
    %v1916 = vmul.f32 %v1909, %v998
    %v1917 = vmul.f32 %v1910, %v998
    %v1918 = vmul.f32 %v1911, %v998
    %v1919 = vmul.f32 %v1912, %v998
    %v1920 = vadd.f32 %v1913, %v1009
    %v1921 = vadd.f32 %v1914, %v1009
    %v1922 = vadd.f32 %v1915, %v1009
    %v1923 = vadd.f32 %v1916, %v1009
    %v1924 = vadd.f32 %v1917, %v1009
    %v1925 = vadd.f32 %v1918, %v1009
    %v1926 = vadd.f32 %v1919, %v1009
    %v1927 = vld [vmem:[%s1 + $0x238] sm:$0xff]
    %v1928 = vld [vmem:[%s1 + $0x240] sm:$0xff]
    %v1929 = vld [vmem:[%s1 + $0x248] sm:$0xff]
    %v1930 = vld [vmem:[%s1 + $0x250] sm:$0xff]
    %v1931 = vld [vmem:[%s1 + $0x258] sm:$0x1]
    %v1932 = vlaneseq
    %v1933 = vshrl.u32 %v1932, 7
    %v1934 = vsub.s32 0, %v1933
    %v1935 = vrot.slane %v1931, %v1934
    %v1937 = vsel %vm455, %v1920, 0
    %v1940 = vsel %vm455, %v1921, 0
    %v1943 = vsel %vm455, %v1922, 0
    %v1946 = vsel %vm455, %v1923, 0
    %v1949 = vsel %vm455, %v1924, 0
    %v1952 = vsel %vm455, %v1925, 0
    %v1955 = vsel %vm455, %v1926, 0
    %1957 = vmatprep.subr.mxu0 0.0
    %1958 = vmatpush1.msra.mxu0 0.0
    %1959 = vmatprep.subr.mxu0 0.0
    %1960 = vmatpush1.msra.mxu0 0.0
    %1961 = vmatprep.subr.mxu0 0.0
    %1962 = vmatpush1.msra.mxu0 0.0
    %1963 = vmatprep.subr.mxu0 0.0
    %1964 = vmatpush1.msra.mxu0 0.0
    %1965 = vmatprep.subr.mxu0 0.0
    %1966 = vmatpush1.msra.mxu0 0.0
    %1967 = vmatprep.subr.mxu0 0.0
    %1968 = vmatpush1.msra.mxu0 0.0
    %1969 = vmatprep.subr.mxu0 0.0
    %1970 = vmatpush1.msra.mxu0 0.0
    %1971 = vmatprep.subr.mxu0 0.0
    %1972 = vmatpush1.msra.mxu0 0.0
    %1973 = vmatprep.subr.mxu0 0.0
    %1974 = vmatpush1.msra.mxu0 0.0
    %1975 = vmatprep.subr.mxu0 0.0
    %1976 = vmatpush1.msra.mxu0 0.0
    %1977 = vmatprep.subr.mxu0 0.0
    %1978 = vmatpush1.msra.mxu0 0.0
    %1979 = vmatprep.subr.mxu0 0.0
    %1980 = vmatpush1.msra.mxu0 0.0
    %1981 = vmatprep.subr.mxu0 0.0
    %1982 = vmatpush1.msra.mxu0 %v1930
    %1983 = vmatprep.subr.mxu0 0.0
    %1984 = vmatpush1.msra.mxu0 %v1929
    %1985 = vmatprep.subr.mxu0 0.0
    %1986 = vmatpush1.msra.mxu0 %v1928
    %1987 = vmatprep.subr.mxu0 0.0
    %1988 = vmatpush1.msra.mxu0 %v1927
    %1989 = vmatprep.subr.mxu0 0.0
    %1990 = vmatpush2.msra.mxu0 0.0
    %1991 = vmatprep.subr.mxu0 0.0
    %1992 = vmatpush2.msra.mxu0 0.0
    %1993 = vmatprep.subr.mxu0 0.0
    %1994 = vmatpush2.msra.mxu0 0.0
    %1995 = vmatprep.subr.mxu0 0.0
    %1996 = vmatpush2.msra.mxu0 0.0
    %1997 = vmatprep.subr.mxu0 0.0
    %1998 = vmatpush2.msra.mxu0 0.0
    %1999 = vmatprep.subr.mxu0 0.0
    %2000 = vmatpush2.msra.mxu0 0.0
    %2001 = vmatprep.subr.mxu0 0.0
    %2002 = vmatpush2.msra.mxu0 0.0
    %2003 = vmatprep.subr.mxu0 0.0
    %2004 = vmatpush2.msra.mxu0 0.0
    %2005 = vmatprep.subr.mxu0 0.0
    %2006 = vmatpush2.msra.mxu0 0.0
    %2007 = vmatprep.subr.mxu0 0.0
    %2008 = vmatpush2.msra.mxu0 0.0
    %2009 = vmatprep.subr.mxu0 0.0
    %2010 = vmatpush2.msra.mxu0 0.0
    %2011 = vmatprep.subr.mxu0 0.0
    %2012 = vmatpush2.msra.mxu0 0.0
    %2013 = vmatprep.subr.mxu0 0.0
    %2014 = vmatpush2.msra.mxu0 0.0
    %2015 = vmatprep.subr.mxu0 0.0
    %2016 = vmatpush2.msra.mxu0 0.0
    %2017 = vmatprep.subr.mxu0 0.0
    %2018 = vmatpush2.msra.mxu0 0.0
    %2019 = vmatprep.subr.mxu0 0.0
    %2020 = vmatpush2.msra.mxu0 0.0
    %2021 = vmatprep.mubr.f32.mxu0 0.0
    %2022 = vmatmul.mubr.f32.gmra.mxu0 %v1937
    %v2023 = vpop.f32.mrf.mxu0
    %v2024 = vadd.f32 %v1935, %v2023
    %v2025 = vpop.f32.mrf.mxu0
    %2026 = vmatprep.mubr.f32.mxu0 0.0
    %2027 = vmatmul.mubr.f32.gmra.mxu0 %v1940
    %v2028 = vpop.f32.mrf.mxu0
    %v2029 = vadd.f32 %v1935, %v2028
    %v2030 = vpop.f32.mrf.mxu0
    %2031 = vmatprep.mubr.f32.mxu0 0.0
    %2032 = vmatmul.mubr.f32.gmra.mxu0 %v1943
    %v2033 = vpop.f32.mrf.mxu0
    %v2034 = vadd.f32 %v1935, %v2033
    %v2035 = vpop.f32.mrf.mxu0
    %2036 = vmatprep.mubr.f32.mxu0 0.0
    %2037 = vmatmul.mubr.f32.gmra.mxu0 %v1946
    %v2038 = vpop.f32.mrf.mxu0
    %v2039 = vadd.f32 %v1935, %v2038
    %v2040 = vpop.f32.mrf.mxu0
    %2041 = vmatprep.mubr.f32.mxu0 0.0
    %2042 = vmatmul.mubr.f32.gmra.mxu0 %v1949
    %v2043 = vpop.f32.mrf.mxu0
    %v2044 = vadd.f32 %v1935, %v2043
    %v2045 = vpop.f32.mrf.mxu0
    %2046 = vmatprep.mubr.f32.mxu0 0.0
    %2047 = vmatmul.mubr.f32.gmra.mxu0 %v1952
    %v2048 = vpop.f32.mrf.mxu0
    %v2049 = vadd.f32 %v1935, %v2048
    %v2050 = vpop.f32.mrf.mxu0
    %2051 = vmatprep.mubr.f32.mxu0 0.0
    %2052 = vmatmul.mubr.f32.gmra.mxu0 %v1955
    %v2053 = vpop.f32.mrf.mxu0
    %v2054 = vadd.f32 %v1935, %v2053
    %v2055 = vpop.f32.mrf.mxu0
    %2056 = vdwg.mxu0
    %v2057 = vmul.f32 %v2024, 0.5
    %v2058 = vmul.f32 %v2029, 0.5
    %v2059 = vmul.f32 %v2034, 0.5
    %v2060 = vmul.f32 %v2039, 0.5
    %v2061 = vmul.f32 %v2044, 0.5
    %v2062 = vmul.f32 %v2049, 0.5
    %v2063 = vmul.f32 %v2054, 0.5
    %v2064 = vmul.f32 %v2024, 0.70710677
    %v2065 = vmul.f32 %v2029, 0.70710677
    %v2066 = vmul.f32 %v2034, 0.70710677
    %v2067 = vmul.f32 %v2039, 0.70710677
    %v2068 = vmul.f32 %v2044, 0.70710677
    %v2069 = vmul.f32 %v2049, 0.70710677
    %v2070 = vmul.f32 %v2054, 0.70710677
    %v2071 = vand.u32 2147483647, %v2064
    %v2072 = vand.u32 2147483647, %v2065
    %v2073 = vand.u32 2147483647, %v2066
    %v2074 = vand.u32 2147483647, %v2067
    %v2075 = vand.u32 2147483647, %v2068
    %v2076 = vand.u32 2147483647, %v2069
    %v2077 = vand.u32 2147483647, %v2070
    %v2078 = vmul.f32 %v2071, 0.3275911
    %v2079 = vmul.f32 %v2072, 0.3275911
    %v2080 = vmul.f32 %v2073, 0.3275911
    %v2081 = vmul.f32 %v2074, 0.3275911
    %v2082 = vmul.f32 %v2075, 0.3275911
    %v2083 = vmul.f32 %v2076, 0.3275911
    %v2084 = vmul.f32 %v2077, 0.3275911
    %v2085 = vadd.f32 %v2078, 1.0
    %v2086 = vadd.f32 %v2079, 1.0
    %v2087 = vadd.f32 %v2080, 1.0
    %v2088 = vadd.f32 %v2081, 1.0
    %v2089 = vadd.f32 %v2082, 1.0
    %v2090 = vadd.f32 %v2083, 1.0
    %v2091 = vadd.f32 %v2084, 1.0
    %v2092 = vrcp.pop %v2085
    %v2093 = vmul.f32 1.0, %v2092
    %v2094 = vrcp.pop %v2086
    %v2095 = vmul.f32 1.0, %v2094
    %v2096 = vrcp.pop %v2087
    %v2097 = vmul.f32 1.0, %v2096
    %v2098 = vrcp.pop %v2088
    %v2099 = vmul.f32 1.0, %v2098
    %v2100 = vrcp.pop %v2089
    %v2101 = vmul.f32 1.0, %v2100
    %v2102 = vrcp.pop %v2090
    %v2103 = vmul.f32 1.0, %v2102
    %v2104 = vrcp.pop %v2091
    %v2105 = vmul.f32 1.0, %v2104
    %v2106 = vmul.f32 %v2093, 1.0614054
    %v2107 = vmul.f32 %v2095, 1.0614054
    %v2108 = vmul.f32 %v2097, 1.0614054
    %v2109 = vmul.f32 %v2099, 1.0614054
    %v2110 = vmul.f32 %v2101, 1.0614054
    %v2111 = vmul.f32 %v2103, 1.0614054
    %v2112 = vmul.f32 %v2105, 1.0614054
    %v2113 = vadd.f32 %v2106, -1.4531521
    %v2114 = vadd.f32 %v2107, -1.4531521
    %v2115 = vadd.f32 %v2108, -1.4531521
    %v2116 = vadd.f32 %v2109, -1.4531521
    %v2117 = vadd.f32 %v2110, -1.4531521
    %v2118 = vadd.f32 %v2111, -1.4531521
    %v2119 = vadd.f32 %v2112, -1.4531521
    %v2120 = vmul.f32 %v2113, %v2093
    %v2121 = vmul.f32 %v2114, %v2095
    %v2122 = vmul.f32 %v2115, %v2097
    %v2123 = vmul.f32 %v2116, %v2099
    %v2124 = vmul.f32 %v2117, %v2101
    %v2125 = vmul.f32 %v2118, %v2103
    %v2126 = vmul.f32 %v2119, %v2105
    %v2127 = vadd.f32 %v2120, 1.4214138
    %v2128 = vadd.f32 %v2121, 1.4214138
    %v2129 = vadd.f32 %v2122, 1.4214138
    %v2130 = vadd.f32 %v2123, 1.4214138
    %v2131 = vadd.f32 %v2124, 1.4214138
    %v2132 = vadd.f32 %v2125, 1.4214138
    %v2133 = vadd.f32 %v2126, 1.4214138
    %v2134 = vmul.f32 %v2127, %v2093
    %v2135 = vmul.f32 %v2128, %v2095
    %v2136 = vmul.f32 %v2129, %v2097
    %v2137 = vmul.f32 %v2130, %v2099
    %v2138 = vmul.f32 %v2131, %v2101
    %v2139 = vmul.f32 %v2132, %v2103
    %v2140 = vmul.f32 %v2133, %v2105
    %v2141 = vadd.f32 %v2134, -0.28449672
    %v2142 = vadd.f32 %v2135, -0.28449672
    %v2143 = vadd.f32 %v2136, -0.28449672
    %v2144 = vadd.f32 %v2137, -0.28449672
    %v2145 = vadd.f32 %v2138, -0.28449672
    %v2146 = vadd.f32 %v2139, -0.28449672
    %v2147 = vadd.f32 %v2140, -0.28449672
    %v2148 = vmul.f32 %v2141, %v2093
    %v2149 = vmul.f32 %v2142, %v2095
    %v2150 = vmul.f32 %v2143, %v2097
    %v2151 = vmul.f32 %v2144, %v2099
    %v2152 = vmul.f32 %v2145, %v2101
    %v2153 = vmul.f32 %v2146, %v2103
    %v2154 = vmul.f32 %v2147, %v2105
    %v2155 = vadd.f32 %v2148, 0.2548296
    %v2156 = vadd.f32 %v2149, 0.2548296
    %v2157 = vadd.f32 %v2150, 0.2548296
    %v2158 = vadd.f32 %v2151, 0.2548296
    %v2159 = vadd.f32 %v2152, 0.2548296
    %v2160 = vadd.f32 %v2153, 0.2548296
    %v2161 = vadd.f32 %v2154, 0.2548296
    %v2162 = vmul.f32 %v2155, %v2093
    %v2163 = vmul.f32 %v2156, %v2095
    %v2164 = vmul.f32 %v2157, %v2097
    %v2165 = vmul.f32 %v2158, %v2099
    %v2166 = vmul.f32 %v2159, %v2101
    %v2167 = vmul.f32 %v2160, %v2103
    %v2168 = vmul.f32 %v2161, %v2105
    %v2169 = vsub.f32 0.0, %v2071
    %v2170 = vsub.f32 0.0, %v2072
    %v2171 = vsub.f32 0.0, %v2073
    %v2172 = vsub.f32 0.0, %v2074
    %v2173 = vsub.f32 0.0, %v2075
    %v2174 = vsub.f32 0.0, %v2076
    %v2175 = vsub.f32 0.0, %v2077
    %v2176 = vmul.f32 %v2169, %v2071
    %v2177 = vmul.f32 %v2170, %v2072
    %v2178 = vmul.f32 %v2171, %v2073
    %v2179 = vmul.f32 %v2172, %v2074
    %v2180 = vmul.f32 %v2173, %v2075
    %v2181 = vmul.f32 %v2174, %v2076
    %v2182 = vmul.f32 %v2175, %v2077
    %v2183 = vmul.f32 %v2176, 1.442695
    %v2184 = vpow.pop %v2183
    %v2185 = vmul.f32 %v2177, 1.442695
    %v2186 = vpow.pop %v2185
    %v2187 = vmul.f32 %v2178, 1.442695
    %v2188 = vpow.pop %v2187
    %v2189 = vmul.f32 %v2179, 1.442695
    %v2190 = vpow.pop %v2189
    %v2191 = vmul.f32 %v2180, 1.442695
    %v2192 = vpow.pop %v2191
    %v2193 = vmul.f32 %v2181, 1.442695
    %v2194 = vpow.pop %v2193
    %v2195 = vmul.f32 %v2182, 1.442695
    %v2196 = vpow.pop %v2195
    %v2197 = vmul.f32 %v2162, %v2184
    %v2198 = vmul.f32 %v2163, %v2186
    %v2199 = vmul.f32 %v2164, %v2188
    %v2200 = vmul.f32 %v2165, %v2190
    %v2201 = vmul.f32 %v2166, %v2192
    %v2202 = vmul.f32 %v2167, %v2194
    %v2203 = vmul.f32 %v2168, %v2196
    %v2204 = vsub.f32 1.0, %v2197
    %v2205 = vsub.f32 1.0, %v2198
    %v2206 = vsub.f32 1.0, %v2199
    %v2207 = vsub.f32 1.0, %v2200
    %v2208 = vsub.f32 1.0, %v2201
    %v2209 = vsub.f32 1.0, %v2202
    %v2210 = vsub.f32 1.0, %v2203
    %vm2211 = vcmp.lt.f32.partialorder %v2064, 0.0
    %vm2212 = vcmp.lt.f32.partialorder %v2065, 0.0
    %vm2213 = vcmp.lt.f32.partialorder %v2066, 0.0
    %vm2214 = vcmp.lt.f32.partialorder %v2067, 0.0
    %vm2215 = vcmp.lt.f32.partialorder %v2068, 0.0
    %vm2216 = vcmp.lt.f32.partialorder %v2069, 0.0
    %vm2217 = vcmp.lt.f32.partialorder %v2070, 0.0
    %v2218 = vsub.f32 0.0, %v2204
    %v2219 = vsub.f32 0.0, %v2205
    %v2220 = vsub.f32 0.0, %v2206
    %v2221 = vsub.f32 0.0, %v2207
    %v2222 = vsub.f32 0.0, %v2208
    %v2223 = vsub.f32 0.0, %v2209
    %v2224 = vsub.f32 0.0, %v2210
    %v2225 = vsel %vm2211, %v2218, %v2204
    %v2226 = vsel %vm2212, %v2219, %v2205
    %v2227 = vsel %vm2213, %v2220, %v2206
    %v2228 = vsel %vm2214, %v2221, %v2207
    %v2229 = vsel %vm2215, %v2222, %v2208
    %v2230 = vsel %vm2216, %v2223, %v2209
    %v2231 = vsel %vm2217, %v2224, %v2210
    %v2232 = vadd.f32 %v2225, 1.0
    %v2233 = vadd.f32 %v2226, 1.0
    %v2234 = vadd.f32 %v2227, 1.0
    %v2235 = vadd.f32 %v2228, 1.0
    %v2236 = vadd.f32 %v2229, 1.0
    %v2237 = vadd.f32 %v2230, 1.0
    %v2238 = vadd.f32 %v2231, 1.0
    %v2239 = vmul.f32 %v2057, %v2232
    %v2240 = vmul.f32 %v2058, %v2233
    %v2241 = vmul.f32 %v2059, %v2234
    %v2242 = vmul.f32 %v2060, %v2235
    %v2243 = vmul.f32 %v2061, %v2236
    %v2244 = vmul.f32 %v2062, %v2237
    %v2245 = vmul.f32 %v2063, %v2238
    %v2246 = vld [vmem:[%s1 + $0x260] sm:$0xff]
    %v2247 = vld [vmem:[%s1 + $0x268] sm:$0xff]
    %v2248 = vld [vmem:[%s1 + $0x270] sm:$0xff]
    %v2249 = vld [vmem:[%s1 + $0x278] sm:$0xff]
    %v2250 = vld [vmem:[%s1 + $0x280] sm:$0xff]
    %v2251 = vld [vmem:[%s1 + $0x288] sm:$0xff]
    %v2252 = vld [vmem:[%s1 + $0x290] sm:$0xff]
    %v2253 = vld [vmem:[%s1 + $0x298] sm:$0xff]
    %vm2254 = vcmask 523264
    %v2256 = vsel %vm2254, %v2239, 0
    %v2259 = vsel %vm2254, %v2240, 0
    %v2262 = vsel %vm2254, %v2241, 0
    %v2265 = vsel %vm2254, %v2242, 0
    %v2268 = vsel %vm2254, %v2243, 0
    %v2271 = vsel %vm2254, %v2244, 0
    %v2274 = vsel %vm2254, %v2245, 0
    %2276 = vmatprep.subr.mxu0 0.0
    %2277 = vmatpush1.msra.mxu0 0.0
    %2278 = vmatprep.subr.mxu0 0.0
    %2279 = vmatpush1.msra.mxu0 0.0
    %2280 = vmatprep.subr.mxu0 0.0
    %2281 = vmatpush1.msra.mxu0 0.0
    %2282 = vmatprep.subr.mxu0 0.0
    %2283 = vmatpush1.msra.mxu0 0.0
    %2284 = vmatprep.subr.mxu0 0.0
    %2285 = vmatpush1.msra.mxu0 0.0
    %2286 = vmatprep.subr.mxu0 0.0
    %2287 = vmatpush1.msra.mxu0 0.0
    %2288 = vmatprep.subr.mxu0 0.0
    %2289 = vmatpush1.msra.mxu0 0.0
    %2290 = vmatprep.subr.mxu0 0.0
    %2291 = vmatpush1.msra.mxu0 0.0
    %2292 = vmatprep.subr.mxu0 0.0
    %2293 = vmatpush1.msra.mxu0 %v2253
    %2294 = vmatprep.subr.mxu0 0.0
    %2295 = vmatpush1.msra.mxu0 %v2252
    %2296 = vmatprep.subr.mxu0 0.0
    %2297 = vmatpush1.msra.mxu0 %v2251
    %2298 = vmatprep.subr.mxu0 0.0
    %2299 = vmatpush1.msra.mxu0 %v2250
    %2300 = vmatprep.subr.mxu0 0.0
    %2301 = vmatpush1.msra.mxu0 %v2249
    %2302 = vmatprep.subr.mxu0 0.0
    %2303 = vmatpush1.msra.mxu0 %v2248
    %2304 = vmatprep.subr.mxu0 0.0
    %2305 = vmatpush1.msra.mxu0 %v2247
    %2306 = vmatprep.subr.mxu0 0.0
    %2307 = vmatpush1.msra.mxu0 %v2246
    %2308 = vmatprep.subr.mxu0 0.0
    %2309 = vmatpush2.msra.mxu0 0.0
    %2310 = vmatprep.subr.mxu0 0.0
    %2311 = vmatpush2.msra.mxu0 0.0
    %2312 = vmatprep.subr.mxu0 0.0
    %2313 = vmatpush2.msra.mxu0 0.0
    %2314 = vmatprep.subr.mxu0 0.0
    %2315 = vmatpush2.msra.mxu0 0.0
    %2316 = vmatprep.subr.mxu0 0.0
    %2317 = vmatpush2.msra.mxu0 0.0
    %2318 = vmatprep.subr.mxu0 0.0
    %2319 = vmatpush2.msra.mxu0 0.0
    %2320 = vmatprep.subr.mxu0 0.0
    %2321 = vmatpush2.msra.mxu0 0.0
    %2322 = vmatprep.subr.mxu0 0.0
    %2323 = vmatpush2.msra.mxu0 0.0
    %2324 = vmatprep.subr.mxu0 0.0
    %2325 = vmatpush2.msra.mxu0 0.0
    %2326 = vmatprep.subr.mxu0 0.0
    %2327 = vmatpush2.msra.mxu0 0.0
    %2328 = vmatprep.subr.mxu0 0.0
    %2329 = vmatpush2.msra.mxu0 0.0
    %2330 = vmatprep.subr.mxu0 0.0
    %2331 = vmatpush2.msra.mxu0 0.0
    %2332 = vmatprep.subr.mxu0 0.0
    %2333 = vmatpush2.msra.mxu0 0.0
    %2334 = vmatprep.subr.mxu0 0.0
    %2335 = vmatpush2.msra.mxu0 0.0
    %2336 = vmatprep.subr.mxu0 0.0
    %2337 = vmatpush2.msra.mxu0 0.0
    %2338 = vmatprep.subr.mxu0 0.0
    %2339 = vmatpush2.msra.mxu0 0.0
    %2340 = vmatprep.mubr.f32.mxu0 0.0
    %2341 = vmatmul.mubr.f32.gmra.mxu0 %v2256
    %v2342 = vpop.f32.mrf.mxu0
    %v2343 = vadd.f32 0.0, %v2342
    %v2344 = vpop.f32.mrf.mxu0
    %2345 = vmatprep.mubr.f32.mxu0 0.0
    %2346 = vmatmul.mubr.f32.gmra.mxu0 %v2259
    %v2347 = vpop.f32.mrf.mxu0
    %v2348 = vadd.f32 0.0, %v2347
    %v2349 = vpop.f32.mrf.mxu0
    %2350 = vmatprep.mubr.f32.mxu0 0.0
    %2351 = vmatmul.mubr.f32.gmra.mxu0 %v2262
    %v2352 = vpop.f32.mrf.mxu0
    %v2353 = vadd.f32 0.0, %v2352
    %v2354 = vpop.f32.mrf.mxu0
    %2355 = vmatprep.mubr.f32.mxu0 0.0
    %2356 = vmatmul.mubr.f32.gmra.mxu0 %v2265
    %v2357 = vpop.f32.mrf.mxu0
    %v2358 = vadd.f32 0.0, %v2357
    %v2359 = vpop.f32.mrf.mxu0
    %2360 = vmatprep.mubr.f32.mxu0 0.0
    %2361 = vmatmul.mubr.f32.gmra.mxu0 %v2268
    %v2362 = vpop.f32.mrf.mxu0
    %v2363 = vadd.f32 0.0, %v2362
    %v2364 = vpop.f32.mrf.mxu0
    %2365 = vmatprep.mubr.f32.mxu0 0.0
    %2366 = vmatmul.mubr.f32.gmra.mxu0 %v2271
    %v2367 = vpop.f32.mrf.mxu0
    %v2368 = vadd.f32 0.0, %v2367
    %v2369 = vpop.f32.mrf.mxu0
    %2370 = vmatprep.mubr.f32.mxu0 0.0
    %2371 = vmatmul.mubr.f32.gmra.mxu0 %v2274
    %v2372 = vpop.f32.mrf.mxu0
    %v2373 = vadd.f32 0.0, %v2372
    %v2374 = vpop.f32.mrf.mxu0
    %2375 = vdwg.mxu0
    %v2376 = vadd.f32 %v1815, %v2343
    %v2377 = vadd.f32 %v1816, %v2348
    %v2378 = vadd.f32 %v1817, %v2353
    %v2379 = vadd.f32 %v1818, %v2358
    %v2380 = vadd.f32 %v1819, %v2363
    %v2381 = vadd.f32 %v1820, %v2368
    %v2382 = vadd.f32 %v1821, %v2373
    %v2383 = vld [vmem:[%s1 + $0x2a0] sm:$0x1]
    %v2384 = vlaneseq
    %v2385 = vshrl.u32 %v2384, 7
    %v2386 = vsub.s32 0, %v2385
    %v2387 = vrot.slane %v2383, %v2386
    %v2388 = vadd.f32 %v2376, %v2387
    %v2389 = vadd.f32 %v2377, %v2387
    %v2390 = vadd.f32 %v2378, %v2387
    %v2391 = vadd.f32 %v2379, %v2387
    %v2392 = vadd.f32 %v2380, %v2387
    %v2393 = vadd.f32 %v2381, %v2387
    %v2394 = vadd.f32 %v2382, %v2387
    %v2395 = vld [vmem:[%s1 + $0x2a8] sm:$0x1]
    %v2396 = vld [vmem:[%s1 + $0x2b0] sm:$0x1]
    %v2397 = vsel %vm455, %v2388, 0.0
    %2398 = vadd.xlane.f32.xlu0 %v2397
    %v2399 = vpop.xlane.xlu0 %2398
    %v2400 = vsel %vm455, %v2389, 0.0
    %2401 = vadd.xlane.f32.xlu0 %v2400
    %v2402 = vpop.xlane.xlu0 %2401
    %v2403 = vsel %vm455, %v2390, 0.0
    %2404 = vadd.xlane.f32.xlu0 %v2403
    %v2405 = vpop.xlane.xlu0 %2404
    %v2406 = vsel %vm455, %v2391, 0.0
    %2407 = vadd.xlane.f32.xlu0 %v2406
    %v2408 = vpop.xlane.xlu0 %2407
    %v2409 = vsel %vm455, %v2392, 0.0
    %2410 = vadd.xlane.f32.xlu0 %v2409
    %v2411 = vpop.xlane.xlu0 %2410
    %v2412 = vsel %vm455, %v2393, 0.0
    %2413 = vadd.xlane.f32.xlu0 %v2412
    %v2414 = vpop.xlane.xlu0 %2413
    %v2415 = vsel %vm920, %v2394, 0.0
    %2416 = vadd.xlane.f32.xlu0 %v2415
    %v2417 = vpop.xlane.xlu0 %2416
    %v2418 = vmul.f32 %v2399, %v924
    %v2419 = vmul.f32 %v2402, %v924
    %v2420 = vmul.f32 %v2405, %v924
    %v2421 = vmul.f32 %v2408, %v924
    %v2422 = vmul.f32 %v2411, %v924
    %v2423 = vmul.f32 %v2414, %v924
    %v2424 = vmul.f32 %v2417, %v924
    %v2425 = vsub.f32 %v2388, %v2418
    %v2426 = vsub.f32 %v2389, %v2419
    %v2427 = vsub.f32 %v2390, %v2420
    %v2428 = vsub.f32 %v2391, %v2421
    %v2429 = vsub.f32 %v2392, %v2422
    %v2430 = vsub.f32 %v2393, %v2423
    %v2431 = vsub.f32 %v2394, %v2424
    %v2432 = vmul.f32 %v2425, %v2425
    %v2433 = vmul.f32 %v2426, %v2426
    %v2434 = vmul.f32 %v2427, %v2427
    %v2435 = vmul.f32 %v2428, %v2428
    %v2436 = vmul.f32 %v2429, %v2429
    %v2437 = vmul.f32 %v2430, %v2430
    %v2438 = vmul.f32 %v2431, %v2431
    %v2439 = vsel %vm455, %v2432, 0.0
    %2440 = vadd.xlane.f32.xlu0 %v2439
    %v2441 = vpop.xlane.xlu0 %2440
    %v2442 = vsel %vm455, %v2433, 0.0
    %2443 = vadd.xlane.f32.xlu0 %v2442
    %v2444 = vpop.xlane.xlu0 %2443
    %v2445 = vsel %vm455, %v2434, 0.0
    %2446 = vadd.xlane.f32.xlu0 %v2445
    %v2447 = vpop.xlane.xlu0 %2446
    %v2448 = vsel %vm455, %v2435, 0.0
    %2449 = vadd.xlane.f32.xlu0 %v2448
    %v2450 = vpop.xlane.xlu0 %2449
    %v2451 = vsel %vm455, %v2436, 0.0
    %2452 = vadd.xlane.f32.xlu0 %v2451
    %v2453 = vpop.xlane.xlu0 %2452
    %v2454 = vsel %vm455, %v2437, 0.0
    %2455 = vadd.xlane.f32.xlu0 %v2454
    %v2456 = vpop.xlane.xlu0 %2455
    %v2457 = vsel %vm920, %v2438, 0.0
    %2458 = vadd.xlane.f32.xlu0 %v2457
    %v2459 = vpop.xlane.xlu0 %2458
    %v2460 = vmul.f32 %v2441, %v924
    %v2461 = vmul.f32 %v2444, %v924
    %v2462 = vmul.f32 %v2447, %v924
    %v2463 = vmul.f32 %v2450, %v924
    %v2464 = vmul.f32 %v2453, %v924
    %v2465 = vmul.f32 %v2456, %v924
    %v2466 = vmul.f32 %v2459, %v924
    %v2467 = vadd.f32 %v2460, 1e-05
    %v2468 = vadd.f32 %v2461, 1e-05
    %v2469 = vadd.f32 %v2462, 1e-05
    %v2470 = vadd.f32 %v2463, 1e-05
    %v2471 = vadd.f32 %v2464, 1e-05
    %v2472 = vadd.f32 %v2465, 1e-05
    %v2473 = vadd.f32 %v2466, 1e-05
    %v2474 = vrsqrt.pop %v2467
    %v2475 = vrsqrt.pop %v2468
    %v2476 = vrsqrt.pop %v2469
    %v2477 = vrsqrt.pop %v2470
    %v2478 = vrsqrt.pop %v2471
    %v2479 = vrsqrt.pop %v2472
    %v2480 = vrsqrt.pop %v2473
    %v2481 = vmul.f32 %v2425, %v2474
    %v2482 = vmul.f32 %v2426, %v2475
    %v2483 = vmul.f32 %v2427, %v2476
    %v2484 = vmul.f32 %v2428, %v2477
    %v2485 = vmul.f32 %v2429, %v2478
    %v2486 = vmul.f32 %v2430, %v2479
    %v2487 = vmul.f32 %v2431, %v2480
    %v2488 = vlaneseq
    %v2489 = vshrl.u32 %v2488, 7
    %v2490 = vsub.s32 0, %v2489
    %v2491 = vrot.slane %v2395, %v2490
    %v2492 = vmul.f32 %v2481, %v2491
    %v2493 = vmul.f32 %v2482, %v2491
    %v2494 = vmul.f32 %v2483, %v2491
    %v2495 = vmul.f32 %v2484, %v2491
    %v2496 = vmul.f32 %v2485, %v2491
    %v2497 = vmul.f32 %v2486, %v2491
    %v2498 = vmul.f32 %v2487, %v2491
    %v2499 = vlaneseq
    %v2500 = vshrl.u32 %v2499, 7
    %v2501 = vsub.s32 0, %v2500
    %v2502 = vrot.slane %v2396, %v2501
    %v2503 = vadd.f32 %v2492, %v2502
    %v2504 = vadd.f32 %v2493, %v2502
    %v2505 = vadd.f32 %v2494, %v2502
    %v2506 = vadd.f32 %v2495, %v2502
    %v2507 = vadd.f32 %v2496, %v2502
    %v2508 = vadd.f32 %v2497, %v2502
    %v2509 = vadd.f32 %v2498, %v2502
    %v2510 = vld [vmem:[%s1 + $0x2b8] sm:$0xff]
    %v2511 = vld [vmem:[%s1 + $0x2c0] sm:$0xff]
    %v2512 = vld [vmem:[%s1 + $0x2c8] sm:$0xff]
    %v2513 = vld [vmem:[%s1 + $0x2d0] sm:$0xff]
    %v2514 = vld [vmem:[%s1 + $0x2d8] sm:$0xff]
    %v2515 = vld [vmem:[%s1 + $0x2e0] sm:$0xff]
    %v2516 = vld [vmem:[%s1 + $0x2e8] sm:$0xff]
    %v2517 = vld [vmem:[%s1 + $0x2f0] sm:$0xff]
    %v2518 = vld [vmem:[%s1 + $0x2f8] sm:$0xff]
    %v2519 = vld [vmem:[%s1 + $0x300] sm:$0xff]
    %v2520 = vld [vmem:[%s1 + $0x308] sm:$0xff]
    %v2521 = vld [vmem:[%s1 + $0x310] sm:$0xff]
    %v2522 = vld [vmem:[%s1 + $0x318] sm:$0xf]
    %v2523 = vld [vmem:[%s1 + $0x320] sm:$0xff]
    %v2524 = vld [vmem:[%s1 + $0x328] sm:$0xff]
    %v2525 = vld [vmem:[%s1 + $0x330] sm:$0xff]
    %v2526 = vld [vmem:[%s1 + $0x338] sm:$0xff]
    %v2527 = vld [vmem:[%s1 + $0x340] sm:$0xff]
    %v2528 = vld [vmem:[%s1 + $0x348] sm:$0xff]
    %v2529 = vld [vmem:[%s1 + $0x350] sm:$0xff]
    %v2530 = vld [vmem:[%s1 + $0x358] sm:$0xff]
    %v2531 = vld [vmem:[%s1 + $0x360] sm:$0xff]
    %v2532 = vld [vmem:[%s1 + $0x368] sm:$0xff]
    %v2533 = vld [vmem:[%s1 + $0x370] sm:$0xff]
    %v2534 = vld [vmem:[%s1 + $0x378] sm:$0xff]
    %v2535 = vld [vmem:[%s1 + $0x380] sm:$0xf]
    %2537 = vset.pattern.permute.xlu0 0
    %2538 = vperm.xlu0 %2537, %v2523
    %v2539 = vpop.permute.xlu0 %2538
    %2542 = vset.pattern.permute.xlu0 0
    %2543 = vperm.xlu0 %2542, %v2524
    %v2544 = vpop.permute.xlu0 %2543
    %2547 = vset.pattern.permute.xlu0 0
    %2548 = vperm.xlu0 %2547, %v2525
    %v2549 = vpop.permute.xlu0 %2548
    %2552 = vset.pattern.permute.xlu0 0
    %2553 = vperm.xlu0 %2552, %v2526
    %v2554 = vpop.permute.xlu0 %2553
    %2557 = vset.pattern.permute.xlu0 0
    %2558 = vperm.xlu0 %2557, %v2527
    %v2559 = vpop.permute.xlu0 %2558
    %2562 = vset.pattern.permute.xlu0 0
    %2563 = vperm.xlu0 %2562, %v2528
    %v2564 = vpop.permute.xlu0 %2563
    %2567 = vset.pattern.permute.xlu0 0
    %2568 = vperm.xlu0 %2567, %v2529
    %v2569 = vpop.permute.xlu0 %2568
    %2572 = vset.pattern.permute.xlu0 0
    %2573 = vperm.xlu0 %2572, %v2530
    %v2574 = vpop.permute.xlu0 %2573
    %2577 = vset.pattern.permute.xlu0 0
    %2578 = vperm.xlu0 %2577, %v2531
    %v2579 = vpop.permute.xlu0 %2578
    %2582 = vset.pattern.permute.xlu0 0
    %2583 = vperm.xlu0 %2582, %v2532
    %v2584 = vpop.permute.xlu0 %2583
    %2587 = vset.pattern.permute.xlu0 0
    %2588 = vperm.xlu0 %2587, %v2533
    %v2589 = vpop.permute.xlu0 %2588
    %2592 = vset.pattern.permute.xlu0 0
    %2593 = vperm.xlu0 %2592, %v2534
    %v2594 = vpop.permute.xlu0 %2593
    %2597 = vset.pattern.permute.xlu0 0
    %2598 = vperm.xlu0 %2597, %v2535
    %v2599 = vpop.permute.xlu0 %2598
    %v2602 = vsel %vm1108, %v2510, 0
    %v2605 = vsel %vm1108, %v2511, 0
    %v2608 = vsel %vm1108, %v2512, 0
    %v2611 = vsel %vm1108, %v2513, 0
    %v2614 = vsel %vm1108, %v2514, 0
    %v2617 = vsel %vm1108, %v2515, 0
    %v2620 = vsel %vm1108, %v2516, 0
    %v2623 = vsel %vm1108, %v2517, 0
    %v2626 = vsel %vm1108, %v2518, 0
    %v2629 = vsel %vm1108, %v2519, 0
    %v2632 = vsel %vm1108, %v2520, 0
    %v2635 = vsel %vm1108, %v2521, 0
    %v2638 = vsel %vm1108, %v2522, 0
    %v2641 = vsel %vm1148, %v2509, 0
    %2643 = vmatprep.subr.mxu0 0.0
    %2644 = vmatpush1.msra.mxu0 0.0
    %2645 = vmatprep.subr.mxu0 0.0
    %2646 = vmatpush1.msra.mxu0 0.0
    %2647 = vmatprep.subr.mxu0 0.0
    %2648 = vmatpush1.msra.mxu0 0.0
    %2649 = vmatprep.subr.mxu0 0.0
    %2650 = vmatpush1.msra.mxu0 0.0
    %2651 = vmatprep.subr.mxu0 0.0
    %2652 = vmatpush1.msra.mxu0 0.0
    %2653 = vmatprep.subr.mxu0 0.0
    %2654 = vmatpush1.msra.mxu0 0.0
    %2655 = vmatprep.subr.mxu0 0.0
    %2656 = vmatpush1.msra.mxu0 0.0
    %2657 = vmatprep.subr.mxu0 0.0
    %2658 = vmatpush1.msra.mxu0 0.0
    %2659 = vmatprep.subr.mxu0 0.0
    %2660 = vmatpush1.msra.mxu0 0.0
    %2661 = vmatprep.subr.mxu0 0.0
    %2662 = vmatpush1.msra.mxu0 %v2641
    %2663 = vmatprep.subr.mxu0 0.0
    %2664 = vmatpush1.msra.mxu0 %v2508
    %2665 = vmatprep.subr.mxu0 0.0
    %2666 = vmatpush1.msra.mxu0 %v2507
    %2667 = vmatprep.subr.mxu0 0.0
    %2668 = vmatpush1.msra.mxu0 %v2506
    %2669 = vmatprep.subr.mxu0 0.0
    %2670 = vmatpush1.msra.mxu0 %v2505
    %2671 = vmatprep.subr.mxu0 0.0
    %2672 = vmatpush1.msra.mxu0 %v2504
    %2673 = vmatprep.subr.mxu0 0.0
    %2674 = vmatpush1.msra.mxu0 %v2503
    %2675 = vmatprep.subr.mxu0 0.0
    %2676 = vmatpush2.msra.mxu0 0.0
    %2677 = vmatprep.subr.mxu0 0.0
    %2678 = vmatpush2.msra.mxu0 0.0
    %2679 = vmatprep.subr.mxu0 0.0
    %2680 = vmatpush2.msra.mxu0 0.0
    %2681 = vmatprep.subr.mxu0 0.0
    %2682 = vmatpush2.msra.mxu0 0.0
    %2683 = vmatprep.subr.mxu0 0.0
    %2684 = vmatpush2.msra.mxu0 0.0
    %2685 = vmatprep.subr.mxu0 0.0
    %2686 = vmatpush2.msra.mxu0 0.0
    %2687 = vmatprep.subr.mxu0 0.0
    %2688 = vmatpush2.msra.mxu0 0.0
    %2689 = vmatprep.subr.mxu0 0.0
    %2690 = vmatpush2.msra.mxu0 0.0
    %2691 = vmatprep.subr.mxu0 0.0
    %2692 = vmatpush2.msra.mxu0 0.0
    %2693 = vmatprep.subr.mxu0 0.0
    %2694 = vmatpush2.msra.mxu0 0.0
    %2695 = vmatprep.subr.mxu0 0.0
    %2696 = vmatpush2.msra.mxu0 0.0
    %2697 = vmatprep.subr.mxu0 0.0
    %2698 = vmatpush2.msra.mxu0 0.0
    %2699 = vmatprep.subr.mxu0 0.0
    %2700 = vmatpush2.msra.mxu0 0.0
    %2701 = vmatprep.subr.mxu0 0.0
    %2702 = vmatpush2.msra.mxu0 0.0
    %2703 = vmatprep.subr.mxu0 0.0
    %2704 = vmatpush2.msra.mxu0 0.0
    %2705 = vmatprep.subr.mxu0 0.0
    %2706 = vmatpush2.msra.mxu0 0.0
    %2707 = vmatprep.mubr.f32.mxu0 0.0
    %2708 = vmatmul.mubr.f32.gmra.mxu0 %v2602
    %v2709 = vpop.f32.mrf.mxu0
    %v2710 = vadd.f32 %v2539, %v2709
    %v2711 = vpop.f32.mrf.mxu0
    %2712 = vmatprep.mubr.f32.mxu0 0.0
    %2713 = vmatmul.mubr.f32.gmra.mxu0 %v2605
    %v2714 = vpop.f32.mrf.mxu0
    %v2715 = vadd.f32 %v2544, %v2714
    %v2716 = vpop.f32.mrf.mxu0
    %2717 = vmatprep.mubr.f32.mxu0 0.0
    %2718 = vmatmul.mubr.f32.gmra.mxu0 %v2608
    %v2719 = vpop.f32.mrf.mxu0
    %v2720 = vadd.f32 %v2549, %v2719
    %v2721 = vpop.f32.mrf.mxu0
    %2722 = vmatprep.mubr.f32.mxu0 0.0
    %2723 = vmatmul.mubr.f32.gmra.mxu0 %v2611
    %v2724 = vpop.f32.mrf.mxu0
    %v2725 = vadd.f32 %v2554, %v2724
    %v2726 = vpop.f32.mrf.mxu0
    %2727 = vmatprep.mubr.f32.mxu0 0.0
    %2728 = vmatmul.mubr.f32.gmra.mxu0 %v2614
    %v2729 = vpop.f32.mrf.mxu0
    %v2730 = vadd.f32 %v2559, %v2729
    %v2731 = vpop.f32.mrf.mxu0
    %2732 = vmatprep.mubr.f32.mxu0 0.0
    %2733 = vmatmul.mubr.f32.gmra.mxu0 %v2617
    %v2734 = vpop.f32.mrf.mxu0
    %v2735 = vadd.f32 %v2564, %v2734
    %v2736 = vpop.f32.mrf.mxu0
    %2737 = vmatprep.mubr.f32.mxu0 0.0
    %2738 = vmatmul.mubr.f32.gmra.mxu0 %v2620
    %v2739 = vpop.f32.mrf.mxu0
    %v2740 = vadd.f32 %v2569, %v2739
    %v2741 = vpop.f32.mrf.mxu0
    %2742 = vmatprep.mubr.f32.mxu0 0.0
    %2743 = vmatmul.mubr.f32.gmra.mxu0 %v2623
    %v2744 = vpop.f32.mrf.mxu0
    %v2745 = vadd.f32 %v2574, %v2744
    %v2746 = vpop.f32.mrf.mxu0
    %2747 = vmatprep.mubr.f32.mxu0 0.0
    %2748 = vmatmul.mubr.f32.gmra.mxu0 %v2626
    %v2749 = vpop.f32.mrf.mxu0
    %v2750 = vadd.f32 %v2579, %v2749
    %v2751 = vpop.f32.mrf.mxu0
    %2752 = vmatprep.mubr.f32.mxu0 0.0
    %2753 = vmatmul.mubr.f32.gmra.mxu0 %v2629
    %v2754 = vpop.f32.mrf.mxu0
    %v2755 = vadd.f32 %v2584, %v2754
    %v2756 = vpop.f32.mrf.mxu0
    %2757 = vmatprep.mubr.f32.mxu0 0.0
    %2758 = vmatmul.mubr.f32.gmra.mxu0 %v2632
    %v2759 = vpop.f32.mrf.mxu0
    %v2760 = vadd.f32 %v2589, %v2759
    %v2761 = vpop.f32.mrf.mxu0
    %2762 = vmatprep.mubr.f32.mxu0 0.0
    %2763 = vmatmul.mubr.f32.gmra.mxu0 %v2635
    %v2764 = vpop.f32.mrf.mxu0
    %v2765 = vadd.f32 %v2594, %v2764
    %v2766 = vpop.f32.mrf.mxu0
    %2767 = vmatprep.mubr.f32.mxu0 0.0
    %2768 = vmatmul.mubr.f32.gmra.mxu0 %v2638
    %v2769 = vpop.f32.mrf.mxu0
    %v2770 = vadd.f32 %v2599, %v2769
    %v2771 = vpop.f32.mrf.mxu0
    %2772 = vdwg.mxu0
    %v2773 = vmul.f32 %v2710, 0.5
    %v2774 = vmul.f32 %v2715, 0.5
    %v2775 = vmul.f32 %v2720, 0.5
    %v2776 = vmul.f32 %v2725, 0.5
    %v2777 = vmul.f32 %v2730, 0.5
    %v2778 = vmul.f32 %v2735, 0.5
    %v2779 = vmul.f32 %v2740, 0.5
    %v2780 = vmul.f32 %v2745, 0.5
    %v2781 = vmul.f32 %v2750, 0.5
    %v2782 = vmul.f32 %v2755, 0.5
    %v2783 = vmul.f32 %v2760, 0.5
    %v2784 = vmul.f32 %v2765, 0.5
    %v2785 = vmul.f32 %v2770, 0.5
    %v2786 = vmul.f32 %v2710, 0.70710677
    %v2787 = vmul.f32 %v2715, 0.70710677
    %v2788 = vmul.f32 %v2720, 0.70710677
    %v2789 = vmul.f32 %v2725, 0.70710677
    %v2790 = vmul.f32 %v2730, 0.70710677
    %v2791 = vmul.f32 %v2735, 0.70710677
    %v2792 = vmul.f32 %v2740, 0.70710677
    %v2793 = vmul.f32 %v2745, 0.70710677
    %v2794 = vmul.f32 %v2750, 0.70710677
    %v2795 = vmul.f32 %v2755, 0.70710677
    %v2796 = vmul.f32 %v2760, 0.70710677
    %v2797 = vmul.f32 %v2765, 0.70710677
    %v2798 = vmul.f32 %v2770, 0.70710677
    %v2799 = vand.u32 2147483647, %v2786
    %v2800 = vand.u32 2147483647, %v2787
    %v2801 = vand.u32 2147483647, %v2788
    %v2802 = vand.u32 2147483647, %v2789
    %v2803 = vand.u32 2147483647, %v2790
    %v2804 = vand.u32 2147483647, %v2791
    %v2805 = vand.u32 2147483647, %v2792
    %v2806 = vand.u32 2147483647, %v2793
    %v2807 = vand.u32 2147483647, %v2794
    %v2808 = vand.u32 2147483647, %v2795
    %v2809 = vand.u32 2147483647, %v2796
    %v2810 = vand.u32 2147483647, %v2797
    %v2811 = vand.u32 2147483647, %v2798
    %v2812 = vmul.f32 %v2799, 0.3275911
    %v2813 = vmul.f32 %v2800, 0.3275911
    %v2814 = vmul.f32 %v2801, 0.3275911
    %v2815 = vmul.f32 %v2802, 0.3275911
    %v2816 = vmul.f32 %v2803, 0.3275911
    %v2817 = vmul.f32 %v2804, 0.3275911
    %v2818 = vmul.f32 %v2805, 0.3275911
    %v2819 = vmul.f32 %v2806, 0.3275911
    %v2820 = vmul.f32 %v2807, 0.3275911
    %v2821 = vmul.f32 %v2808, 0.3275911
    %v2822 = vmul.f32 %v2809, 0.3275911
    %v2823 = vmul.f32 %v2810, 0.3275911
    %v2824 = vmul.f32 %v2811, 0.3275911
    %v2825 = vadd.f32 %v2812, 1.0
    %v2826 = vadd.f32 %v2813, 1.0
    %v2827 = vadd.f32 %v2814, 1.0
    %v2828 = vadd.f32 %v2815, 1.0
    %v2829 = vadd.f32 %v2816, 1.0
    %v2830 = vadd.f32 %v2817, 1.0
    %v2831 = vadd.f32 %v2818, 1.0
    %v2832 = vadd.f32 %v2819, 1.0
    %v2833 = vadd.f32 %v2820, 1.0
    %v2834 = vadd.f32 %v2821, 1.0
    %v2835 = vadd.f32 %v2822, 1.0
    %v2836 = vadd.f32 %v2823, 1.0
    %v2837 = vadd.f32 %v2824, 1.0
    %v2838 = vrcp.pop %v2825
    %v2839 = vmul.f32 1.0, %v2838
    %v2840 = vrcp.pop %v2826
    %v2841 = vmul.f32 1.0, %v2840
    %v2842 = vrcp.pop %v2827
    %v2843 = vmul.f32 1.0, %v2842
    %v2844 = vrcp.pop %v2828
    %v2845 = vmul.f32 1.0, %v2844
    %v2846 = vrcp.pop %v2829
    %v2847 = vmul.f32 1.0, %v2846
    %v2848 = vrcp.pop %v2830
    %v2849 = vmul.f32 1.0, %v2848
    %v2850 = vrcp.pop %v2831
    %v2851 = vmul.f32 1.0, %v2850
    %v2852 = vrcp.pop %v2832
    %v2853 = vmul.f32 1.0, %v2852
    %v2854 = vrcp.pop %v2833
    %v2855 = vmul.f32 1.0, %v2854
    %v2856 = vrcp.pop %v2834
    %v2857 = vmul.f32 1.0, %v2856
    %v2858 = vrcp.pop %v2835
    %v2859 = vmul.f32 1.0, %v2858
    %v2860 = vrcp.pop %v2836
    %v2861 = vmul.f32 1.0, %v2860
    %v2862 = vrcp.pop %v2837
    %v2863 = vmul.f32 1.0, %v2862
    %v2864 = vmul.f32 %v2839, 1.0614054
    %v2865 = vmul.f32 %v2841, 1.0614054
    %v2866 = vmul.f32 %v2843, 1.0614054
    %v2867 = vmul.f32 %v2845, 1.0614054
    %v2868 = vmul.f32 %v2847, 1.0614054
    %v2869 = vmul.f32 %v2849, 1.0614054
    %v2870 = vmul.f32 %v2851, 1.0614054
    %v2871 = vmul.f32 %v2853, 1.0614054
    %v2872 = vmul.f32 %v2855, 1.0614054
    %v2873 = vmul.f32 %v2857, 1.0614054
    %v2874 = vmul.f32 %v2859, 1.0614054
    %v2875 = vmul.f32 %v2861, 1.0614054
    %v2876 = vmul.f32 %v2863, 1.0614054
    %v2877 = vadd.f32 %v2864, -1.4531521
    %v2878 = vadd.f32 %v2865, -1.4531521
    %v2879 = vadd.f32 %v2866, -1.4531521
    %v2880 = vadd.f32 %v2867, -1.4531521
    %v2881 = vadd.f32 %v2868, -1.4531521
    %v2882 = vadd.f32 %v2869, -1.4531521
    %v2883 = vadd.f32 %v2870, -1.4531521
    %v2884 = vadd.f32 %v2871, -1.4531521
    %v2885 = vadd.f32 %v2872, -1.4531521
    %v2886 = vadd.f32 %v2873, -1.4531521
    %v2887 = vadd.f32 %v2874, -1.4531521
    %v2888 = vadd.f32 %v2875, -1.4531521
    %v2889 = vadd.f32 %v2876, -1.4531521
    %v2890 = vmul.f32 %v2877, %v2839
    %v2891 = vmul.f32 %v2878, %v2841
    %v2892 = vmul.f32 %v2879, %v2843
    %v2893 = vmul.f32 %v2880, %v2845
    %v2894 = vmul.f32 %v2881, %v2847
    %v2895 = vmul.f32 %v2882, %v2849
    %v2896 = vmul.f32 %v2883, %v2851
    %v2897 = vmul.f32 %v2884, %v2853
    %v2898 = vmul.f32 %v2885, %v2855
    %v2899 = vmul.f32 %v2886, %v2857
    %v2900 = vmul.f32 %v2887, %v2859
    %v2901 = vmul.f32 %v2888, %v2861
    %v2902 = vmul.f32 %v2889, %v2863
    %v2903 = vadd.f32 %v2890, 1.4214138
    %v2904 = vadd.f32 %v2891, 1.4214138
    %v2905 = vadd.f32 %v2892, 1.4214138
    %v2906 = vadd.f32 %v2893, 1.4214138
    %v2907 = vadd.f32 %v2894, 1.4214138
    %v2908 = vadd.f32 %v2895, 1.4214138
    %v2909 = vadd.f32 %v2896, 1.4214138
    %v2910 = vadd.f32 %v2897, 1.4214138
    %v2911 = vadd.f32 %v2898, 1.4214138
    %v2912 = vadd.f32 %v2899, 1.4214138
    %v2913 = vadd.f32 %v2900, 1.4214138
    %v2914 = vadd.f32 %v2901, 1.4214138
    %v2915 = vadd.f32 %v2902, 1.4214138
    %v2916 = vmul.f32 %v2903, %v2839
    %v2917 = vmul.f32 %v2904, %v2841
    %v2918 = vmul.f32 %v2905, %v2843
    %v2919 = vmul.f32 %v2906, %v2845
    %v2920 = vmul.f32 %v2907, %v2847
    %v2921 = vmul.f32 %v2908, %v2849
    %v2922 = vmul.f32 %v2909, %v2851
    %v2923 = vmul.f32 %v2910, %v2853
    %v2924 = vmul.f32 %v2911, %v2855
    %v2925 = vmul.f32 %v2912, %v2857
    %v2926 = vmul.f32 %v2913, %v2859
    %v2927 = vmul.f32 %v2914, %v2861
    %v2928 = vmul.f32 %v2915, %v2863
    %v2929 = vadd.f32 %v2916, -0.28449672
    %v2930 = vadd.f32 %v2917, -0.28449672
    %v2931 = vadd.f32 %v2918, -0.28449672
    %v2932 = vadd.f32 %v2919, -0.28449672
    %v2933 = vadd.f32 %v2920, -0.28449672
    %v2934 = vadd.f32 %v2921, -0.28449672
    %v2935 = vadd.f32 %v2922, -0.28449672
    %v2936 = vadd.f32 %v2923, -0.28449672
    %v2937 = vadd.f32 %v2924, -0.28449672
    %v2938 = vadd.f32 %v2925, -0.28449672
    %v2939 = vadd.f32 %v2926, -0.28449672
    %v2940 = vadd.f32 %v2927, -0.28449672
    %v2941 = vadd.f32 %v2928, -0.28449672
    %v2942 = vmul.f32 %v2929, %v2839
    %v2943 = vmul.f32 %v2930, %v2841
    %v2944 = vmul.f32 %v2931, %v2843
    %v2945 = vmul.f32 %v2932, %v2845
    %v2946 = vmul.f32 %v2933, %v2847
    %v2947 = vmul.f32 %v2934, %v2849
    %v2948 = vmul.f32 %v2935, %v2851
    %v2949 = vmul.f32 %v2936, %v2853
    %v2950 = vmul.f32 %v2937, %v2855
    %v2951 = vmul.f32 %v2938, %v2857
    %v2952 = vmul.f32 %v2939, %v2859
    %v2953 = vmul.f32 %v2940, %v2861
    %v2954 = vmul.f32 %v2941, %v2863
    %v2955 = vadd.f32 %v2942, 0.2548296
    %v2956 = vadd.f32 %v2943, 0.2548296
    %v2957 = vadd.f32 %v2944, 0.2548296
    %v2958 = vadd.f32 %v2945, 0.2548296
    %v2959 = vadd.f32 %v2946, 0.2548296
    %v2960 = vadd.f32 %v2947, 0.2548296
    %v2961 = vadd.f32 %v2948, 0.2548296
    %v2962 = vadd.f32 %v2949, 0.2548296
    %v2963 = vadd.f32 %v2950, 0.2548296
    %v2964 = vadd.f32 %v2951, 0.2548296
    %v2965 = vadd.f32 %v2952, 0.2548296
    %v2966 = vadd.f32 %v2953, 0.2548296
    %v2967 = vadd.f32 %v2954, 0.2548296
    %v2968 = vmul.f32 %v2955, %v2839
    %v2969 = vmul.f32 %v2956, %v2841
    %v2970 = vmul.f32 %v2957, %v2843
    %v2971 = vmul.f32 %v2958, %v2845
    %v2972 = vmul.f32 %v2959, %v2847
    %v2973 = vmul.f32 %v2960, %v2849
    %v2974 = vmul.f32 %v2961, %v2851
    %v2975 = vmul.f32 %v2962, %v2853
    %v2976 = vmul.f32 %v2963, %v2855
    %v2977 = vmul.f32 %v2964, %v2857
    %v2978 = vmul.f32 %v2965, %v2859
    %v2979 = vmul.f32 %v2966, %v2861
    %v2980 = vmul.f32 %v2967, %v2863
    %v2981 = vsub.f32 0.0, %v2799
    %v2982 = vsub.f32 0.0, %v2800
    %v2983 = vsub.f32 0.0, %v2801
    %v2984 = vsub.f32 0.0, %v2802
    %v2985 = vsub.f32 0.0, %v2803
    %v2986 = vsub.f32 0.0, %v2804
    %v2987 = vsub.f32 0.0, %v2805
    %v2988 = vsub.f32 0.0, %v2806
    %v2989 = vsub.f32 0.0, %v2807
    %v2990 = vsub.f32 0.0, %v2808
    %v2991 = vsub.f32 0.0, %v2809
    %v2992 = vsub.f32 0.0, %v2810
    %v2993 = vsub.f32 0.0, %v2811
    %v2994 = vmul.f32 %v2981, %v2799
    %v2995 = vmul.f32 %v2982, %v2800
    %v2996 = vmul.f32 %v2983, %v2801
    %v2997 = vmul.f32 %v2984, %v2802
    %v2998 = vmul.f32 %v2985, %v2803
    %v2999 = vmul.f32 %v2986, %v2804
    %v3000 = vmul.f32 %v2987, %v2805
    %v3001 = vmul.f32 %v2988, %v2806
    %v3002 = vmul.f32 %v2989, %v2807
    %v3003 = vmul.f32 %v2990, %v2808
    %v3004 = vmul.f32 %v2991, %v2809
    %v3005 = vmul.f32 %v2992, %v2810
    %v3006 = vmul.f32 %v2993, %v2811
    %v3007 = vmul.f32 %v2994, 1.442695
    %v3008 = vpow.pop %v3007
    %v3009 = vmul.f32 %v2995, 1.442695
    %v3010 = vpow.pop %v3009
    %v3011 = vmul.f32 %v2996, 1.442695
    %v3012 = vpow.pop %v3011
    %v3013 = vmul.f32 %v2997, 1.442695
    %v3014 = vpow.pop %v3013
    %v3015 = vmul.f32 %v2998, 1.442695
    %v3016 = vpow.pop %v3015
    %v3017 = vmul.f32 %v2999, 1.442695
    %v3018 = vpow.pop %v3017
    %v3019 = vmul.f32 %v3000, 1.442695
    %v3020 = vpow.pop %v3019
    %v3021 = vmul.f32 %v3001, 1.442695
    %v3022 = vpow.pop %v3021
    %v3023 = vmul.f32 %v3002, 1.442695
    %v3024 = vpow.pop %v3023
    %v3025 = vmul.f32 %v3003, 1.442695
    %v3026 = vpow.pop %v3025
    %v3027 = vmul.f32 %v3004, 1.442695
    %v3028 = vpow.pop %v3027
    %v3029 = vmul.f32 %v3005, 1.442695
    %v3030 = vpow.pop %v3029
    %v3031 = vmul.f32 %v3006, 1.442695
    %v3032 = vpow.pop %v3031
    %v3033 = vmul.f32 %v2968, %v3008
    %v3034 = vmul.f32 %v2969, %v3010
    %v3035 = vmul.f32 %v2970, %v3012
    %v3036 = vmul.f32 %v2971, %v3014
    %v3037 = vmul.f32 %v2972, %v3016
    %v3038 = vmul.f32 %v2973, %v3018
    %v3039 = vmul.f32 %v2974, %v3020
    %v3040 = vmul.f32 %v2975, %v3022
    %v3041 = vmul.f32 %v2976, %v3024
    %v3042 = vmul.f32 %v2977, %v3026
    %v3043 = vmul.f32 %v2978, %v3028
    %v3044 = vmul.f32 %v2979, %v3030
    %v3045 = vmul.f32 %v2980, %v3032
    %v3046 = vsub.f32 1.0, %v3033
    %v3047 = vsub.f32 1.0, %v3034
    %v3048 = vsub.f32 1.0, %v3035
    %v3049 = vsub.f32 1.0, %v3036
    %v3050 = vsub.f32 1.0, %v3037
    %v3051 = vsub.f32 1.0, %v3038
    %v3052 = vsub.f32 1.0, %v3039
    %v3053 = vsub.f32 1.0, %v3040
    %v3054 = vsub.f32 1.0, %v3041
    %v3055 = vsub.f32 1.0, %v3042
    %v3056 = vsub.f32 1.0, %v3043
    %v3057 = vsub.f32 1.0, %v3044
    %v3058 = vsub.f32 1.0, %v3045
    %vm3059 = vcmp.lt.f32.partialorder %v2786, 0.0
    %vm3060 = vcmp.lt.f32.partialorder %v2787, 0.0
    %vm3061 = vcmp.lt.f32.partialorder %v2788, 0.0
    %vm3062 = vcmp.lt.f32.partialorder %v2789, 0.0
    %vm3063 = vcmp.lt.f32.partialorder %v2790, 0.0
    %vm3064 = vcmp.lt.f32.partialorder %v2791, 0.0
    %vm3065 = vcmp.lt.f32.partialorder %v2792, 0.0
    %vm3066 = vcmp.lt.f32.partialorder %v2793, 0.0
    %vm3067 = vcmp.lt.f32.partialorder %v2794, 0.0
    %vm3068 = vcmp.lt.f32.partialorder %v2795, 0.0
    %vm3069 = vcmp.lt.f32.partialorder %v2796, 0.0
    %vm3070 = vcmp.lt.f32.partialorder %v2797, 0.0
    %vm3071 = vcmp.lt.f32.partialorder %v2798, 0.0
    %v3072 = vsub.f32 0.0, %v3046
    %v3073 = vsub.f32 0.0, %v3047
    %v3074 = vsub.f32 0.0, %v3048
    %v3075 = vsub.f32 0.0, %v3049
    %v3076 = vsub.f32 0.0, %v3050
    %v3077 = vsub.f32 0.0, %v3051
    %v3078 = vsub.f32 0.0, %v3052
    %v3079 = vsub.f32 0.0, %v3053
    %v3080 = vsub.f32 0.0, %v3054
    %v3081 = vsub.f32 0.0, %v3055
    %v3082 = vsub.f32 0.0, %v3056
    %v3083 = vsub.f32 0.0, %v3057
    %v3084 = vsub.f32 0.0, %v3058
    %v3085 = vsel %vm3059, %v3072, %v3046
    %v3086 = vsel %vm3060, %v3073, %v3047
    %v3087 = vsel %vm3061, %v3074, %v3048
    %v3088 = vsel %vm3062, %v3075, %v3049
    %v3089 = vsel %vm3063, %v3076, %v3050
    %v3090 = vsel %vm3064, %v3077, %v3051
    %v3091 = vsel %vm3065, %v3078, %v3052
    %v3092 = vsel %vm3066, %v3079, %v3053
    %v3093 = vsel %vm3067, %v3080, %v3054
    %v3094 = vsel %vm3068, %v3081, %v3055
    %v3095 = vsel %vm3069, %v3082, %v3056
    %v3096 = vsel %vm3070, %v3083, %v3057
    %v3097 = vsel %vm3071, %v3084, %v3058
    %v3098 = vadd.f32 %v3085, 1.0
    %v3099 = vadd.f32 %v3086, 1.0
    %v3100 = vadd.f32 %v3087, 1.0
    %v3101 = vadd.f32 %v3088, 1.0
    %v3102 = vadd.f32 %v3089, 1.0
    %v3103 = vadd.f32 %v3090, 1.0
    %v3104 = vadd.f32 %v3091, 1.0
    %v3105 = vadd.f32 %v3092, 1.0
    %v3106 = vadd.f32 %v3093, 1.0
    %v3107 = vadd.f32 %v3094, 1.0
    %v3108 = vadd.f32 %v3095, 1.0
    %v3109 = vadd.f32 %v3096, 1.0
    %v3110 = vadd.f32 %v3097, 1.0
    %v3111 = vmul.f32 %v2773, %v3098
    %v3112 = vmul.f32 %v2774, %v3099
    %v3113 = vmul.f32 %v2775, %v3100
    %v3114 = vmul.f32 %v2776, %v3101
    %v3115 = vmul.f32 %v2777, %v3102
    %v3116 = vmul.f32 %v2778, %v3103
    %v3117 = vmul.f32 %v2779, %v3104
    %v3118 = vmul.f32 %v2780, %v3105
    %v3119 = vmul.f32 %v2781, %v3106
    %v3120 = vmul.f32 %v2782, %v3107
    %v3121 = vmul.f32 %v2783, %v3108
    %v3122 = vmul.f32 %v2784, %v3109
    %v3123 = vmul.f32 %v2785, %v3110
    %v3124 = vld [vmem:[%s1 + $0x388] sm:$0xff]
    %v3125 = vld [vmem:[%s1 + $0x390] sm:$0xff]
    %v3126 = vld [vmem:[%s1 + $0x398] sm:$0xff]
    %v3127 = vld [vmem:[%s1 + $0x3a0] sm:$0xff]
    %v3128 = vld [vmem:[%s1 + $0x3a8] sm:$0xff]
    %v3129 = vld [vmem:[%s1 + $0x3b0] sm:$0xff]
    %v3130 = vld [vmem:[%s1 + $0x3b8] sm:$0x3]
    %v3132 = vsel %vm1640, %v3124, 0
    %v3135 = vsel %vm1640, %v3125, 0
    %v3138 = vsel %vm1640, %v3126, 0
    %v3141 = vsel %vm1640, %v3127, 0
    %v3144 = vsel %vm1640, %v3128, 0
    %v3147 = vsel %vm1640, %v3129, 0
    %v3150 = vsel %vm1640, %v3130, 0
    %v3153 = vsel %vm1662, %v3123, 0
    %3155 = vmatprep.subr.mxu0 0.0
    %3156 = vmatpush1.msra.mxu0 0.0
    %3157 = vmatprep.subr.mxu0 0.0
    %3158 = vmatpush1.msra.mxu0 0.0
    %3159 = vmatprep.subr.mxu0 0.0
    %3160 = vmatpush1.msra.mxu0 0.0
    %3161 = vmatprep.subr.mxu0 0.0
    %3162 = vmatpush1.msra.mxu0 %v3153
    %3163 = vmatprep.subr.mxu0 0.0
    %3164 = vmatpush1.msra.mxu0 %v3122
    %3165 = vmatprep.subr.mxu0 0.0
    %3166 = vmatpush1.msra.mxu0 %v3121
    %3167 = vmatprep.subr.mxu0 0.0
    %3168 = vmatpush1.msra.mxu0 %v3120
    %3169 = vmatprep.subr.mxu0 0.0
    %3170 = vmatpush1.msra.mxu0 %v3119
    %3171 = vmatprep.subr.mxu0 0.0
    %3172 = vmatpush1.msra.mxu0 %v3118
    %3173 = vmatprep.subr.mxu0 0.0
    %3174 = vmatpush1.msra.mxu0 %v3117
    %3175 = vmatprep.subr.mxu0 0.0
    %3176 = vmatpush1.msra.mxu0 %v3116
    %3177 = vmatprep.subr.mxu0 0.0
    %3178 = vmatpush1.msra.mxu0 %v3115
    %3179 = vmatprep.subr.mxu0 0.0
    %3180 = vmatpush1.msra.mxu0 %v3114
    %3181 = vmatprep.subr.mxu0 0.0
    %3182 = vmatpush1.msra.mxu0 %v3113
    %3183 = vmatprep.subr.mxu0 0.0
    %3184 = vmatpush1.msra.mxu0 %v3112
    %3185 = vmatprep.subr.mxu0 0.0
    %3186 = vmatpush1.msra.mxu0 %v3111
    %3187 = vmatprep.subr.mxu0 0.0
    %3188 = vmatpush2.msra.mxu0 0.0
    %3189 = vmatprep.subr.mxu0 0.0
    %3190 = vmatpush2.msra.mxu0 0.0
    %3191 = vmatprep.subr.mxu0 0.0
    %3192 = vmatpush2.msra.mxu0 0.0
    %3193 = vmatprep.subr.mxu0 0.0
    %3194 = vmatpush2.msra.mxu0 0.0
    %3195 = vmatprep.subr.mxu0 0.0
    %3196 = vmatpush2.msra.mxu0 0.0
    %3197 = vmatprep.subr.mxu0 0.0
    %3198 = vmatpush2.msra.mxu0 0.0
    %3199 = vmatprep.subr.mxu0 0.0
    %3200 = vmatpush2.msra.mxu0 0.0
    %3201 = vmatprep.subr.mxu0 0.0
    %3202 = vmatpush2.msra.mxu0 0.0
    %3203 = vmatprep.subr.mxu0 0.0
    %3204 = vmatpush2.msra.mxu0 0.0
    %3205 = vmatprep.subr.mxu0 0.0
    %3206 = vmatpush2.msra.mxu0 0.0
    %3207 = vmatprep.subr.mxu0 0.0
    %3208 = vmatpush2.msra.mxu0 0.0
    %3209 = vmatprep.subr.mxu0 0.0
    %3210 = vmatpush2.msra.mxu0 0.0
    %3211 = vmatprep.subr.mxu0 0.0
    %3212 = vmatpush2.msra.mxu0 0.0
    %3213 = vmatprep.subr.mxu0 0.0
    %3214 = vmatpush2.msra.mxu0 0.0
    %3215 = vmatprep.subr.mxu0 0.0
    %3216 = vmatpush2.msra.mxu0 0.0
    %3217 = vmatprep.subr.mxu0 0.0
    %3218 = vmatpush2.msra.mxu0 0.0
    %3219 = vmatprep.mubr.f32.mxu0 0.0
    %3220 = vmatmul.mubr.f32.gmra.mxu0 %v3132
    %v3221 = vpop.f32.mrf.mxu0
    %v3222 = vadd.f32 0.0, %v3221
    %v3223 = vpop.f32.mrf.mxu0
    %3224 = vmatprep.mubr.f32.mxu0 0.0
    %3225 = vmatmul.mubr.f32.gmra.mxu0 %v3135
    %v3226 = vpop.f32.mrf.mxu0
    %v3227 = vadd.f32 0.0, %v3226
    %v3228 = vpop.f32.mrf.mxu0
    %3229 = vmatprep.mubr.f32.mxu0 0.0
    %3230 = vmatmul.mubr.f32.gmra.mxu0 %v3138
    %v3231 = vpop.f32.mrf.mxu0
    %v3232 = vadd.f32 0.0, %v3231
    %v3233 = vpop.f32.mrf.mxu0
    %3234 = vmatprep.mubr.f32.mxu0 0.0
    %3235 = vmatmul.mubr.f32.gmra.mxu0 %v3141
    %v3236 = vpop.f32.mrf.mxu0
    %v3237 = vadd.f32 0.0, %v3236
    %v3238 = vpop.f32.mrf.mxu0
    %3239 = vmatprep.mubr.f32.mxu0 0.0
    %3240 = vmatmul.mubr.f32.gmra.mxu0 %v3144
    %v3241 = vpop.f32.mrf.mxu0
    %v3242 = vadd.f32 0.0, %v3241
    %v3243 = vpop.f32.mrf.mxu0
    %3244 = vmatprep.mubr.f32.mxu0 0.0
    %3245 = vmatmul.mubr.f32.gmra.mxu0 %v3147
    %v3246 = vpop.f32.mrf.mxu0
    %v3247 = vadd.f32 0.0, %v3246
    %v3248 = vpop.f32.mrf.mxu0
    %3249 = vmatprep.mubr.f32.mxu0 0.0
    %3250 = vmatmul.mubr.f32.gmra.mxu0 %v3150
    %v3251 = vpop.f32.mrf.mxu0
    %v3252 = vadd.f32 0.0, %v3251
    %v3253 = vpop.f32.mrf.mxu0
    %3254 = vdwg.mxu0
    %v3255 = vadd.f32 %v2388, %v3222
    %v3256 = vadd.f32 %v2389, %v3227
    %v3257 = vadd.f32 %v2390, %v3232
    %v3258 = vadd.f32 %v2391, %v3237
    %v3259 = vadd.f32 %v2392, %v3242
    %v3260 = vadd.f32 %v2393, %v3247
    %v3261 = vadd.f32 %v2394, %v3252
    %v3262 = vld [vmem:[%s1 + $0x3c0] sm:$0xff]
    %v3263 = vld [vmem:[%s1 + $0x3c8] sm:$0xff]
    %v3264 = vld [vmem:[%s1 + $0x3d0] sm:$0xff]
    %v3265 = vld [vmem:[%s1 + $0x3d8] sm:$0xff]
    %v3266 = vld [vmem:[%s1 + $0x3e0] sm:$0xff]
    %v3267 = vld [vmem:[%s1 + $0x3e8] sm:$0xff]
    %v3268 = vld [vmem:[%s1 + $0x3f0] sm:$0x3]
    %3270 = vset.pattern.permute.xlu0 0
    %3271 = vperm.xlu0 %3270, %v3262
    %v3272 = vpop.permute.xlu0 %3271
    %3275 = vset.pattern.permute.xlu0 0
    %3276 = vperm.xlu0 %3275, %v3263
    %v3277 = vpop.permute.xlu0 %3276
    %3280 = vset.pattern.permute.xlu0 0
    %3281 = vperm.xlu0 %3280, %v3264
    %v3282 = vpop.permute.xlu0 %3281
    %3285 = vset.pattern.permute.xlu0 0
    %3286 = vperm.xlu0 %3285, %v3265
    %v3287 = vpop.permute.xlu0 %3286
    %3290 = vset.pattern.permute.xlu0 0
    %3291 = vperm.xlu0 %3290, %v3266
    %v3292 = vpop.permute.xlu0 %3291
    %3295 = vset.pattern.permute.xlu0 0
    %3296 = vperm.xlu0 %3295, %v3267
    %v3297 = vpop.permute.xlu0 %3296
    %3300 = vset.pattern.permute.xlu0 0
    %3301 = vperm.xlu0 %3300, %v3268
    %v3302 = vpop.permute.xlu0 %3301
    %v3304 = vadd.f32 %v3255, %v3272
    %v3305 = vadd.f32 %v3256, %v3277
    %v3306 = vadd.f32 %v3257, %v3282
    %v3307 = vadd.f32 %v3258, %v3287
    %v3308 = vadd.f32 %v3259, %v3292
    %v3309 = vadd.f32 %v3260, %v3297
    %v3310 = vadd.f32 %v3261, %v3302
    %v3311 = vsel %vm455, %v3304, 0.0
    %3312 = vadd.xlane.f32.xlu0 %v3311
    %v3313 = vpop.xlane.xlu0 %3312
    %v3314 = vsel %vm455, %v3305, 0.0
    %3315 = vadd.xlane.f32.xlu0 %v3314
    %v3316 = vpop.xlane.xlu0 %3315
    %v3317 = vsel %vm455, %v3306, 0.0
    %3318 = vadd.xlane.f32.xlu0 %v3317
    %v3319 = vpop.xlane.xlu0 %3318
    %v3320 = vsel %vm455, %v3307, 0.0
    %3321 = vadd.xlane.f32.xlu0 %v3320
    %v3322 = vpop.xlane.xlu0 %3321
    %v3323 = vsel %vm455, %v3308, 0.0
    %3324 = vadd.xlane.f32.xlu0 %v3323
    %v3325 = vpop.xlane.xlu0 %3324
    %v3326 = vsel %vm455, %v3309, 0.0
    %3327 = vadd.xlane.f32.xlu0 %v3326
    %v3328 = vpop.xlane.xlu0 %3327
    %v3329 = vsel %vm920, %v3310, 0.0
    %3330 = vadd.xlane.f32.xlu0 %v3329
    %v3331 = vpop.xlane.xlu0 %3330
    %v3332 = vmul.f32 %v3313, %v924
    %v3333 = vmul.f32 %v3316, %v924
    %v3334 = vmul.f32 %v3319, %v924
    %v3335 = vmul.f32 %v3322, %v924
    %v3336 = vmul.f32 %v3325, %v924
    %v3337 = vmul.f32 %v3328, %v924
    %v3338 = vmul.f32 %v3331, %v924
    %v3339 = vsub.f32 %v3304, %v3332
    %v3340 = vsub.f32 %v3305, %v3333
    %v3341 = vsub.f32 %v3306, %v3334
    %v3342 = vsub.f32 %v3307, %v3335
    %v3343 = vsub.f32 %v3308, %v3336
    %v3344 = vsub.f32 %v3309, %v3337
    %v3345 = vsub.f32 %v3310, %v3338
    %v3346 = vmul.f32 %v3339, %v3339
    %v3347 = vmul.f32 %v3340, %v3340
    %v3348 = vmul.f32 %v3341, %v3341
    %v3349 = vmul.f32 %v3342, %v3342
    %v3350 = vmul.f32 %v3343, %v3343
    %v3351 = vmul.f32 %v3344, %v3344
    %v3352 = vmul.f32 %v3345, %v3345
    %v3353 = vsel %vm455, %v3346, 0.0
    %3354 = vadd.xlane.f32.xlu0 %v3353
    %v3355 = vpop.xlane.xlu0 %3354
    %v3356 = vsel %vm455, %v3347, 0.0
    %3357 = vadd.xlane.f32.xlu0 %v3356
    %v3358 = vpop.xlane.xlu0 %3357
    %v3359 = vsel %vm455, %v3348, 0.0
    %3360 = vadd.xlane.f32.xlu0 %v3359
    %v3361 = vpop.xlane.xlu0 %3360
    %v3362 = vsel %vm455, %v3349, 0.0
    %3363 = vadd.xlane.f32.xlu0 %v3362
    %v3364 = vpop.xlane.xlu0 %3363
    %v3365 = vsel %vm455, %v3350, 0.0
    %3366 = vadd.xlane.f32.xlu0 %v3365
    %v3367 = vpop.xlane.xlu0 %3366
    %v3368 = vsel %vm455, %v3351, 0.0
    %3369 = vadd.xlane.f32.xlu0 %v3368
    %v3370 = vpop.xlane.xlu0 %3369
    %v3371 = vsel %vm920, %v3352, 0.0
    %3372 = vadd.xlane.f32.xlu0 %v3371
    %v3373 = vpop.xlane.xlu0 %3372
    %v3374 = vmul.f32 %v3355, %v924
    %v3375 = vmul.f32 %v3358, %v924
    %v3376 = vmul.f32 %v3361, %v924
    %v3377 = vmul.f32 %v3364, %v924
    %v3378 = vmul.f32 %v3367, %v924
    %v3379 = vmul.f32 %v3370, %v924
    %v3380 = vmul.f32 %v3373, %v924
    %v3381 = vadd.f32 %v3374, 1e-05
    %v3382 = vadd.f32 %v3375, 1e-05
    %v3383 = vadd.f32 %v3376, 1e-05
    %v3384 = vadd.f32 %v3377, 1e-05
    %v3385 = vadd.f32 %v3378, 1e-05
    %v3386 = vadd.f32 %v3379, 1e-05
    %v3387 = vadd.f32 %v3380, 1e-05
    %v3388 = vrsqrt.pop %v3381
    %v3389 = vrsqrt.pop %v3382
    %v3390 = vrsqrt.pop %v3383
    %v3391 = vrsqrt.pop %v3384
    %v3392 = vrsqrt.pop %v3385
    %v3393 = vrsqrt.pop %v3386
    %v3394 = vrsqrt.pop %v3387
    %v3395 = vmul.f32 %v3339, %v3388
    %v3396 = vmul.f32 %v3340, %v3389
    %v3397 = vmul.f32 %v3341, %v3390
    %v3398 = vmul.f32 %v3342, %v3391
    %v3399 = vmul.f32 %v3343, %v3392
    %v3400 = vmul.f32 %v3344, %v3393
    %v3401 = vmul.f32 %v3345, %v3394
    %v3402 = vmul.f32 %v3395, %v2491
    %v3403 = vmul.f32 %v3396, %v2491
    %v3404 = vmul.f32 %v3397, %v2491
    %v3405 = vmul.f32 %v3398, %v2491
    %v3406 = vmul.f32 %v3399, %v2491
    %v3407 = vmul.f32 %v3400, %v2491
    %v3408 = vmul.f32 %v3401, %v2491
    %v3409 = vadd.f32 %v3402, %v2502
    %v3410 = vadd.f32 %v3403, %v2502
    %v3411 = vadd.f32 %v3404, %v2502
    %v3412 = vadd.f32 %v3405, %v2502
    %v3413 = vadd.f32 %v3406, %v2502
    %v3414 = vadd.f32 %v3407, %v2502
    %v3415 = vadd.f32 %v3408, %v2502
    %v3416 = vld [vmem:[%s1 + $0x3f8] sm:$0xff]
    %v3417 = vld [vmem:[%s1 + $0x400] sm:$0xff]
    %v3418 = vld [vmem:[%s1 + $0x408] sm:$0xff]
    %v3419 = vld [vmem:[%s1 + $0x410] sm:$0xff]
    %v3420 = vld [vmem:[%s1 + $0x418] sm:$0x1]
    %v3421 = vlaneseq
    %v3422 = vshrl.u32 %v3421, 7
    %v3423 = vsub.s32 0, %v3422
    %v3424 = vrot.slane %v3420, %v3423
    %v3426 = vsel %vm455, %v3409, 0
    %v3429 = vsel %vm455, %v3410, 0
    %v3432 = vsel %vm455, %v3411, 0
    %v3435 = vsel %vm455, %v3412, 0
    %v3438 = vsel %vm455, %v3413, 0
    %v3441 = vsel %vm455, %v3414, 0
    %v3444 = vsel %vm455, %v3415, 0
    %3446 = vmatprep.subr.mxu0 0.0
    %3447 = vmatpush1.msra.mxu0 0.0
    %3448 = vmatprep.subr.mxu0 0.0
    %3449 = vmatpush1.msra.mxu0 0.0
    %3450 = vmatprep.subr.mxu0 0.0
    %3451 = vmatpush1.msra.mxu0 0.0
    %3452 = vmatprep.subr.mxu0 0.0
    %3453 = vmatpush1.msra.mxu0 0.0
    %3454 = vmatprep.subr.mxu0 0.0
    %3455 = vmatpush1.msra.mxu0 0.0
    %3456 = vmatprep.subr.mxu0 0.0
    %3457 = vmatpush1.msra.mxu0 0.0
    %3458 = vmatprep.subr.mxu0 0.0
    %3459 = vmatpush1.msra.mxu0 0.0
    %3460 = vmatprep.subr.mxu0 0.0
    %3461 = vmatpush1.msra.mxu0 0.0
    %3462 = vmatprep.subr.mxu0 0.0
    %3463 = vmatpush1.msra.mxu0 0.0
    %3464 = vmatprep.subr.mxu0 0.0
    %3465 = vmatpush1.msra.mxu0 0.0
    %3466 = vmatprep.subr.mxu0 0.0
    %3467 = vmatpush1.msra.mxu0 0.0
    %3468 = vmatprep.subr.mxu0 0.0
    %3469 = vmatpush1.msra.mxu0 0.0
    %3470 = vmatprep.subr.mxu0 0.0
    %3471 = vmatpush1.msra.mxu0 %v3419
    %3472 = vmatprep.subr.mxu0 0.0
    %3473 = vmatpush1.msra.mxu0 %v3418
    %3474 = vmatprep.subr.mxu0 0.0
    %3475 = vmatpush1.msra.mxu0 %v3417
    %3476 = vmatprep.subr.mxu0 0.0
    %3477 = vmatpush1.msra.mxu0 %v3416
    %3478 = vmatprep.subr.mxu0 0.0
    %3479 = vmatpush2.msra.mxu0 0.0
    %3480 = vmatprep.subr.mxu0 0.0
    %3481 = vmatpush2.msra.mxu0 0.0
    %3482 = vmatprep.subr.mxu0 0.0
    %3483 = vmatpush2.msra.mxu0 0.0
    %3484 = vmatprep.subr.mxu0 0.0
    %3485 = vmatpush2.msra.mxu0 0.0
    %3486 = vmatprep.subr.mxu0 0.0
    %3487 = vmatpush2.msra.mxu0 0.0
    %3488 = vmatprep.subr.mxu0 0.0
    %3489 = vmatpush2.msra.mxu0 0.0
    %3490 = vmatprep.subr.mxu0 0.0
    %3491 = vmatpush2.msra.mxu0 0.0
    %3492 = vmatprep.subr.mxu0 0.0
    %3493 = vmatpush2.msra.mxu0 0.0
    %3494 = vmatprep.subr.mxu0 0.0
    %3495 = vmatpush2.msra.mxu0 0.0
    %3496 = vmatprep.subr.mxu0 0.0
    %3497 = vmatpush2.msra.mxu0 0.0
    %3498 = vmatprep.subr.mxu0 0.0
    %3499 = vmatpush2.msra.mxu0 0.0
    %3500 = vmatprep.subr.mxu0 0.0
    %3501 = vmatpush2.msra.mxu0 0.0
    %3502 = vmatprep.subr.mxu0 0.0
    %3503 = vmatpush2.msra.mxu0 0.0
    %3504 = vmatprep.subr.mxu0 0.0
    %3505 = vmatpush2.msra.mxu0 0.0
    %3506 = vmatprep.subr.mxu0 0.0
    %3507 = vmatpush2.msra.mxu0 0.0
    %3508 = vmatprep.subr.mxu0 0.0
    %3509 = vmatpush2.msra.mxu0 0.0
    %3510 = vmatprep.mubr.f32.mxu0 0.0
    %3511 = vmatmul.mubr.f32.gmra.mxu0 %v3426
    %v3512 = vpop.f32.mrf.mxu0
    %v3513 = vadd.f32 %v3424, %v3512
    %v3514 = vpop.f32.mrf.mxu0
    %3515 = vmatprep.mubr.f32.mxu0 0.0
    %3516 = vmatmul.mubr.f32.gmra.mxu0 %v3429
    %v3517 = vpop.f32.mrf.mxu0
    %v3518 = vadd.f32 %v3424, %v3517
    %v3519 = vpop.f32.mrf.mxu0
    %3520 = vmatprep.mubr.f32.mxu0 0.0
    %3521 = vmatmul.mubr.f32.gmra.mxu0 %v3432
    %v3522 = vpop.f32.mrf.mxu0
    %v3523 = vadd.f32 %v3424, %v3522
    %v3524 = vpop.f32.mrf.mxu0
    %3525 = vmatprep.mubr.f32.mxu0 0.0
    %3526 = vmatmul.mubr.f32.gmra.mxu0 %v3435
    %v3527 = vpop.f32.mrf.mxu0
    %v3528 = vadd.f32 %v3424, %v3527
    %v3529 = vpop.f32.mrf.mxu0
    %3530 = vmatprep.mubr.f32.mxu0 0.0
    %3531 = vmatmul.mubr.f32.gmra.mxu0 %v3438
    %v3532 = vpop.f32.mrf.mxu0
    %v3533 = vadd.f32 %v3424, %v3532
    %v3534 = vpop.f32.mrf.mxu0
    %3535 = vmatprep.mubr.f32.mxu0 0.0
    %3536 = vmatmul.mubr.f32.gmra.mxu0 %v3441
    %v3537 = vpop.f32.mrf.mxu0
    %v3538 = vadd.f32 %v3424, %v3537
    %v3539 = vpop.f32.mrf.mxu0
    %3540 = vmatprep.mubr.f32.mxu0 0.0
    %3541 = vmatmul.mubr.f32.gmra.mxu0 %v3444
    %v3542 = vpop.f32.mrf.mxu0
    %v3543 = vadd.f32 %v3424, %v3542
    %v3544 = vpop.f32.mrf.mxu0
    %3545 = vdwg.mxu0
    %v3546 = vmul.f32 %v3513, 0.5
    %v3547 = vmul.f32 %v3518, 0.5
    %v3548 = vmul.f32 %v3523, 0.5
    %v3549 = vmul.f32 %v3528, 0.5
    %v3550 = vmul.f32 %v3533, 0.5
    %v3551 = vmul.f32 %v3538, 0.5
    %v3552 = vmul.f32 %v3543, 0.5
    %v3553 = vmul.f32 %v3513, 0.70710677
    %v3554 = vmul.f32 %v3518, 0.70710677
    %v3555 = vmul.f32 %v3523, 0.70710677
    %v3556 = vmul.f32 %v3528, 0.70710677
    %v3557 = vmul.f32 %v3533, 0.70710677
    %v3558 = vmul.f32 %v3538, 0.70710677
    %v3559 = vmul.f32 %v3543, 0.70710677
    %v3560 = vand.u32 2147483647, %v3553
    %v3561 = vand.u32 2147483647, %v3554
    %v3562 = vand.u32 2147483647, %v3555
    %v3563 = vand.u32 2147483647, %v3556
    %v3564 = vand.u32 2147483647, %v3557
    %v3565 = vand.u32 2147483647, %v3558
    %v3566 = vand.u32 2147483647, %v3559
    %v3567 = vmul.f32 %v3560, 0.3275911
    %v3568 = vmul.f32 %v3561, 0.3275911
    %v3569 = vmul.f32 %v3562, 0.3275911
    %v3570 = vmul.f32 %v3563, 0.3275911
    %v3571 = vmul.f32 %v3564, 0.3275911
    %v3572 = vmul.f32 %v3565, 0.3275911
    %v3573 = vmul.f32 %v3566, 0.3275911
    %v3574 = vadd.f32 %v3567, 1.0
    %v3575 = vadd.f32 %v3568, 1.0
    %v3576 = vadd.f32 %v3569, 1.0
    %v3577 = vadd.f32 %v3570, 1.0
    %v3578 = vadd.f32 %v3571, 1.0
    %v3579 = vadd.f32 %v3572, 1.0
    %v3580 = vadd.f32 %v3573, 1.0
    %v3581 = vrcp.pop %v3574
    %v3582 = vmul.f32 1.0, %v3581
    %v3583 = vrcp.pop %v3575
    %v3584 = vmul.f32 1.0, %v3583
    %v3585 = vrcp.pop %v3576
    %v3586 = vmul.f32 1.0, %v3585
    %v3587 = vrcp.pop %v3577
    %v3588 = vmul.f32 1.0, %v3587
    %v3589 = vrcp.pop %v3578
    %v3590 = vmul.f32 1.0, %v3589
    %v3591 = vrcp.pop %v3579
    %v3592 = vmul.f32 1.0, %v3591
    %v3593 = vrcp.pop %v3580
    %v3594 = vmul.f32 1.0, %v3593
    %v3595 = vmul.f32 %v3582, 1.0614054
    %v3596 = vmul.f32 %v3584, 1.0614054
    %v3597 = vmul.f32 %v3586, 1.0614054
    %v3598 = vmul.f32 %v3588, 1.0614054
    %v3599 = vmul.f32 %v3590, 1.0614054
    %v3600 = vmul.f32 %v3592, 1.0614054
    %v3601 = vmul.f32 %v3594, 1.0614054
    %v3602 = vadd.f32 %v3595, -1.4531521
    %v3603 = vadd.f32 %v3596, -1.4531521
    %v3604 = vadd.f32 %v3597, -1.4531521
    %v3605 = vadd.f32 %v3598, -1.4531521
    %v3606 = vadd.f32 %v3599, -1.4531521
    %v3607 = vadd.f32 %v3600, -1.4531521
    %v3608 = vadd.f32 %v3601, -1.4531521
    %v3609 = vmul.f32 %v3602, %v3582
    %v3610 = vmul.f32 %v3603, %v3584
    %v3611 = vmul.f32 %v3604, %v3586
    %v3612 = vmul.f32 %v3605, %v3588
    %v3613 = vmul.f32 %v3606, %v3590
    %v3614 = vmul.f32 %v3607, %v3592
    %v3615 = vmul.f32 %v3608, %v3594
    %v3616 = vadd.f32 %v3609, 1.4214138
    %v3617 = vadd.f32 %v3610, 1.4214138
    %v3618 = vadd.f32 %v3611, 1.4214138
    %v3619 = vadd.f32 %v3612, 1.4214138
    %v3620 = vadd.f32 %v3613, 1.4214138
    %v3621 = vadd.f32 %v3614, 1.4214138
    %v3622 = vadd.f32 %v3615, 1.4214138
    %v3623 = vmul.f32 %v3616, %v3582
    %v3624 = vmul.f32 %v3617, %v3584
    %v3625 = vmul.f32 %v3618, %v3586
    %v3626 = vmul.f32 %v3619, %v3588
    %v3627 = vmul.f32 %v3620, %v3590
    %v3628 = vmul.f32 %v3621, %v3592
    %v3629 = vmul.f32 %v3622, %v3594
    %v3630 = vadd.f32 %v3623, -0.28449672
    %v3631 = vadd.f32 %v3624, -0.28449672
    %v3632 = vadd.f32 %v3625, -0.28449672
    %v3633 = vadd.f32 %v3626, -0.28449672
    %v3634 = vadd.f32 %v3627, -0.28449672
    %v3635 = vadd.f32 %v3628, -0.28449672
    %v3636 = vadd.f32 %v3629, -0.28449672
    %v3637 = vmul.f32 %v3630, %v3582
    %v3638 = vmul.f32 %v3631, %v3584
    %v3639 = vmul.f32 %v3632, %v3586
    %v3640 = vmul.f32 %v3633, %v3588
    %v3641 = vmul.f32 %v3634, %v3590
    %v3642 = vmul.f32 %v3635, %v3592
    %v3643 = vmul.f32 %v3636, %v3594
    %v3644 = vadd.f32 %v3637, 0.2548296
    %v3645 = vadd.f32 %v3638, 0.2548296
    %v3646 = vadd.f32 %v3639, 0.2548296
    %v3647 = vadd.f32 %v3640, 0.2548296
    %v3648 = vadd.f32 %v3641, 0.2548296
    %v3649 = vadd.f32 %v3642, 0.2548296
    %v3650 = vadd.f32 %v3643, 0.2548296
    %v3651 = vmul.f32 %v3644, %v3582
    %v3652 = vmul.f32 %v3645, %v3584
    %v3653 = vmul.f32 %v3646, %v3586
    %v3654 = vmul.f32 %v3647, %v3588
    %v3655 = vmul.f32 %v3648, %v3590
    %v3656 = vmul.f32 %v3649, %v3592
    %v3657 = vmul.f32 %v3650, %v3594
    %v3658 = vsub.f32 0.0, %v3560
    %v3659 = vsub.f32 0.0, %v3561
    %v3660 = vsub.f32 0.0, %v3562
    %v3661 = vsub.f32 0.0, %v3563
    %v3662 = vsub.f32 0.0, %v3564
    %v3663 = vsub.f32 0.0, %v3565
    %v3664 = vsub.f32 0.0, %v3566
    %v3665 = vmul.f32 %v3658, %v3560
    %v3666 = vmul.f32 %v3659, %v3561
    %v3667 = vmul.f32 %v3660, %v3562
    %v3668 = vmul.f32 %v3661, %v3563
    %v3669 = vmul.f32 %v3662, %v3564
    %v3670 = vmul.f32 %v3663, %v3565
    %v3671 = vmul.f32 %v3664, %v3566
    %v3672 = vmul.f32 %v3665, 1.442695
    %v3673 = vpow.pop %v3672
    %v3674 = vmul.f32 %v3666, 1.442695
    %v3675 = vpow.pop %v3674
    %v3676 = vmul.f32 %v3667, 1.442695
    %v3677 = vpow.pop %v3676
    %v3678 = vmul.f32 %v3668, 1.442695
    %v3679 = vpow.pop %v3678
    %v3680 = vmul.f32 %v3669, 1.442695
    %v3681 = vpow.pop %v3680
    %v3682 = vmul.f32 %v3670, 1.442695
    %v3683 = vpow.pop %v3682
    %v3684 = vmul.f32 %v3671, 1.442695
    %v3685 = vpow.pop %v3684
    %v3686 = vmul.f32 %v3651, %v3673
    %v3687 = vmul.f32 %v3652, %v3675
    %v3688 = vmul.f32 %v3653, %v3677
    %v3689 = vmul.f32 %v3654, %v3679
    %v3690 = vmul.f32 %v3655, %v3681
    %v3691 = vmul.f32 %v3656, %v3683
    %v3692 = vmul.f32 %v3657, %v3685
    %v3693 = vsub.f32 1.0, %v3686
    %v3694 = vsub.f32 1.0, %v3687
    %v3695 = vsub.f32 1.0, %v3688
    %v3696 = vsub.f32 1.0, %v3689
    %v3697 = vsub.f32 1.0, %v3690
    %v3698 = vsub.f32 1.0, %v3691
    %v3699 = vsub.f32 1.0, %v3692
    %vm3700 = vcmp.lt.f32.partialorder %v3553, 0.0
    %vm3701 = vcmp.lt.f32.partialorder %v3554, 0.0
    %vm3702 = vcmp.lt.f32.partialorder %v3555, 0.0
    %vm3703 = vcmp.lt.f32.partialorder %v3556, 0.0
    %vm3704 = vcmp.lt.f32.partialorder %v3557, 0.0
    %vm3705 = vcmp.lt.f32.partialorder %v3558, 0.0
    %vm3706 = vcmp.lt.f32.partialorder %v3559, 0.0
    %v3707 = vsub.f32 0.0, %v3693
    %v3708 = vsub.f32 0.0, %v3694
    %v3709 = vsub.f32 0.0, %v3695
    %v3710 = vsub.f32 0.0, %v3696
    %v3711 = vsub.f32 0.0, %v3697
    %v3712 = vsub.f32 0.0, %v3698
    %v3713 = vsub.f32 0.0, %v3699
    %v3714 = vsel %vm3700, %v3707, %v3693
    %v3715 = vsel %vm3701, %v3708, %v3694
    %v3716 = vsel %vm3702, %v3709, %v3695
    %v3717 = vsel %vm3703, %v3710, %v3696
    %v3718 = vsel %vm3704, %v3711, %v3697
    %v3719 = vsel %vm3705, %v3712, %v3698
    %v3720 = vsel %vm3706, %v3713, %v3699
    %v3721 = vadd.f32 %v3714, 1.0
    %v3722 = vadd.f32 %v3715, 1.0
    %v3723 = vadd.f32 %v3716, 1.0
    %v3724 = vadd.f32 %v3717, 1.0
    %v3725 = vadd.f32 %v3718, 1.0
    %v3726 = vadd.f32 %v3719, 1.0
    %v3727 = vadd.f32 %v3720, 1.0
    %v3728 = vmul.f32 %v3546, %v3721
    %v3729 = vmul.f32 %v3547, %v3722
    %v3730 = vmul.f32 %v3548, %v3723
    %v3731 = vmul.f32 %v3549, %v3724
    %v3732 = vmul.f32 %v3550, %v3725
    %v3733 = vmul.f32 %v3551, %v3726
    %v3734 = vmul.f32 %v3552, %v3727
    %v3735 = vld [vmem:[%s1 + $0x420] sm:$0xff]
    %v3736 = vld [vmem:[%s1 + $0x428] sm:$0xff]
    %v3737 = vld [vmem:[%s1 + $0x430] sm:$0xff]
    %v3738 = vld [vmem:[%s1 + $0x438] sm:$0xff]
    %v3739 = vld [vmem:[%s1 + $0x440] sm:$0xff]
    %v3740 = vld [vmem:[%s1 + $0x448] sm:$0xff]
    %v3741 = vld [vmem:[%s1 + $0x450] sm:$0xff]
    %v3742 = vld [vmem:[%s1 + $0x458] sm:$0xff]
    %v3744 = vsel %vm2254, %v3728, 0
    %v3747 = vsel %vm2254, %v3729, 0
    %v3750 = vsel %vm2254, %v3730, 0
    %v3753 = vsel %vm2254, %v3731, 0
    %v3756 = vsel %vm2254, %v3732, 0
    %v3759 = vsel %vm2254, %v3733, 0
    %v3762 = vsel %vm2254, %v3734, 0
    %3764 = vmatprep.subr.mxu0 0.0
    %3765 = vmatpush1.msra.mxu0 0.0
    %3766 = vmatprep.subr.mxu0 0.0
    %3767 = vmatpush1.msra.mxu0 0.0
    %3768 = vmatprep.subr.mxu0 0.0
    %3769 = vmatpush1.msra.mxu0 0.0
    %3770 = vmatprep.subr.mxu0 0.0
    %3771 = vmatpush1.msra.mxu0 0.0
    %3772 = vmatprep.subr.mxu0 0.0
    %3773 = vmatpush1.msra.mxu0 0.0
    %3774 = vmatprep.subr.mxu0 0.0
    %3775 = vmatpush1.msra.mxu0 0.0
    %3776 = vmatprep.subr.mxu0 0.0
    %3777 = vmatpush1.msra.mxu0 0.0
    %3778 = vmatprep.subr.mxu0 0.0
    %3779 = vmatpush1.msra.mxu0 0.0
    %3780 = vmatprep.subr.mxu0 0.0
    %3781 = vmatpush1.msra.mxu0 %v3742
    %3782 = vmatprep.subr.mxu0 0.0
    %3783 = vmatpush1.msra.mxu0 %v3741
    %3784 = vmatprep.subr.mxu0 0.0
    %3785 = vmatpush1.msra.mxu0 %v3740
    %3786 = vmatprep.subr.mxu0 0.0
    %3787 = vmatpush1.msra.mxu0 %v3739
    %3788 = vmatprep.subr.mxu0 0.0
    %3789 = vmatpush1.msra.mxu0 %v3738
    %3790 = vmatprep.subr.mxu0 0.0
    %3791 = vmatpush1.msra.mxu0 %v3737
    %3792 = vmatprep.subr.mxu0 0.0
    %3793 = vmatpush1.msra.mxu0 %v3736
    %3794 = vmatprep.subr.mxu0 0.0
    %3795 = vmatpush1.msra.mxu0 %v3735
    %3796 = vmatprep.subr.mxu0 0.0
    %3797 = vmatpush2.msra.mxu0 0.0
    %3798 = vmatprep.subr.mxu0 0.0
    %3799 = vmatpush2.msra.mxu0 0.0
    %3800 = vmatprep.subr.mxu0 0.0
    %3801 = vmatpush2.msra.mxu0 0.0
    %3802 = vmatprep.subr.mxu0 0.0
    %3803 = vmatpush2.msra.mxu0 0.0
    %3804 = vmatprep.subr.mxu0 0.0
    %3805 = vmatpush2.msra.mxu0 0.0
    %3806 = vmatprep.subr.mxu0 0.0
    %3807 = vmatpush2.msra.mxu0 0.0
    %3808 = vmatprep.subr.mxu0 0.0
    %3809 = vmatpush2.msra.mxu0 0.0
    %3810 = vmatprep.subr.mxu0 0.0
    %3811 = vmatpush2.msra.mxu0 0.0
    %3812 = vmatprep.subr.mxu0 0.0
    %3813 = vmatpush2.msra.mxu0 0.0
    %3814 = vmatprep.subr.mxu0 0.0
    %3815 = vmatpush2.msra.mxu0 0.0
    %3816 = vmatprep.subr.mxu0 0.0
    %3817 = vmatpush2.msra.mxu0 0.0
    %3818 = vmatprep.subr.mxu0 0.0
    %3819 = vmatpush2.msra.mxu0 0.0
    %3820 = vmatprep.subr.mxu0 0.0
    %3821 = vmatpush2.msra.mxu0 0.0
    %3822 = vmatprep.subr.mxu0 0.0
    %3823 = vmatpush2.msra.mxu0 0.0
    %3824 = vmatprep.subr.mxu0 0.0
    %3825 = vmatpush2.msra.mxu0 0.0
    %3826 = vmatprep.subr.mxu0 0.0
    %3827 = vmatpush2.msra.mxu0 0.0
    %3828 = vmatprep.mubr.f32.mxu0 0.0
    %3829 = vmatmul.mubr.f32.gmra.mxu0 %v3744
    %v3830 = vpop.f32.mrf.mxu0
    %v3831 = vadd.f32 0.0, %v3830
    %v3832 = vpop.f32.mrf.mxu0
    %3833 = vmatprep.mubr.f32.mxu0 0.0
    %3834 = vmatmul.mubr.f32.gmra.mxu0 %v3747
    %v3835 = vpop.f32.mrf.mxu0
    %v3836 = vadd.f32 0.0, %v3835
    %v3837 = vpop.f32.mrf.mxu0
    %3838 = vmatprep.mubr.f32.mxu0 0.0
    %3839 = vmatmul.mubr.f32.gmra.mxu0 %v3750
    %v3840 = vpop.f32.mrf.mxu0
    %v3841 = vadd.f32 0.0, %v3840
    %v3842 = vpop.f32.mrf.mxu0
    %3843 = vmatprep.mubr.f32.mxu0 0.0
    %3844 = vmatmul.mubr.f32.gmra.mxu0 %v3753
    %v3845 = vpop.f32.mrf.mxu0
    %v3846 = vadd.f32 0.0, %v3845
    %v3847 = vpop.f32.mrf.mxu0
    %3848 = vmatprep.mubr.f32.mxu0 0.0
    %3849 = vmatmul.mubr.f32.gmra.mxu0 %v3756
    %v3850 = vpop.f32.mrf.mxu0
    %v3851 = vadd.f32 0.0, %v3850
    %v3852 = vpop.f32.mrf.mxu0
    %3853 = vmatprep.mubr.f32.mxu0 0.0
    %3854 = vmatmul.mubr.f32.gmra.mxu0 %v3759
    %v3855 = vpop.f32.mrf.mxu0
    %v3856 = vadd.f32 0.0, %v3855
    %v3857 = vpop.f32.mrf.mxu0
    %3858 = vmatprep.mubr.f32.mxu0 0.0
    %3859 = vmatmul.mubr.f32.gmra.mxu0 %v3762
    %v3860 = vpop.f32.mrf.mxu0
    %v3861 = vadd.f32 0.0, %v3860
    %v3862 = vpop.f32.mrf.mxu0
    %3863 = vdwg.mxu0
    %v3864 = vadd.f32 %v3304, %v3831
    %v3865 = vadd.f32 %v3305, %v3836
    %v3866 = vadd.f32 %v3306, %v3841
    %v3867 = vadd.f32 %v3307, %v3846
    %v3868 = vadd.f32 %v3308, %v3851
    %v3869 = vadd.f32 %v3309, %v3856
    %v3870 = vadd.f32 %v3310, %v3861
    %v3871 = vld [vmem:[%s1 + $0x460] sm:$0x1]
    %v3872 = vlaneseq
    %v3873 = vshrl.u32 %v3872, 7
    %v3874 = vsub.s32 0, %v3873
    %v3875 = vrot.slane %v3871, %v3874
    %v3876 = vadd.f32 %v3864, %v3875
    %v3877 = vadd.f32 %v3865, %v3875
    %v3878 = vadd.f32 %v3866, %v3875
    %v3879 = vadd.f32 %v3867, %v3875
    %v3880 = vadd.f32 %v3868, %v3875
    %v3881 = vadd.f32 %v3869, %v3875
    %v3882 = vadd.f32 %v3870, %v3875
    %v3883 = vld [vmem:[%s1 + $0x468] sm:$0xff]
    %v3884 = vld [vmem:[%s1 + $0x470] sm:$0xff]
    %v3885 = vld [vmem:[%s1 + $0x478] sm:$0xff]
    %v3886 = vld [vmem:[%s1 + $0x480] sm:$0x1]
    %v3887 = vld [vmem:[%s1 + $0x488] sm:$0xff]
    %v3888 = vld [vmem:[%s1 + $0x490] sm:$0xff]
    %v3889 = vld [vmem:[%s1 + $0x498] sm:$0xff]
    %v3890 = vld [vmem:[%s1 + $0x4a0] sm:$0x1]
    %v3891 = vsel %vm455, %v3876, 0.0
    %v3892 = vsel %vm455, %v3877, 0.0
    %v3893 = vadd.f32 %v3891, %v3892
    %v3894 = vsel %vm455, %v3878, 0.0
    %v3895 = vadd.f32 %v3893, %v3894
    %vm3896 = vcmask 253952
    %v3897 = vsel %vm3896, %v3879, 0.0
    %v3898 = vadd.f32 %v3895, %v3897
    %3899 = vadd.xlane.f32.xlu0 %v3898
    %v3900 = vpop.xlane.xlu0 %3899
    %v3901 = vrot.slane %v3900, 4
    %v3902 = vadd.f32 %v3900, %v3901
    %v3903 = vrot.slane %v3902, 2
    %v3904 = vadd.f32 %v3902, %v3903
    %v3905 = vrot.slane %v3904, 1
    %v3906 = vadd.f32 %v3904, %v3905
    %s3907 = vtos %v3906
    %v3908 = vrcp.pop 800.0
    %s3909 = vtos %v3908
    %s3910 = smul.f32 %s3907, %s3909
    %v3911 = vstv %s3910
    %v3912 = vsub.f32 %v3876, %v3911
    %v3913 = vsub.f32 %v3877, %v3911
    %v3914 = vsub.f32 %v3878, %v3911
    %v3915 = vsub.f32 %v3879, %v3911
    %v3916 = vmul.f32 %v3912, %v3912
    %v3917 = vmul.f32 %v3913, %v3913
    %v3918 = vmul.f32 %v3914, %v3914
    %v3919 = vmul.f32 %v3915, %v3915
    %v3920 = vsel %vm455, %v3916, 0.0
    %v3921 = vsel %vm455, %v3917, 0.0
    %v3922 = vadd.f32 %v3920, %v3921
    %v3923 = vsel %vm455, %v3918, 0.0
    %v3924 = vadd.f32 %v3922, %v3923
    %v3925 = vsel %vm3896, %v3919, 0.0
    %v3926 = vadd.f32 %v3924, %v3925
    %3927 = vadd.xlane.f32.xlu0 %v3926
    %v3928 = vpop.xlane.xlu0 %3927
    %v3929 = vrot.slane %v3928, 4
    %v3930 = vadd.f32 %v3928, %v3929
    %v3931 = vrot.slane %v3930, 2
    %v3932 = vadd.f32 %v3930, %v3931
    %v3933 = vrot.slane %v3932, 1
    %v3934 = vadd.f32 %v3932, %v3933
    %s3935 = vtos %v3934
    %v3936 = vrcp.pop 800.0
    %s3937 = vtos %v3936
    %s3938 = smul.f32 %s3935, %s3937
    %s3939 = sadd.f32 %s3938, 1e-05
    %v3940 = vstv %s3939
    %v3941 = vrsqrt.pop %v3940
    %s3942 = vtos %v3941
    %v3943 = vstv %s3942
    %v3944 = vmul.f32 %v3912, %v3943
    %v3945 = vmul.f32 %v3913, %v3943
    %v3946 = vmul.f32 %v3914, %v3943
    %v3947 = vmul.f32 %v3915, %v3943
    %v3948 = vmul.f32 %v3944, %v3883
    %v3949 = vmul.f32 %v3945, %v3884
    %v3950 = vmul.f32 %v3946, %v3885
    %v3951 = vmul.f32 %v3947, %v3886
    %v3952 = vadd.f32 %v3948, %v3887
    %v3953 = vadd.f32 %v3949, %v3888
    %v3954 = vadd.f32 %v3950, %v3889
    %v3955 = vadd.f32 %v3951, %v3890
    %v3956 = vsel %vm455, %v3952, 0.0
    %v3957 = vsel %vm455, %v3953, 0.0
    %v3958 = vadd.f32 %v3956, %v3957
    %v3959 = vsel %vm455, %v3954, 0.0
    %v3960 = vadd.f32 %v3958, %v3959
    %v3961 = vsel %vm3896, %v3955, 0.0
    %v3962 = vadd.f32 %v3960, %v3961
    %v3963 = vrot.slane %v3962, 4
    %v3964 = vadd.f32 %v3962, %v3963
    %v3965 = vrot.slane %v3964, 2
    %v3966 = vadd.f32 %v3964, %v3965
    %v3967 = vrot.slane %v3966, 1
    %v3968 = vadd.f32 %v3966, %v3967
    %v3969 = vrcp.pop 25.0
    %v3970 = vmul.f32 %v3968, %v3969
    %vm3975 = vcmask 1046528
    %v3976 = vrot.slane %v3879, 1
    %v3977 = vrot.slane %v3880, 1
    %v3978 = vsel %vm3975, %v3976, %v3977
    %v3979 = vrot.slane %v3881, 1
    %v3980 = vsel %vm3975, %v3977, %v3979
    %v3981 = vrot.slane %v3882, 1
    %v3982 = vsel %vm3975, %v3979, %v3981
    %v3987 = vsel %vm455, %v3978, 0.0
    %v3988 = vsel %vm455, %v3980, 0.0
    %v3989 = vadd.f32 %v3987, %v3988
    %v3990 = vsel %vm455, %v3982, 0.0
    %v3991 = vadd.f32 %v3989, %v3990
    %v3992 = vsel %vm3896, %v3981, 0.0
    %v3993 = vadd.f32 %v3991, %v3992
    %3994 = vadd.xlane.f32.xlu0 %v3993
    %v3995 = vpop.xlane.xlu0 %3994
    %v3996 = vrot.slane %v3995, 4
    %v3997 = vadd.f32 %v3995, %v3996
    %v3998 = vrot.slane %v3997, 2
    %v3999 = vadd.f32 %v3997, %v3998
    %v4000 = vrot.slane %v3999, 1
    %v4001 = vadd.f32 %v3999, %v4000
    %s4002 = vtos %v4001
    %v4003 = vrcp.pop 800.0
    %s4004 = vtos %v4003
    %s4005 = smul.f32 %s4002, %s4004
    %v4006 = vstv %s4005
    %v4007 = vsub.f32 %v3879, %v4006
    %v4008 = vsub.f32 %v3880, %v4006
    %v4009 = vsub.f32 %v3881, %v4006
    %v4010 = vsub.f32 %v3882, %v4006
    %v4011 = vmul.f32 %v4007, %v4007
    %v4012 = vmul.f32 %v4008, %v4008
    %v4013 = vmul.f32 %v4009, %v4009
    %v4014 = vmul.f32 %v4010, %v4010
    %v4019 = vrot.slane %v4011, 1
    %v4020 = vrot.slane %v4012, 1
    %v4021 = vsel %vm3975, %v4019, %v4020
    %v4022 = vrot.slane %v4013, 1
    %v4023 = vsel %vm3975, %v4020, %v4022
    %v4024 = vrot.slane %v4014, 1
    %v4025 = vsel %vm3975, %v4022, %v4024
    %v4030 = vsel %vm455, %v4021, 0.0
    %v4031 = vsel %vm455, %v4023, 0.0
    %v4032 = vadd.f32 %v4030, %v4031
    %v4033 = vsel %vm455, %v4025, 0.0
    %v4034 = vadd.f32 %v4032, %v4033
    %v4035 = vsel %vm3896, %v4024, 0.0
    %v4036 = vadd.f32 %v4034, %v4035
    %4037 = vadd.xlane.f32.xlu0 %v4036
    %v4038 = vpop.xlane.xlu0 %4037
    %v4039 = vrot.slane %v4038, 4
    %v4040 = vadd.f32 %v4038, %v4039
    %v4041 = vrot.slane %v4040, 2
    %v4042 = vadd.f32 %v4040, %v4041
    %v4043 = vrot.slane %v4042, 1
    %v4044 = vadd.f32 %v4042, %v4043
    %s4045 = vtos %v4044
    %v4046 = vrcp.pop 800.0
    %s4047 = vtos %v4046
    %s4048 = smul.f32 %s4045, %s4047
    %s4049 = sadd.f32 %s4048, 1e-05
    %v4050 = vstv %s4049
    %v4051 = vrsqrt.pop %v4050
    %s4052 = vtos %v4051
    %v4053 = vstv %s4052
    %v4054 = vmul.f32 %v4007, %v4053
    %v4055 = vmul.f32 %v4008, %v4053
    %v4056 = vmul.f32 %v4009, %v4053
    %v4057 = vmul.f32 %v4010, %v4053
    %v4062 = vrot.slane %v3883, 7
    %v4063 = vrot.slane %v3884, 7
    %v4064 = vsel %vm92, %v4062, %v4063
    %v4065 = vrot.slane %v3885, 7
    %v4066 = vsel %vm92, %v4063, %v4065
    %v4067 = vrot.slane %v3886, 7
    %v4068 = vsel %vm92, %v4065, %v4067
    %v4073 = vmul.f32 %v4054, %v4062
    %v4074 = vmul.f32 %v4055, %v4064
    %v4075 = vmul.f32 %v4056, %v4066
    %v4076 = vmul.f32 %v4057, %v4068
    %v4081 = vrot.slane %v3887, 7
    %v4082 = vrot.slane %v3888, 7
    %v4083 = vsel %vm92, %v4081, %v4082
    %v4084 = vrot.slane %v3889, 7
    %v4085 = vsel %vm92, %v4082, %v4084
    %v4086 = vrot.slane %v3890, 7
    %v4087 = vsel %vm92, %v4084, %v4086
    %v4092 = vadd.f32 %v4073, %v4081
    %v4093 = vadd.f32 %v4074, %v4083
    %v4094 = vadd.f32 %v4075, %v4085
    %v4095 = vadd.f32 %v4076, %v4087
    %v4100 = vrot.slane %v4092, 1
    %v4101 = vrot.slane %v4093, 1
    %v4102 = vsel %vm3975, %v4100, %v4101
    %v4103 = vrot.slane %v4094, 1
    %v4104 = vsel %vm3975, %v4101, %v4103
    %v4105 = vrot.slane %v4095, 1
    %v4106 = vsel %vm3975, %v4103, %v4105
    %v4111 = vsel %vm455, %v4102, 0.0
    %v4112 = vsel %vm455, %v4104, 0.0
    %v4113 = vadd.f32 %v4111, %v4112
    %v4114 = vsel %vm455, %v4106, 0.0
    %v4115 = vadd.f32 %v4113, %v4114
    %v4116 = vsel %vm3896, %v4105, 0.0
    %v4117 = vadd.f32 %v4115, %v4116
    %v4118 = vrot.slane %v4117, 4
    %v4119 = vadd.f32 %v4117, %v4118
    %v4120 = vrot.slane %v4119, 2
    %v4121 = vadd.f32 %v4119, %v4120
    %v4122 = vrot.slane %v4121, 1
    %v4123 = vadd.f32 %v4121, %v4122
    %v4124 = vmul.f32 %v4123, %v3969
    %v4125 = vsel %vm92, %v3970, %v4124
    %4126 = vst.msk [vmem:[#allocation2] sm:$0x3] %vm920, %v4125
    // Predicated region
    $region10: #{mlp_head_forward.1} parent=1 // pred_check
      _
    $region11: #{mlp_head_forward.1} parent=1 // pred_check_branch
      %4128 = sbr.rel (0) target = $region13
    $region12: #{mlp_head_forward.1} parent=1 // pred_region
      %s4130 = ssub.s32 32, 32
      %4131 = vsyncadd [#allocation3], %s4130
      %s4133 = sshll.u32 [#allocation2], 4
      %s4134 = int_to_ptr.vmem [resolvable:$true] %s4133
      %4136 = dma.vmem_to_hbm [thread:$0]  %s4134, 32, %s2, [#allocation3]
    $region13: #{mlp_head_forward.1} parent=1 // pred_fallthru
      _
    // Predicated region
    $region14: #{mlp_head_forward.1} parent=1 // pred_check
      _
    $region15: #{mlp_head_forward.1} parent=1 // pred_check_branch
      %4138 = sbr.rel (0) target = $region17
    $region16: #{mlp_head_forward.1} parent=1 // pred_region
      %4139 = dma.done [#allocation3], 32
    $region17: #{mlp_head_forward.1} parent=1 // pred_fallthru
      _
    %4140 = vsyncpa [#allocation3], 1

</llo_original>
